<compile_context>
chip_gen: v7x
topology: tpu7x:2x2x1
jax: 0.10.0
libtpu: 0.0.40
codegen_flags: <defaults>
</compile_context>

<pallas_src>
import functools

import jax
import jax.numpy as jnp
from jax.experimental import pallas as pl
from jax.experimental.pallas import tpu as pltpu


def _mlp_kernel(x_ref, w1_ref, b1_ref, w2_ref, b2_ref, o_ref):
    """Fused out = relu(x @ W1 + b1) @ W2 + b2, tiled over (batch, hidden)."""
    j = pl.program_id(1)  # hidden-dim reduction axis

    @pl.when(j == 0)
    def _():
        o_ref[...] = jnp.zeros_like(o_ref)

    # First layer, one hidden tile: (Bt, D1) @ (D1, Ht) -> (Bt, Ht), f32 acc.
    h = jnp.dot(x_ref[...], w1_ref[...], preferred_element_type=jnp.float32)
    h = jnp.maximum(h + b1_ref[...], 0.0)  # bias (f32) + ReLU

    # Second layer partial product accumulated directly into the resident
    # output block: (Bt, Ht) @ (Ht, Cp) -> (Bt, Cp).
    o_ref[...] += jnp.dot(
        h.astype(w2_ref.dtype), w2_ref[...], preferred_element_type=jnp.float32
    )

    @pl.when(j == pl.num_programs(1) - 1)
    def _():
        o_ref[...] += b2_ref[...]


def _round_up(v, m):
    return ((v + m - 1) // m) * m


@functools.partial(jax.jit, static_argnames=("hidden_tile",))
def cnn_femnist_server_forward(x, w1, b1, w2, b2, *, hidden_tile=1024):
    """x: [B, 64, s/4, s/4] float32 (NCHW features). Returns logits [B, num_class]."""
    B = x.shape[0]
    x2d = x.reshape(B, -1)  # torch.nn.Flatten (row-major over C,H,W)
    D1, H = w1.shape
    _, C = w2.shape

    hidden_tile = min(hidden_tile, H)
    assert H % hidden_tile == 0

    # ---- padding for TPU-friendly layouts --------------------------------
    # Batch: multiple of 8 (f32 sublane); tile at 256 for MXU-M occupancy.
    Bp = max(8, _round_up(B, 8))
    tb = min(Bp, 256)
    Bp = _round_up(Bp, tb)
    # Classes: pad to a multiple of 128 for lane-dense stores / full MXU-N.
    Cp = _round_up(C, 128)

    x_pad = jnp.zeros((Bp, D1), dtype=jnp.bfloat16).at[:B].set(
        x2d.astype(jnp.bfloat16)
    )
    w1_b = w1.astype(jnp.bfloat16)
    w2_b = jnp.zeros((H, Cp), dtype=jnp.bfloat16).at[:, :C].set(
        w2.astype(jnp.bfloat16)
    )
    b1_2d = b1.reshape(1, H).astype(jnp.float32)
    b2_2d = jnp.zeros((1, Cp), dtype=jnp.float32).at[:, :C].set(
        b2.reshape(1, C).astype(jnp.float32)
    )

    grid = (Bp // tb, H // hidden_tile)

    flops = 2 * Bp * (D1 * H + H * Cp)
    bytes_accessed = (
        x_pad.size * 2 + w1_b.size * 2 + w2_b.size * 2
        + b1_2d.size * 4 + b2_2d.size * 4 + Bp * Cp * 4
    )

    out = pl.pallas_call(
        _mlp_kernel,
        out_shape=jax.ShapeDtypeStruct((Bp, Cp), jnp.float32),
        grid_spec=pltpu.PrefetchScalarGridSpec(
            num_scalar_prefetch=0,
            grid=grid,
            in_specs=[
                pl.BlockSpec((tb, D1), lambda b, j: (b, 0)),            # x tile
                pl.BlockSpec((D1, hidden_tile), lambda b, j: (0, j)),   # W1 tile
                pl.BlockSpec((1, hidden_tile), lambda b, j: (0, j)),    # b1 tile
                pl.BlockSpec((hidden_tile, Cp), lambda b, j: (j, 0)),   # W2 tile
                pl.BlockSpec((1, Cp), lambda b, j: (0, 0)),             # b2 (resident)
            ],
            out_specs=pl.BlockSpec((tb, Cp), lambda b, j: (b, 0)),      # resident acc
        ),
        compiler_params=pltpu.CompilerParams(
            dimension_semantics=("parallel", "arbitrary"),
            vmem_limit_bytes=32 * 1024 * 1024,
        ),
        cost_estimate=pl.CostEstimate(
            flops=flops, transcendentals=0, bytes_accessed=bytes_accessed
        ),
    )(x_pad, w1_b, b1_2d, w2_b, b2_2d)

    return out[:B, :C]


def init_params(key, image_size, num_class, hidden=2048):
    """Deterministic synthetic parameters (shapes match the torch module)."""
    d1 = 64 * (image_size // 4) * (image_size // 4)
    k1, k2, k3, k4 = jax.random.split(key, 4)
    # [in, out] layout == torch weight.T
    w1 = jax.random.normal(k1, (d1, hidden), dtype=jnp.float32) * (1.0 / jnp.sqrt(d1))
    b1 = jax.random.normal(k2, (hidden,), dtype=jnp.float32) * 0.01
    w2 = jax.random.normal(k3, (hidden, num_class), dtype=jnp.float32) * (1.0 / jnp.sqrt(hidden))
    b2 = jax.random.normal(k4, (num_class,), dtype=jnp.float32) * 0.01
    return w1, b1, w2, b2


if __name__ == "__main__":
    key = jax.random.PRNGKey(0)
    kx, kp = jax.random.split(key)

    # Small-but-consistent shapes: image_size=16 -> features [B, 64, 4, 4],
    # flattened dim 64*4*4 = 1024; hidden 2048; 62 classes.
    batch, image_size, num_class = 2, 16, 62
    x = jax.random.normal(
        kx, (batch, 64, image_size // 4, image_size // 4), dtype=jnp.float32
    )
    w1, b1, w2, b2 = init_params(kp, image_size, num_class)

    out = cnn_femnist_server_forward(x, w1, b1, w2, b2)
    out = jax.block_until_ready(out)
    assert out.shape == (batch, num_class), out.shape

    # Reference 1: same bf16-weight / f32-accumulate math in plain JAX.
    x2d = x.reshape(batch, -1)
    xb = x2d.astype(jnp.bfloat16)
    w1b = w1.astype(jnp.bfloat16)
    w2b = w2.astype(jnp.bfloat16)
    h_ref = jnp.maximum(
        jnp.dot(xb, w1b, preferred_element_type=jnp.float32) + b1, 0.0
    )
    ref_bf16 = jnp.dot(
        h_ref.astype(jnp.bfloat16), w2b, preferred_element_type=jnp.float32
    ) + b2
    assert jnp.allclose(out, ref_bf16, atol=5e-3, rtol=5e-3), (
        float(jnp.max(jnp.abs(out - ref_bf16)))
    )

    # Reference 2: full-f32 torch-equivalent math (loose tolerance for bf16 weights).
    ref_f32 = jnp.maximum(x2d @ w1 + b1, 0.0) @ w2 + b2
    assert jnp.allclose(out, ref_f32, atol=5e-2, rtol=5e-2), (
        float(jnp.max(jnp.abs(out - ref_f32)))
    )

    print("KERNEL_OK")
</pallas_src>

<mosaic_0001>
module attributes {stable_mosaic.version = 11 : i64} {
  func.func @_mlp_kernel(%arg0: i32, %arg1: i32, %arg2: memref<8x1024xbf16, #tpu.memory_space<vmem>>, %arg3: memref<1024x1024xbf16, #tpu.memory_space<vmem>>, %arg4: memref<1x1024xf32, #tpu.memory_space<vmem>>, %arg5: memref<1024x128xbf16, #tpu.memory_space<vmem>>, %arg6: memref<1x128xf32, #tpu.memory_space<vmem>>, %arg7: memref<8x128xf32, #tpu.memory_space<vmem>>) attributes {dimension_semantics = [#tpu.dimension_semantics<parallel>, #tpu.dimension_semantics<arbitrary>], iteration_bounds = array<i64: 1, 2>, scalar_prefetch = 0 : i64, scratch_operands = 0 : i64, tpu.core_type = #tpu.core_type<tc>, window_params = [{transform_indices = @transform_0, window_bounds = array<i64: 8, 1024>}, {transform_indices = @transform_1, window_bounds = array<i64: 1024, 1024>}, {transform_indices = @transform_2, window_bounds = array<i64: 1, 1024>}, {transform_indices = @transform_3, window_bounds = array<i64: 1024, 128>}, {pipeline_mode = #tpu.pipeline_mode<synchronous>, transform_indices = @transform_4, window_bounds = array<i64: 1, 128>}, {transform_indices = @transform_5, window_bounds = array<i64: 8, 128>}]} {
    %c0_i32 = arith.constant 0 : i32
    %0 = arith.cmpi eq, %arg1, %c0_i32 : i32
    %1 = arith.extui %0 : i1 to i32
    %c0_i32_0 = arith.constant 0 : i32
    %2 = arith.cmpi ne, %1, %c0_i32_0 : i32
    scf.if %2 {
      %cst_15 = arith.constant 0.000000e+00 : f32
      %20 = vector.broadcast %cst_15 : f32 to vector<8x128xf32>
      %c0_16 = arith.constant 0 : index
      %c0_17 = arith.constant 0 : index
      %21 = vector.load %arg7[%c0_16, %c0_17] : memref<8x128xf32, #tpu.memory_space<vmem>>, vector<8x128xf32>
      tpu.vector_store %arg7[%c0_16, %c0_17], %20 {strides = array<i32>} : memref<8x128xf32, #tpu.memory_space<vmem>>, vector<8x128xf32>,
    } else {
    }
    %c0 = arith.constant 0 : index
    %c0_1 = arith.constant 0 : index
    %3 = vector.load %arg2[%c0, %c0_1] : memref<8x1024xbf16, #tpu.memory_space<vmem>>, vector<8x1024xbf16>
    %c0_2 = arith.constant 0 : index
    %c0_3 = arith.constant 0 : index
    %4 = vector.load %arg3[%c0_2, %c0_3] : memref<1024x1024xbf16, #tpu.memory_space<vmem>>, vector<1024x1024xbf16>
    %cst = arith.constant dense<0.000000e+00> : vector<8x1024xf32>
    %5 = tpu.matmul %3, %4, %cst {dimension_numbers = #tpu.dot_dimension_numbers<[1], [0], [0], [1], [0, 0, 1, 1], [], []>} : vector<8x1024xbf16>, vector<1024x1024xbf16>, vector<8x1024xf32> -> vector<8x1024xf32>
    %c0_4 = arith.constant 0 : index
    %c0_5 = arith.constant 0 : index
    %6 = vector.load %arg4[%c0_4, %c0_5] : memref<1x1024xf32, #tpu.memory_space<vmem>>, vector<1x1024xf32>
    %7 = vector.broadcast %6 : vector<1x1024xf32> to vector<8x1024xf32>
    %8 = arith.addf %5, %7 : vector<8x1024xf32>
    %cst_6 = arith.constant 0.000000e+00 : f32
    %9 = vector.broadcast %cst_6 : f32 to vector<8x1024xf32>
    %10 = arith.maximumf %8, %9 : vector<8x1024xf32>
    %c0_7 = arith.constant 0 : index
    %c0_8 = arith.constant 0 : index
    %11 = vector.load %arg7[%c0_7, %c0_8] : memref<8x128xf32, #tpu.memory_space<vmem>>, vector<8x128xf32>
    %12 = arith.truncf %10 : vector<8x1024xf32> to vector<8x1024xbf16>
    %c0_9 = arith.constant 0 : index
    %c0_10 = arith.constant 0 : index
    %13 = vector.load %arg5[%c0_9, %c0_10] : memref<1024x128xbf16, #tpu.memory_space<vmem>>, vector<1024x128xbf16>
    %cst_11 = arith.constant dense<0.000000e+00> : vector<8x128xf32>
    %14 = tpu.matmul %12, %13, %cst_11 {dimension_numbers = #tpu.dot_dimension_numbers<[1], [0], [0], [1], [0, 0, 1, 1], [], []>} : vector<8x1024xbf16>, vector<1024x128xbf16>, vector<8x128xf32> -> vector<8x128xf32>
    %15 = arith.addf %11, %14 : vector<8x128xf32>
    %c0_12 = arith.constant 0 : index
    %c0_13 = arith.constant 0 : index
    %16 = vector.load %arg7[%c0_12, %c0_13] : memref<8x128xf32, #tpu.memory_space<vmem>>, vector<8x128xf32>
    tpu.vector_store %arg7[%c0_12, %c0_13], %15 {strides = array<i32>} : memref<8x128xf32, #tpu.memory_space<vmem>>, vector<8x128xf32>,
    %c1_i32 = arith.constant 1 : i32
    %17 = arith.cmpi eq, %arg1, %c1_i32 : i32
    %18 = arith.extui %17 : i1 to i32
    %c0_i32_14 = arith.constant 0 : i32
    %19 = arith.cmpi ne, %18, %c0_i32_14 : i32
    scf.if %19 {
      %c0_15 = arith.constant 0 : index
      %c0_16 = arith.constant 0 : index
      %20 = vector.load %arg7[%c0_15, %c0_16] : memref<8x128xf32, #tpu.memory_space<vmem>>, vector<8x128xf32>
      %c0_17 = arith.constant 0 : index
      %c0_18 = arith.constant 0 : index
      %21 = vector.load %arg6[%c0_17, %c0_18] : memref<1x128xf32, #tpu.memory_space<vmem>>, vector<1x128xf32>
      %22 = vector.broadcast %21 : vector<1x128xf32> to vector<8x128xf32>
      %23 = arith.addf %20, %22 : vector<8x128xf32>
      %c0_19 = arith.constant 0 : index
      %c0_20 = arith.constant 0 : index
      %24 = vector.load %arg7[%c0_19, %c0_20] : memref<8x128xf32, #tpu.memory_space<vmem>>, vector<8x128xf32>
      tpu.vector_store %arg7[%c0_19, %c0_20], %23 {strides = array<i32>} : memref<8x128xf32, #tpu.memory_space<vmem>>, vector<8x128xf32>,
    } else {
    }
    return
  }
  func.func @transform_0(%arg0: i32, %arg1: i32) -> (i32, i32) {
    %c0_i32 = arith.constant 0 : i32
    %c0_i32_0 = arith.constant 0 : i32
    return %arg0, %c0_i32 : i32, i32
  }
  func.func @transform_1(%arg0: i32, %arg1: i32) -> (i32, i32) {
    %c0_i32 = arith.constant 0 : i32
    %c0_i32_0 = arith.constant 0 : i32
    return %c0_i32, %arg1 : i32, i32
  }
  func.func @transform_2(%arg0: i32, %arg1: i32) -> (i32, i32) {
    %c0_i32 = arith.constant 0 : i32
    %c0_i32_0 = arith.constant 0 : i32
    return %c0_i32, %arg1 : i32, i32
  }
  func.func @transform_3(%arg0: i32, %arg1: i32) -> (i32, i32) {
    %c0_i32 = arith.constant 0 : i32
    %c0_i32_0 = arith.constant 0 : i32
    return %arg1, %c0_i32 : i32, i32
  }
  func.func @transform_4(%arg0: i32, %arg1: i32) -> (i32, i32) {
    %c0_i32 = arith.constant 0 : i32
    %c0_i32_0 = arith.constant 0 : i32
    %c0_i32_1 = arith.constant 0 : i32
    return %c0_i32, %c0_i32_0 : i32, i32
  }
  func.func @transform_5(%arg0: i32, %arg1: i32) -> (i32, i32) {
    %c0_i32 = arith.constant 0 : i32
    %c0_i32_0 = arith.constant 0 : i32
    return %arg0, %c0_i32 : i32, i32
  }
}

</mosaic_0001>

<llo_original>
// kernel: cnn_femnist_server_forward.1
$region0: #{cnn_femnist_server_forward.1}
  #allocation0 [shape = 'u32[]', space=smem, size = 0x4, offset = 0x4, fixed_abs, tag = 'smem constant byte address 0x4 - core index']
  #allocation1 [shape = 'u32[144,128]{1,0:T(1,128)}', space=vmem, size = 0x12000, scoped, tag = 'internal scratch']
  %s0 = inlined_call_operand.vmem [shape: bf16[8,1024], index: 0, kind: input, shape index: {}]
  %s1 = inlined_call_operand.vmem [shape: bf16[1024,2048], index: 1, kind: input, shape index: {}]
  %s2 = inlined_call_operand.vmem [shape: f32[1,2048], index: 2, kind: input, shape index: {}]
  %s3 = inlined_call_operand.vmem [shape: bf16[2048,128], index: 3, kind: input, shape index: {}]
  %s4 = inlined_call_operand.vmem [shape: f32[1,128], index: 4, kind: input, shape index: {}]
  %s5 = inlined_call_operand.vmem [shape: f32[8,128], index: 5, kind: output, shape index: {}]
  %s6 = sld [smem:[#allocation0]]
  $region84: #{cnn_femnist_server_forward.1} parent=0
    _
  %s8 = ssub.s32 1, %s6
  %s9 = scalar_select 0, %s8, %s6
  $region1: #{cnn_femnist_server_forward.1} parent=0
    #allocation2 [shape = 'u8[4194304]{0}', space=vmem, size = 0x400000, scoped, tag = 'input window, operand 1']
    loop: start=0, step=1, limit=4
    $region2: #{cnn_femnist_server_forward.1} parent=1 // loop_pre_header
      _
    $region3: #{cnn_femnist_server_forward.1} parent=1 // loop_header
      %s11 = sphi 0, %s15
      %p12 = scmp.ge.s32.totalorder %s11, 4
      %s18 = sphi 0, %s30
      %s19 = sphi 0, %s26
      %s20 = sphi 0, %s18
      %s21 = sphi 0, %s19
      %s22 = sphi 0, %s20
      %s23 = sphi 0, %s21
      %s33 = sphi 0, %s35
      %s36 = sphi 0, %s33
      %s37 = sphi 0, %s36
      %s53 = sphi 0, %s37
      %s59 = sphi 0, %s61
      %s62 = sphi 0, %s59
      %s63 = sphi 0, %s62
      %s79 = sphi 0, %s63
      %s85 = sphi 0, %s87
      %s88 = sphi 0, %s85
      %s89 = sphi 0, %s88
      %s105 = sphi 0, %s89
      %s111 = sphi 0, %s113
      %s114 = sphi 0, %s111
      %s115 = sphi 0, %s114
      %s131 = sphi 0, %s115
      %s135 = sphi 0, %s135
      %s137 = sphi 0, %s135
      %s138 = sphi 0, %s137
      %s152 = sphi 0, %s138
      %s158 = sphi 0, %s160
      %s161 = sphi 0, %s158
      %s162 = sphi 0, %s161
      %s178 = sphi 0, %s162
    $region4: #{cnn_femnist_server_forward.1} parent=1 // loop_header_branch
      %14 = sbr.rel (%p12) target = $region8
    $region5: #{cnn_femnist_server_forward.1} parent=1 // loop_body
      %s16 = ssub.s32 %s11, 1
      %s17 = ssub.s32 %s11, 2
      %s24 = sadd.s32 1, %s19
      %p25 = scmp.ge.s32.totalorder %s24, 2
      %s26 = scalar_select %p25, 0, %s24
      %s27 = sadd.s32 1, %s18
      %s28 = scalar_select %p25, %s27, %s18
      %p29 = scmp.ge.s32.totalorder %s28, 1
      %s30 = scalar_select %p29, 0, %s28
      %s31 = ssub.s32 %s18, %s30
      %p32 = scmp.eq.s32.totalorder %s31, 0
      %s34 = sadd.s32 %s33, 1
      %s35 = scalar_select %p32, %s33, %s34
      %p38 = pneg %p32
      %p39 = scmp.eq.s32.totalorder %s11, 1
      %p40 = por %p38, %p39
      %p41 = scmp.ne.s32.totalorder %s33, %s36
      %p42 = scmp.eq.s32.totalorder %s11, 0
      %p43 = por %p41, %p42
      %p44 = scmp.ne.s32.totalorder %s33, %s36
      %p45 = scmp.eq.s32.totalorder %s16, 1
      %p46 = por %p44, %p45
      %p47 = scmp.ne.s32.totalorder %s36, %s37
      %p48 = scmp.eq.s32.totalorder %s16, 0
      %p49 = por %p47, %p48
      %p50 = scmp.ne.s32.totalorder %s36, %s37
      %p51 = scmp.eq.s32.totalorder %s17, 1
      %p52 = por %p50, %p51
      %p54 = scmp.ne.s32.totalorder %s37, %s53
      %p55 = scmp.eq.s32.totalorder %s17, 0
      %p56 = por %p54, %p55
      %s57 = ssub.s32 %s19, %s26
      %p58 = scmp.eq.s32.totalorder %s57, 0
      %s60 = sadd.s32 %s59, 1
      %s61 = scalar_select %p58, %s59, %s60
      %p64 = pneg %p58
      %p65 = scmp.eq.s32.totalorder %s11, 1
      %p66 = por %p64, %p65
      %p67 = scmp.ne.s32.totalorder %s59, %s62
      %p68 = scmp.eq.s32.totalorder %s11, 0
      %p69 = por %p67, %p68
      %p70 = scmp.ne.s32.totalorder %s59, %s62
      %p71 = scmp.eq.s32.totalorder %s16, 1
      %p72 = por %p70, %p71
      %p73 = scmp.ne.s32.totalorder %s62, %s63
      %p74 = scmp.eq.s32.totalorder %s16, 0
      %p75 = por %p73, %p74
      %p76 = scmp.ne.s32.totalorder %s62, %s63
      %p77 = scmp.eq.s32.totalorder %s17, 1
      %p78 = por %p76, %p77
      %p80 = scmp.ne.s32.totalorder %s63, %s79
      %p81 = scmp.eq.s32.totalorder %s17, 0
      %p82 = por %p80, %p81
      %s83 = ssub.s32 %s19, %s26
      %p84 = scmp.eq.s32.totalorder %s83, 0
      %s86 = sadd.s32 %s85, 1
      %s87 = scalar_select %p84, %s85, %s86
      %p90 = pneg %p84
      %p91 = scmp.eq.s32.totalorder %s11, 1
      %p92 = por %p90, %p91
      %p93 = scmp.ne.s32.totalorder %s85, %s88
      %p94 = scmp.eq.s32.totalorder %s11, 0
      %p95 = por %p93, %p94
      %p96 = scmp.ne.s32.totalorder %s85, %s88
      %p97 = scmp.eq.s32.totalorder %s16, 1
      %p98 = por %p96, %p97
      %p99 = scmp.ne.s32.totalorder %s88, %s89
      %p100 = scmp.eq.s32.totalorder %s16, 0
      %p101 = por %p99, %p100
      %p102 = scmp.ne.s32.totalorder %s88, %s89
      %p103 = scmp.eq.s32.totalorder %s17, 1
      %p104 = por %p102, %p103
      %p106 = scmp.ne.s32.totalorder %s89, %s105
      %p107 = scmp.eq.s32.totalorder %s17, 0
      %p108 = por %p106, %p107
      %s109 = ssub.s32 %s19, %s26
      %p110 = scmp.eq.s32.totalorder %s109, 0
      %s112 = sadd.s32 %s111, 1
      %s113 = scalar_select %p110, %s111, %s112
      %p116 = pneg %p110
      %p117 = scmp.eq.s32.totalorder %s11, 1
      %p118 = por %p116, %p117
      %p119 = scmp.ne.s32.totalorder %s111, %s114
      %p120 = scmp.eq.s32.totalorder %s11, 0
      %p121 = por %p119, %p120
      %p122 = scmp.ne.s32.totalorder %s111, %s114
      %p123 = scmp.eq.s32.totalorder %s16, 1
      %p124 = por %p122, %p123
      %p125 = scmp.ne.s32.totalorder %s114, %s115
      %p126 = scmp.eq.s32.totalorder %s16, 0
      %p127 = por %p125, %p126
      %p128 = scmp.ne.s32.totalorder %s114, %s115
      %p129 = scmp.eq.s32.totalorder %s17, 1
      %p130 = por %p128, %p129
      %p132 = scmp.ne.s32.totalorder %s115, %s131
      %p133 = scmp.eq.s32.totalorder %s17, 0
      %p134 = por %p132, %p133
      %s136 = sadd.s32 %s135, 1
      %p139 = scmp.eq.s32.totalorder %s11, 1
      %p140 = scmp.ne.s32.totalorder %s135, %s137
      %p141 = scmp.eq.s32.totalorder %s11, 0
      %p142 = por %p140, %p141
      %p143 = scmp.ne.s32.totalorder %s135, %s137
      %p144 = scmp.eq.s32.totalorder %s16, 1
      %p145 = por %p143, %p144
      %p146 = scmp.ne.s32.totalorder %s137, %s138
      %p147 = scmp.eq.s32.totalorder %s16, 0
      %p148 = por %p146, %p147
      %p149 = scmp.ne.s32.totalorder %s137, %s138
      %p150 = scmp.eq.s32.totalorder %s17, 1
      %p151 = por %p149, %p150
      %p153 = scmp.ne.s32.totalorder %s138, %s152
      %p154 = scmp.eq.s32.totalorder %s17, 0
      %p155 = por %p153, %p154
      %s156 = ssub.s32 %s18, %s30
      %p157 = scmp.eq.s32.totalorder %s156, 0
      %s159 = sadd.s32 %s158, 1
      %s160 = scalar_select %p157, %s158, %s159
      %p163 = pneg %p157
      %p164 = scmp.eq.s32.totalorder %s11, 1
      %p165 = por %p163, %p164
      %p166 = scmp.ne.s32.totalorder %s158, %s161
      %p167 = scmp.eq.s32.totalorder %s11, 0
      %p168 = por %p166, %p167
      %p169 = scmp.ne.s32.totalorder %s158, %s161
      %p170 = scmp.eq.s32.totalorder %s16, 1
      %p171 = por %p169, %p170
      %p172 = scmp.ne.s32.totalorder %s161, %s162
      %p173 = scmp.eq.s32.totalorder %s16, 0
      %p174 = por %p172, %p173
      %p175 = scmp.ne.s32.totalorder %s161, %s162
      %p176 = scmp.eq.s32.totalorder %s17, 1
      %p177 = por %p175, %p176
      %p179 = scmp.ne.s32.totalorder %s162, %s178
      %p180 = scmp.eq.s32.totalorder %s17, 0
      %p181 = por %p179, %p180
      %p182 = scmp.le.s32.totalorder 1, %s11
      %p183 = scmp.lt.s32.totalorder %s11, 3
      %p184 = pnand %p182, %p183
      %p185 = pneg %p184
      // Predicated region
      $region9: #{cnn_femnist_server_forward.1} parent=5 // pred_check
        _
      $region10: #{cnn_femnist_server_forward.1} parent=5 // pred_check_branch
        %187 = sbr.rel (%p184) target = $region12
      $region11: #{cnn_femnist_server_forward.1} parent=5 // pred_region
        %s188 = ssub.s32 %s11, 1
        // Predicated region
        $region13: #{cnn_femnist_server_forward.1} parent=11 // pred_check
          %p189 = pneg %p49
        $region14: #{cnn_femnist_server_forward.1} parent=11 // pred_check_branch
          %191 = sbr.rel (%p189) target = $region16
        $region15: #{cnn_femnist_server_forward.1} parent=11 // pred_region
          %p192 = scmp.lt.s32.totalorder %s20, 0
          %s193 = scalar_select %p192, %s20, 0
          %s194 = smul.addr %s193, 8
          %s195 = smul.addr %s194, 4
          %s196 = scalar_lea.vmem %s0, %s195
        $region16: #{cnn_femnist_server_forward.1} parent=11 // pred_fallthru
          _
        // Predicated region
        $region17: #{cnn_femnist_server_forward.1} parent=11 // pred_check
          %p197 = pneg %p148
        $region18: #{cnn_femnist_server_forward.1} parent=11 // pred_check_branch
          %199 = sbr.rel (%p197) target = $region20
        $region19: #{cnn_femnist_server_forward.1} parent=11 // pred_region
          _
        $region20: #{cnn_femnist_server_forward.1} parent=11 // pred_fallthru
          _
      $region12: #{cnn_femnist_server_forward.1} parent=5 // pred_fallthru
        _
      %p200 = scmp.lt.s32.totalorder %s11, 2
      // Predicated region
      $region21: #{cnn_femnist_server_forward.1} parent=5 // pred_check
        %p201 = pneg %p200
      $region22: #{cnn_femnist_server_forward.1} parent=5 // pred_check_branch
        %203 = sbr.rel (%p201) target = $region24
      $region23: #{cnn_femnist_server_forward.1} parent=5 // pred_region
        // Predicated region
        $region25: #{cnn_femnist_server_forward.1} parent=23 // pred_check
          %p204 = pneg %p69
        $region26: #{cnn_femnist_server_forward.1} parent=23 // pred_check_branch
          %206 = sbr.rel (%p204) target = $region28
        $region27: #{cnn_femnist_server_forward.1} parent=23 // pred_region
          %s207 = sand.u32 %s59, 1
          %s208 = sand.u32 %s59, 1
          %s209 = smul.addr %s208, 4096
          %s210 = scalar_lea.vmem [#allocation2], %s209
          %s211 = smul.u32 8, %s19
          %s212 = smul.addr %s211, 4
          %s213 = scalar_lea.vmem %s1, %s212
          // Predicated region
          $region29: #{cnn_femnist_server_forward.1} parent=27 // pred_check
            _
          $region30: #{cnn_femnist_server_forward.1} parent=27 // pred_check_branch
            %215 = sbr.rel (0) target = $region32
          $region31: #{cnn_femnist_server_forward.1} parent=27 // pred_region
            // Predicated region
            $region33: #{cnn_femnist_server_forward.1} parent=31 // pred_check
              _
            $region34: #{cnn_femnist_server_forward.1} parent=31 // pred_check_branch
              %217 = sbr.rel (0) target = $region36
            $region35: #{cnn_femnist_server_forward.1} parent=31 // pred_region
              loop: start=0, step=1, limit=1
              $region37: #{cnn_femnist_server_forward.1} parent=35 // loop_pre_header
                _
              $region38: #{cnn_femnist_server_forward.1} parent=35 // loop_header
                %s219 = sphi 0, %s223
                %p220 = scmp.ge.s32.totalorder %s219, 1
                %s224 = sphi %s213, %s213
                %s225 = sphi %s210, %s210
              $region39: #{cnn_femnist_server_forward.1} parent=35 // loop_header_branch
                %222 = sbr.rel (%p220) target = $region43
              $region40: #{cnn_femnist_server_forward.1} parent=35 // loop_body
                %v226 = vld [vmem:[%s224] sm:$0xff]
                %227 = vst [vmem:[%s225] sm:$0xff] %v226
                %v228 = vld [vmem:[%s224 + $0x8] sm:$0xff]
                %229 = vst [vmem:[%s225 + $0x8] sm:$0xff] %v228
                %v230 = vld [vmem:[%s224 + $0x10] sm:$0xff]
                %231 = vst [vmem:[%s225 + $0x10] sm:$0xff] %v230
                %v232 = vld [vmem:[%s224 + $0x18] sm:$0xff]
                %233 = vst [vmem:[%s225 + $0x18] sm:$0xff] %v232
                %v234 = vld [vmem:[%s224 + $0x40] sm:$0xff]
                %235 = vst [vmem:[%s225 + $0x20] sm:$0xff] %v234
                %v236 = vld [vmem:[%s224 + $0x48] sm:$0xff]
                %237 = vst [vmem:[%s225 + $0x28] sm:$0xff] %v236
                %v238 = vld [vmem:[%s224 + $0x50] sm:$0xff]
                %239 = vst [vmem:[%s225 + $0x30] sm:$0xff] %v238
                %v240 = vld [vmem:[%s224 + $0x58] sm:$0xff]
                %241 = vst [vmem:[%s225 + $0x38] sm:$0xff] %v240
                %v242 = vld [vmem:[%s224 + $0x80] sm:$0xff]
                %243 = vst [vmem:[%s225 + $0x40] sm:$0xff] %v242
                %v244 = vld [vmem:[%s224 + $0x88] sm:$0xff]
                %245 = vst [vmem:[%s225 + $0x48] sm:$0xff] %v244
                %v246 = vld [vmem:[%s224 + $0x90] sm:$0xff]
                %247 = vst [vmem:[%s225 + $0x50] sm:$0xff] %v246
                %v248 = vld [vmem:[%s224 + $0x98] sm:$0xff]
                %249 = vst [vmem:[%s225 + $0x58] sm:$0xff] %v248
                %v250 = vld [vmem:[%s224 + $0xc0] sm:$0xff]
                %251 = vst [vmem:[%s225 + $0x60] sm:$0xff] %v250
                %v252 = vld [vmem:[%s224 + $0xc8] sm:$0xff]
                %253 = vst [vmem:[%s225 + $0x68] sm:$0xff] %v252
                %v254 = vld [vmem:[%s224 + $0xd0] sm:$0xff]
                %255 = vst [vmem:[%s225 + $0x70] sm:$0xff] %v254
                %v256 = vld [vmem:[%s224 + $0xd8] sm:$0xff]
                %257 = vst [vmem:[%s225 + $0x78] sm:$0xff] %v256
                %v258 = vld [vmem:[%s224 + $0x100] sm:$0xff]
                %259 = vst [vmem:[%s225 + $0x80] sm:$0xff] %v258
                %v260 = vld [vmem:[%s224 + $0x108] sm:$0xff]
                %261 = vst [vmem:[%s225 + $0x88] sm:$0xff] %v260
                %v262 = vld [vmem:[%s224 + $0x110] sm:$0xff]
                %263 = vst [vmem:[%s225 + $0x90] sm:$0xff] %v262
                %v264 = vld [vmem:[%s224 + $0x118] sm:$0xff]
                %265 = vst [vmem:[%s225 + $0x98] sm:$0xff] %v264
                %v266 = vld [vmem:[%s224 + $0x140] sm:$0xff]
                %267 = vst [vmem:[%s225 + $0xa0] sm:$0xff] %v266
                %v268 = vld [vmem:[%s224 + $0x148] sm:$0xff]
                %269 = vst [vmem:[%s225 + $0xa8] sm:$0xff] %v268
                %v270 = vld [vmem:[%s224 + $0x150] sm:$0xff]
                %271 = vst [vmem:[%s225 + $0xb0] sm:$0xff] %v270
                %v272 = vld [vmem:[%s224 + $0x158] sm:$0xff]
                %273 = vst [vmem:[%s225 + $0xb8] sm:$0xff] %v272
                %v274 = vld [vmem:[%s224 + $0x180] sm:$0xff]
                %275 = vst [vmem:[%s225 + $0xc0] sm:$0xff] %v274
                %v276 = vld [vmem:[%s224 + $0x188] sm:$0xff]
                %277 = vst [vmem:[%s225 + $0xc8] sm:$0xff] %v276
                %v278 = vld [vmem:[%s224 + $0x190] sm:$0xff]
                %279 = vst [vmem:[%s225 + $0xd0] sm:$0xff] %v278
                %v280 = vld [vmem:[%s224 + $0x198] sm:$0xff]
                %281 = vst [vmem:[%s225 + $0xd8] sm:$0xff] %v280
                %v282 = vld [vmem:[%s224 + $0x1c0] sm:$0xff]
                %283 = vst [vmem:[%s225 + $0xe0] sm:$0xff] %v282
                %v284 = vld [vmem:[%s224 + $0x1c8] sm:$0xff]
                %285 = vst [vmem:[%s225 + $0xe8] sm:$0xff] %v284
                %v286 = vld [vmem:[%s224 + $0x1d0] sm:$0xff]
                %287 = vst [vmem:[%s225 + $0xf0] sm:$0xff] %v286
                %v288 = vld [vmem:[%s224 + $0x1d8] sm:$0xff]
                %289 = vst [vmem:[%s225 + $0xf8] sm:$0xff] %v288
                %v290 = vld [vmem:[%s224 + $0x200] sm:$0xff]
                %291 = vst [vmem:[%s225 + $0x100] sm:$0xff] %v290
                %v292 = vld [vmem:[%s224 + $0x208] sm:$0xff]
                %293 = vst [vmem:[%s225 + $0x108] sm:$0xff] %v292
                %v294 = vld [vmem:[%s224 + $0x210] sm:$0xff]
                %295 = vst [vmem:[%s225 + $0x110] sm:$0xff] %v294
                %v296 = vld [vmem:[%s224 + $0x218] sm:$0xff]
                %297 = vst [vmem:[%s225 + $0x118] sm:$0xff] %v296
                %v298 = vld [vmem:[%s224 + $0x240] sm:$0xff]
                %299 = vst [vmem:[%s225 + $0x120] sm:$0xff] %v298
                %v300 = vld [vmem:[%s224 + $0x248] sm:$0xff]
                %301 = vst [vmem:[%s225 + $0x128] sm:$0xff] %v300
                %v302 = vld [vmem:[%s224 + $0x250] sm:$0xff]
                %303 = vst [vmem:[%s225 + $0x130] sm:$0xff] %v302
                %v304 = vld [vmem:[%s224 + $0x258] sm:$0xff]
                %305 = vst [vmem:[%s225 + $0x138] sm:$0xff] %v304
                %v306 = vld [vmem:[%s224 + $0x280] sm:$0xff]
                %307 = vst [vmem:[%s225 + $0x140] sm:$0xff] %v306
                %v308 = vld [vmem:[%s224 + $0x288] sm:$0xff]
                %309 = vst [vmem:[%s225 + $0x148] sm:$0xff] %v308
                %v310 = vld [vmem:[%s224 + $0x290] sm:$0xff]
                %311 = vst [vmem:[%s225 + $0x150] sm:$0xff] %v310
                %v312 = vld [vmem:[%s224 + $0x298] sm:$0xff]
                %313 = vst [vmem:[%s225 + $0x158] sm:$0xff] %v312
                %v314 = vld [vmem:[%s224 + $0x2c0] sm:$0xff]
                %315 = vst [vmem:[%s225 + $0x160] sm:$0xff] %v314
                %v316 = vld [vmem:[%s224 + $0x2c8] sm:$0xff]
                %317 = vst [vmem:[%s225 + $0x168] sm:$0xff] %v316
                %v318 = vld [vmem:[%s224 + $0x2d0] sm:$0xff]
                %319 = vst [vmem:[%s225 + $0x170] sm:$0xff] %v318
                %v320 = vld [vmem:[%s224 + $0x2d8] sm:$0xff]
                %321 = vst [vmem:[%s225 + $0x178] sm:$0xff] %v320
                %v322 = vld [vmem:[%s224 + $0x300] sm:$0xff]
                %323 = vst [vmem:[%s225 + $0x180] sm:$0xff] %v322
                %v324 = vld [vmem:[%s224 + $0x308] sm:$0xff]
                %325 = vst [vmem:[%s225 + $0x188] sm:$0xff] %v324
                %v326 = vld [vmem:[%s224 + $0x310] sm:$0xff]
                %327 = vst [vmem:[%s225 + $0x190] sm:$0xff] %v326
                %v328 = vld [vmem:[%s224 + $0x318] sm:$0xff]
                %329 = vst [vmem:[%s225 + $0x198] sm:$0xff] %v328
                %v330 = vld [vmem:[%s224 + $0x340] sm:$0xff]
                %331 = vst [vmem:[%s225 + $0x1a0] sm:$0xff] %v330
                %v332 = vld [vmem:[%s224 + $0x348] sm:$0xff]
                %333 = vst [vmem:[%s225 + $0x1a8] sm:$0xff] %v332
                %v334 = vld [vmem:[%s224 + $0x350] sm:$0xff]
                %335 = vst [vmem:[%s225 + $0x1b0] sm:$0xff] %v334
                %v336 = vld [vmem:[%s224 + $0x358] sm:$0xff]
                %337 = vst [vmem:[%s225 + $0x1b8] sm:$0xff] %v336
                %v338 = vld [vmem:[%s224 + $0x380] sm:$0xff]
                %339 = vst [vmem:[%s225 + $0x1c0] sm:$0xff] %v338
                %v340 = vld [vmem:[%s224 + $0x388] sm:$0xff]
                %341 = vst [vmem:[%s225 + $0x1c8] sm:$0xff] %v340
                %v342 = vld [vmem:[%s224 + $0x390] sm:$0xff]
                %343 = vst [vmem:[%s225 + $0x1d0] sm:$0xff] %v342
                %v344 = vld [vmem:[%s224 + $0x398] sm:$0xff]
                %345 = vst [vmem:[%s225 + $0x1d8] sm:$0xff] %v344
                %v346 = vld [vmem:[%s224 + $0x3c0] sm:$0xff]
                %347 = vst [vmem:[%s225 + $0x1e0] sm:$0xff] %v346
                %v348 = vld [vmem:[%s224 + $0x3c8] sm:$0xff]
                %349 = vst [vmem:[%s225 + $0x1e8] sm:$0xff] %v348
                %v350 = vld [vmem:[%s224 + $0x3d0] sm:$0xff]
                %351 = vst [vmem:[%s225 + $0x1f0] sm:$0xff] %v350
                %v352 = vld [vmem:[%s224 + $0x3d8] sm:$0xff]
                %353 = vst [vmem:[%s225 + $0x1f8] sm:$0xff] %v352
                %v354 = vld [vmem:[%s224 + $0x400] sm:$0xff]
                %355 = vst [vmem:[%s225 + $0x200] sm:$0xff] %v354
                %v356 = vld [vmem:[%s224 + $0x408] sm:$0xff]
                %357 = vst [vmem:[%s225 + $0x208] sm:$0xff] %v356
                %v358 = vld [vmem:[%s224 + $0x410] sm:$0xff]
                %359 = vst [vmem:[%s225 + $0x210] sm:$0xff] %v358
                %v360 = vld [vmem:[%s224 + $0x418] sm:$0xff]
                %361 = vst [vmem:[%s225 + $0x218] sm:$0xff] %v360
                %v362 = vld [vmem:[%s224 + $0x440] sm:$0xff]
                %363 = vst [vmem:[%s225 + $0x220] sm:$0xff] %v362
                %v364 = vld [vmem:[%s224 + $0x448] sm:$0xff]
                %365 = vst [vmem:[%s225 + $0x228] sm:$0xff] %v364
                %v366 = vld [vmem:[%s224 + $0x450] sm:$0xff]
                %367 = vst [vmem:[%s225 + $0x230] sm:$0xff] %v366
                %v368 = vld [vmem:[%s224 + $0x458] sm:$0xff]
                %369 = vst [vmem:[%s225 + $0x238] sm:$0xff] %v368
                %v370 = vld [vmem:[%s224 + $0x480] sm:$0xff]
                %371 = vst [vmem:[%s225 + $0x240] sm:$0xff] %v370
                %v372 = vld [vmem:[%s224 + $0x488] sm:$0xff]
                %373 = vst [vmem:[%s225 + $0x248] sm:$0xff] %v372
                %v374 = vld [vmem:[%s224 + $0x490] sm:$0xff]
                %375 = vst [vmem:[%s225 + $0x250] sm:$0xff] %v374
                %v376 = vld [vmem:[%s224 + $0x498] sm:$0xff]
                %377 = vst [vmem:[%s225 + $0x258] sm:$0xff] %v376
                %v378 = vld [vmem:[%s224 + $0x4c0] sm:$0xff]
                %379 = vst [vmem:[%s225 + $0x260] sm:$0xff] %v378
                %v380 = vld [vmem:[%s224 + $0x4c8] sm:$0xff]
                %381 = vst [vmem:[%s225 + $0x268] sm:$0xff] %v380
                %v382 = vld [vmem:[%s224 + $0x4d0] sm:$0xff]
                %383 = vst [vmem:[%s225 + $0x270] sm:$0xff] %v382
                %v384 = vld [vmem:[%s224 + $0x4d8] sm:$0xff]
                %385 = vst [vmem:[%s225 + $0x278] sm:$0xff] %v384
                %v386 = vld [vmem:[%s224 + $0x500] sm:$0xff]
                %387 = vst [vmem:[%s225 + $0x280] sm:$0xff] %v386
                %v388 = vld [vmem:[%s224 + $0x508] sm:$0xff]
                %389 = vst [vmem:[%s225 + $0x288] sm:$0xff] %v388
                %v390 = vld [vmem:[%s224 + $0x510] sm:$0xff]
                %391 = vst [vmem:[%s225 + $0x290] sm:$0xff] %v390
                %v392 = vld [vmem:[%s224 + $0x518] sm:$0xff]
                %393 = vst [vmem:[%s225 + $0x298] sm:$0xff] %v392
                %v394 = vld [vmem:[%s224 + $0x540] sm:$0xff]
                %395 = vst [vmem:[%s225 + $0x2a0] sm:$0xff] %v394
                %v396 = vld [vmem:[%s224 + $0x548] sm:$0xff]
                %397 = vst [vmem:[%s225 + $0x2a8] sm:$0xff] %v396
                %v398 = vld [vmem:[%s224 + $0x550] sm:$0xff]
                %399 = vst [vmem:[%s225 + $0x2b0] sm:$0xff] %v398
                %v400 = vld [vmem:[%s224 + $0x558] sm:$0xff]
                %401 = vst [vmem:[%s225 + $0x2b8] sm:$0xff] %v400
                %v402 = vld [vmem:[%s224 + $0x580] sm:$0xff]
                %403 = vst [vmem:[%s225 + $0x2c0] sm:$0xff] %v402
                %v404 = vld [vmem:[%s224 + $0x588] sm:$0xff]
                %405 = vst [vmem:[%s225 + $0x2c8] sm:$0xff] %v404
                %v406 = vld [vmem:[%s224 + $0x590] sm:$0xff]
                %407 = vst [vmem:[%s225 + $0x2d0] sm:$0xff] %v406
                %v408 = vld [vmem:[%s224 + $0x598] sm:$0xff]
                %409 = vst [vmem:[%s225 + $0x2d8] sm:$0xff] %v408
                %v410 = vld [vmem:[%s224 + $0x5c0] sm:$0xff]
                %411 = vst [vmem:[%s225 + $0x2e0] sm:$0xff] %v410
                %v412 = vld [vmem:[%s224 + $0x5c8] sm:$0xff]
                %413 = vst [vmem:[%s225 + $0x2e8] sm:$0xff] %v412
                %v414 = vld [vmem:[%s224 + $0x5d0] sm:$0xff]
                %415 = vst [vmem:[%s225 + $0x2f0] sm:$0xff] %v414
                %v416 = vld [vmem:[%s224 + $0x5d8] sm:$0xff]
                %417 = vst [vmem:[%s225 + $0x2f8] sm:$0xff] %v416
                %v418 = vld [vmem:[%s224 + $0x600] sm:$0xff]
                %419 = vst [vmem:[%s225 + $0x300] sm:$0xff] %v418
                %v420 = vld [vmem:[%s224 + $0x608] sm:$0xff]
                %421 = vst [vmem:[%s225 + $0x308] sm:$0xff] %v420
                %v422 = vld [vmem:[%s224 + $0x610] sm:$0xff]
                %423 = vst [vmem:[%s225 + $0x310] sm:$0xff] %v422
                %v424 = vld [vmem:[%s224 + $0x618] sm:$0xff]
                %425 = vst [vmem:[%s225 + $0x318] sm:$0xff] %v424
                %v426 = vld [vmem:[%s224 + $0x640] sm:$0xff]
                %427 = vst [vmem:[%s225 + $0x320] sm:$0xff] %v426
                %v428 = vld [vmem:[%s224 + $0x648] sm:$0xff]
                %429 = vst [vmem:[%s225 + $0x328] sm:$0xff] %v428
                %v430 = vld [vmem:[%s224 + $0x650] sm:$0xff]
                %431 = vst [vmem:[%s225 + $0x330] sm:$0xff] %v430
                %v432 = vld [vmem:[%s224 + $0x658] sm:$0xff]
                %433 = vst [vmem:[%s225 + $0x338] sm:$0xff] %v432
                %v434 = vld [vmem:[%s224 + $0x680] sm:$0xff]
                %435 = vst [vmem:[%s225 + $0x340] sm:$0xff] %v434
                %v436 = vld [vmem:[%s224 + $0x688] sm:$0xff]
                %437 = vst [vmem:[%s225 + $0x348] sm:$0xff] %v436
                %v438 = vld [vmem:[%s224 + $0x690] sm:$0xff]
                %439 = vst [vmem:[%s225 + $0x350] sm:$0xff] %v438
                %v440 = vld [vmem:[%s224 + $0x698] sm:$0xff]
                %441 = vst [vmem:[%s225 + $0x358] sm:$0xff] %v440
                %v442 = vld [vmem:[%s224 + $0x6c0] sm:$0xff]
                %443 = vst [vmem:[%s225 + $0x360] sm:$0xff] %v442
                %v444 = vld [vmem:[%s224 + $0x6c8] sm:$0xff]
                %445 = vst [vmem:[%s225 + $0x368] sm:$0xff] %v444
                %v446 = vld [vmem:[%s224 + $0x6d0] sm:$0xff]
                %447 = vst [vmem:[%s225 + $0x370] sm:$0xff] %v446
                %v448 = vld [vmem:[%s224 + $0x6d8] sm:$0xff]
                %449 = vst [vmem:[%s225 + $0x378] sm:$0xff] %v448
                %v450 = vld [vmem:[%s224 + $0x700] sm:$0xff]
                %451 = vst [vmem:[%s225 + $0x380] sm:$0xff] %v450
                %v452 = vld [vmem:[%s224 + $0x708] sm:$0xff]
                %453 = vst [vmem:[%s225 + $0x388] sm:$0xff] %v452
                %v454 = vld [vmem:[%s224 + $0x710] sm:$0xff]
                %455 = vst [vmem:[%s225 + $0x390] sm:$0xff] %v454
                %v456 = vld [vmem:[%s224 + $0x718] sm:$0xff]
                %457 = vst [vmem:[%s225 + $0x398] sm:$0xff] %v456
                %v458 = vld [vmem:[%s224 + $0x740] sm:$0xff]
                %459 = vst [vmem:[%s225 + $0x3a0] sm:$0xff] %v458
                %v460 = vld [vmem:[%s224 + $0x748] sm:$0xff]
                %461 = vst [vmem:[%s225 + $0x3a8] sm:$0xff] %v460
                %v462 = vld [vmem:[%s224 + $0x750] sm:$0xff]
                %463 = vst [vmem:[%s225 + $0x3b0] sm:$0xff] %v462
                %v464 = vld [vmem:[%s224 + $0x758] sm:$0xff]
                %465 = vst [vmem:[%s225 + $0x3b8] sm:$0xff] %v464
                %v466 = vld [vmem:[%s224 + $0x780] sm:$0xff]
                %467 = vst [vmem:[%s225 + $0x3c0] sm:$0xff] %v466
                %v468 = vld [vmem:[%s224 + $0x788] sm:$0xff]
                %469 = vst [vmem:[%s225 + $0x3c8] sm:$0xff] %v468
                %v470 = vld [vmem:[%s224 + $0x790] sm:$0xff]
                %471 = vst [vmem:[%s225 + $0x3d0] sm:$0xff] %v470
                %v472 = vld [vmem:[%s224 + $0x798] sm:$0xff]
                %473 = vst [vmem:[%s225 + $0x3d8] sm:$0xff] %v472
                %v474 = vld [vmem:[%s224 + $0x7c0] sm:$0xff]
                %475 = vst [vmem:[%s225 + $0x3e0] sm:$0xff] %v474
                %v476 = vld [vmem:[%s224 + $0x7c8] sm:$0xff]
                %477 = vst [vmem:[%s225 + $0x3e8] sm:$0xff] %v476
                %v478 = vld [vmem:[%s224 + $0x7d0] sm:$0xff]
                %479 = vst [vmem:[%s225 + $0x3f0] sm:$0xff] %v478
                %v480 = vld [vmem:[%s224 + $0x7d8] sm:$0xff]
                %481 = vst [vmem:[%s225 + $0x3f8] sm:$0xff] %v480
                %v482 = vld [vmem:[%s224 + $0x800] sm:$0xff]
                %483 = vst [vmem:[%s225 + $0x400] sm:$0xff] %v482
                %v484 = vld [vmem:[%s224 + $0x808] sm:$0xff]
                %485 = vst [vmem:[%s225 + $0x408] sm:$0xff] %v484
                %v486 = vld [vmem:[%s224 + $0x810] sm:$0xff]
                %487 = vst [vmem:[%s225 + $0x410] sm:$0xff] %v486
                %v488 = vld [vmem:[%s224 + $0x818] sm:$0xff]
                %489 = vst [vmem:[%s225 + $0x418] sm:$0xff] %v488
                %v490 = vld [vmem:[%s224 + $0x840] sm:$0xff]
                %491 = vst [vmem:[%s225 + $0x420] sm:$0xff] %v490
                %v492 = vld [vmem:[%s224 + $0x848] sm:$0xff]
                %493 = vst [vmem:[%s225 + $0x428] sm:$0xff] %v492
                %v494 = vld [vmem:[%s224 + $0x850] sm:$0xff]
                %495 = vst [vmem:[%s225 + $0x430] sm:$0xff] %v494
                %v496 = vld [vmem:[%s224 + $0x858] sm:$0xff]
                %497 = vst [vmem:[%s225 + $0x438] sm:$0xff] %v496
                %v498 = vld [vmem:[%s224 + $0x880] sm:$0xff]
                %499 = vst [vmem:[%s225 + $0x440] sm:$0xff] %v498
                %v500 = vld [vmem:[%s224 + $0x888] sm:$0xff]
                %501 = vst [vmem:[%s225 + $0x448] sm:$0xff] %v500
                %v502 = vld [vmem:[%s224 + $0x890] sm:$0xff]
                %503 = vst [vmem:[%s225 + $0x450] sm:$0xff] %v502
                %v504 = vld [vmem:[%s224 + $0x898] sm:$0xff]
                %505 = vst [vmem:[%s225 + $0x458] sm:$0xff] %v504
                %v506 = vld [vmem:[%s224 + $0x8c0] sm:$0xff]
                %507 = vst [vmem:[%s225 + $0x460] sm:$0xff] %v506
                %v508 = vld [vmem:[%s224 + $0x8c8] sm:$0xff]
                %509 = vst [vmem:[%s225 + $0x468] sm:$0xff] %v508
                %v510 = vld [vmem:[%s224 + $0x8d0] sm:$0xff]
                %511 = vst [vmem:[%s225 + $0x470] sm:$0xff] %v510
                %v512 = vld [vmem:[%s224 + $0x8d8] sm:$0xff]
                %513 = vst [vmem:[%s225 + $0x478] sm:$0xff] %v512
                %v514 = vld [vmem:[%s224 + $0x900] sm:$0xff]
                %515 = vst [vmem:[%s225 + $0x480] sm:$0xff] %v514
                %v516 = vld [vmem:[%s224 + $0x908] sm:$0xff]
                %517 = vst [vmem:[%s225 + $0x488] sm:$0xff] %v516
                %v518 = vld [vmem:[%s224 + $0x910] sm:$0xff]
                %519 = vst [vmem:[%s225 + $0x490] sm:$0xff] %v518
                %v520 = vld [vmem:[%s224 + $0x918] sm:$0xff]
                %521 = vst [vmem:[%s225 + $0x498] sm:$0xff] %v520
                %v522 = vld [vmem:[%s224 + $0x940] sm:$0xff]
                %523 = vst [vmem:[%s225 + $0x4a0] sm:$0xff] %v522
                %v524 = vld [vmem:[%s224 + $0x948] sm:$0xff]
                %525 = vst [vmem:[%s225 + $0x4a8] sm:$0xff] %v524
                %v526 = vld [vmem:[%s224 + $0x950] sm:$0xff]
                %527 = vst [vmem:[%s225 + $0x4b0] sm:$0xff] %v526
                %v528 = vld [vmem:[%s224 + $0x958] sm:$0xff]
                %529 = vst [vmem:[%s225 + $0x4b8] sm:$0xff] %v528
                %v530 = vld [vmem:[%s224 + $0x980] sm:$0xff]
                %531 = vst [vmem:[%s225 + $0x4c0] sm:$0xff] %v530
                %v532 = vld [vmem:[%s224 + $0x988] sm:$0xff]
                %533 = vst [vmem:[%s225 + $0x4c8] sm:$0xff] %v532
                %v534 = vld [vmem:[%s224 + $0x990] sm:$0xff]
                %535 = vst [vmem:[%s225 + $0x4d0] sm:$0xff] %v534
                %v536 = vld [vmem:[%s224 + $0x998] sm:$0xff]
                %537 = vst [vmem:[%s225 + $0x4d8] sm:$0xff] %v536
                %v538 = vld [vmem:[%s224 + $0x9c0] sm:$0xff]
                %539 = vst [vmem:[%s225 + $0x4e0] sm:$0xff] %v538
                %v540 = vld [vmem:[%s224 + $0x9c8] sm:$0xff]
                %541 = vst [vmem:[%s225 + $0x4e8] sm:$0xff] %v540
                %v542 = vld [vmem:[%s224 + $0x9d0] sm:$0xff]
                %543 = vst [vmem:[%s225 + $0x4f0] sm:$0xff] %v542
                %v544 = vld [vmem:[%s224 + $0x9d8] sm:$0xff]
                %545 = vst [vmem:[%s225 + $0x4f8] sm:$0xff] %v544
                %v546 = vld [vmem:[%s224 + $0xa00] sm:$0xff]
                %547 = vst [vmem:[%s225 + $0x500] sm:$0xff] %v546
                %v548 = vld [vmem:[%s224 + $0xa08] sm:$0xff]
                %549 = vst [vmem:[%s225 + $0x508] sm:$0xff] %v548
                %v550 = vld [vmem:[%s224 + $0xa10] sm:$0xff]
                %551 = vst [vmem:[%s225 + $0x510] sm:$0xff] %v550
                %v552 = vld [vmem:[%s224 + $0xa18] sm:$0xff]
                %553 = vst [vmem:[%s225 + $0x518] sm:$0xff] %v552
                %v554 = vld [vmem:[%s224 + $0xa40] sm:$0xff]
                %555 = vst [vmem:[%s225 + $0x520] sm:$0xff] %v554
                %v556 = vld [vmem:[%s224 + $0xa48] sm:$0xff]
                %557 = vst [vmem:[%s225 + $0x528] sm:$0xff] %v556
                %v558 = vld [vmem:[%s224 + $0xa50] sm:$0xff]
                %559 = vst [vmem:[%s225 + $0x530] sm:$0xff] %v558
                %v560 = vld [vmem:[%s224 + $0xa58] sm:$0xff]
                %561 = vst [vmem:[%s225 + $0x538] sm:$0xff] %v560
                %v562 = vld [vmem:[%s224 + $0xa80] sm:$0xff]
                %563 = vst [vmem:[%s225 + $0x540] sm:$0xff] %v562
                %v564 = vld [vmem:[%s224 + $0xa88] sm:$0xff]
                %565 = vst [vmem:[%s225 + $0x548] sm:$0xff] %v564
                %v566 = vld [vmem:[%s224 + $0xa90] sm:$0xff]
                %567 = vst [vmem:[%s225 + $0x550] sm:$0xff] %v566
                %v568 = vld [vmem:[%s224 + $0xa98] sm:$0xff]
                %569 = vst [vmem:[%s225 + $0x558] sm:$0xff] %v568
                %v570 = vld [vmem:[%s224 + $0xac0] sm:$0xff]
                %571 = vst [vmem:[%s225 + $0x560] sm:$0xff] %v570
                %v572 = vld [vmem:[%s224 + $0xac8] sm:$0xff]
                %573 = vst [vmem:[%s225 + $0x568] sm:$0xff] %v572
                %v574 = vld [vmem:[%s224 + $0xad0] sm:$0xff]
                %575 = vst [vmem:[%s225 + $0x570] sm:$0xff] %v574
                %v576 = vld [vmem:[%s224 + $0xad8] sm:$0xff]
                %577 = vst [vmem:[%s225 + $0x578] sm:$0xff] %v576
                %v578 = vld [vmem:[%s224 + $0xb00] sm:$0xff]
                %579 = vst [vmem:[%s225 + $0x580] sm:$0xff] %v578
                %v580 = vld [vmem:[%s224 + $0xb08] sm:$0xff]
                %581 = vst [vmem:[%s225 + $0x588] sm:$0xff] %v580
                %v582 = vld [vmem:[%s224 + $0xb10] sm:$0xff]
                %583 = vst [vmem:[%s225 + $0x590] sm:$0xff] %v582
                %v584 = vld [vmem:[%s224 + $0xb18] sm:$0xff]
                %585 = vst [vmem:[%s225 + $0x598] sm:$0xff] %v584
                %v586 = vld [vmem:[%s224 + $0xb40] sm:$0xff]
                %587 = vst [vmem:[%s225 + $0x5a0] sm:$0xff] %v586
                %v588 = vld [vmem:[%s224 + $0xb48] sm:$0xff]
                %589 = vst [vmem:[%s225 + $0x5a8] sm:$0xff] %v588
                %v590 = vld [vmem:[%s224 + $0xb50] sm:$0xff]
                %591 = vst [vmem:[%s225 + $0x5b0] sm:$0xff] %v590
                %v592 = vld [vmem:[%s224 + $0xb58] sm:$0xff]
                %593 = vst [vmem:[%s225 + $0x5b8] sm:$0xff] %v592
                %v594 = vld [vmem:[%s224 + $0xb80] sm:$0xff]
                %595 = vst [vmem:[%s225 + $0x5c0] sm:$0xff] %v594
                %v596 = vld [vmem:[%s224 + $0xb88] sm:$0xff]
                %597 = vst [vmem:[%s225 + $0x5c8] sm:$0xff] %v596
                %v598 = vld [vmem:[%s224 + $0xb90] sm:$0xff]
                %599 = vst [vmem:[%s225 + $0x5d0] sm:$0xff] %v598
                %v600 = vld [vmem:[%s224 + $0xb98] sm:$0xff]
                %601 = vst [vmem:[%s225 + $0x5d8] sm:$0xff] %v600
                %v602 = vld [vmem:[%s224 + $0xbc0] sm:$0xff]
                %603 = vst [vmem:[%s225 + $0x5e0] sm:$0xff] %v602
                %v604 = vld [vmem:[%s224 + $0xbc8] sm:$0xff]
                %605 = vst [vmem:[%s225 + $0x5e8] sm:$0xff] %v604
                %v606 = vld [vmem:[%s224 + $0xbd0] sm:$0xff]
                %607 = vst [vmem:[%s225 + $0x5f0] sm:$0xff] %v606
                %v608 = vld [vmem:[%s224 + $0xbd8] sm:$0xff]
                %609 = vst [vmem:[%s225 + $0x5f8] sm:$0xff] %v608
                %v610 = vld [vmem:[%s224 + $0xc00] sm:$0xff]
                %611 = vst [vmem:[%s225 + $0x600] sm:$0xff] %v610
                %v612 = vld [vmem:[%s224 + $0xc08] sm:$0xff]
                %613 = vst [vmem:[%s225 + $0x608] sm:$0xff] %v612
                %v614 = vld [vmem:[%s224 + $0xc10] sm:$0xff]
                %615 = vst [vmem:[%s225 + $0x610] sm:$0xff] %v614
                %v616 = vld [vmem:[%s224 + $0xc18] sm:$0xff]
                %617 = vst [vmem:[%s225 + $0x618] sm:$0xff] %v616
                %v618 = vld [vmem:[%s224 + $0xc40] sm:$0xff]
                %619 = vst [vmem:[%s225 + $0x620] sm:$0xff] %v618
                %v620 = vld [vmem:[%s224 + $0xc48] sm:$0xff]
                %621 = vst [vmem:[%s225 + $0x628] sm:$0xff] %v620
                %v622 = vld [vmem:[%s224 + $0xc50] sm:$0xff]
                %623 = vst [vmem:[%s225 + $0x630] sm:$0xff] %v622
                %v624 = vld [vmem:[%s224 + $0xc58] sm:$0xff]
                %625 = vst [vmem:[%s225 + $0x638] sm:$0xff] %v624
                %v626 = vld [vmem:[%s224 + $0xc80] sm:$0xff]
                %627 = vst [vmem:[%s225 + $0x640] sm:$0xff] %v626
                %v628 = vld [vmem:[%s224 + $0xc88] sm:$0xff]
                %629 = vst [vmem:[%s225 + $0x648] sm:$0xff] %v628
                %v630 = vld [vmem:[%s224 + $0xc90] sm:$0xff]
                %631 = vst [vmem:[%s225 + $0x650] sm:$0xff] %v630
                %v632 = vld [vmem:[%s224 + $0xc98] sm:$0xff]
                %633 = vst [vmem:[%s225 + $0x658] sm:$0xff] %v632
                %v634 = vld [vmem:[%s224 + $0xcc0] sm:$0xff]
                %635 = vst [vmem:[%s225 + $0x660] sm:$0xff] %v634
                %v636 = vld [vmem:[%s224 + $0xcc8] sm:$0xff]
                %637 = vst [vmem:[%s225 + $0x668] sm:$0xff] %v636
                %v638 = vld [vmem:[%s224 + $0xcd0] sm:$0xff]
                %639 = vst [vmem:[%s225 + $0x670] sm:$0xff] %v638
                %v640 = vld [vmem:[%s224 + $0xcd8] sm:$0xff]
                %641 = vst [vmem:[%s225 + $0x678] sm:$0xff] %v640
                %v642 = vld [vmem:[%s224 + $0xd00] sm:$0xff]
                %643 = vst [vmem:[%s225 + $0x680] sm:$0xff] %v642
                %v644 = vld [vmem:[%s224 + $0xd08] sm:$0xff]
                %645 = vst [vmem:[%s225 + $0x688] sm:$0xff] %v644
                %v646 = vld [vmem:[%s224 + $0xd10] sm:$0xff]
                %647 = vst [vmem:[%s225 + $0x690] sm:$0xff] %v646
                %v648 = vld [vmem:[%s224 + $0xd18] sm:$0xff]
                %649 = vst [vmem:[%s225 + $0x698] sm:$0xff] %v648
                %v650 = vld [vmem:[%s224 + $0xd40] sm:$0xff]
                %651 = vst [vmem:[%s225 + $0x6a0] sm:$0xff] %v650
                %v652 = vld [vmem:[%s224 + $0xd48] sm:$0xff]
                %653 = vst [vmem:[%s225 + $0x6a8] sm:$0xff] %v652
                %v654 = vld [vmem:[%s224 + $0xd50] sm:$0xff]
                %655 = vst [vmem:[%s225 + $0x6b0] sm:$0xff] %v654
                %v656 = vld [vmem:[%s224 + $0xd58] sm:$0xff]
                %657 = vst [vmem:[%s225 + $0x6b8] sm:$0xff] %v656
                %v658 = vld [vmem:[%s224 + $0xd80] sm:$0xff]
                %659 = vst [vmem:[%s225 + $0x6c0] sm:$0xff] %v658
                %v660 = vld [vmem:[%s224 + $0xd88] sm:$0xff]
                %661 = vst [vmem:[%s225 + $0x6c8] sm:$0xff] %v660
                %v662 = vld [vmem:[%s224 + $0xd90] sm:$0xff]
                %663 = vst [vmem:[%s225 + $0x6d0] sm:$0xff] %v662
                %v664 = vld [vmem:[%s224 + $0xd98] sm:$0xff]
                %665 = vst [vmem:[%s225 + $0x6d8] sm:$0xff] %v664
                %v666 = vld [vmem:[%s224 + $0xdc0] sm:$0xff]
                %667 = vst [vmem:[%s225 + $0x6e0] sm:$0xff] %v666
                %v668 = vld [vmem:[%s224 + $0xdc8] sm:$0xff]
                %669 = vst [vmem:[%s225 + $0x6e8] sm:$0xff] %v668
                %v670 = vld [vmem:[%s224 + $0xdd0] sm:$0xff]
                %671 = vst [vmem:[%s225 + $0x6f0] sm:$0xff] %v670
                %v672 = vld [vmem:[%s224 + $0xdd8] sm:$0xff]
                %673 = vst [vmem:[%s225 + $0x6f8] sm:$0xff] %v672
                %v674 = vld [vmem:[%s224 + $0xe00] sm:$0xff]
                %675 = vst [vmem:[%s225 + $0x700] sm:$0xff] %v674
                %v676 = vld [vmem:[%s224 + $0xe08] sm:$0xff]
                %677 = vst [vmem:[%s225 + $0x708] sm:$0xff] %v676
                %v678 = vld [vmem:[%s224 + $0xe10] sm:$0xff]
                %679 = vst [vmem:[%s225 + $0x710] sm:$0xff] %v678
                %v680 = vld [vmem:[%s224 + $0xe18] sm:$0xff]
                %681 = vst [vmem:[%s225 + $0x718] sm:$0xff] %v680
                %v682 = vld [vmem:[%s224 + $0xe40] sm:$0xff]
                %683 = vst [vmem:[%s225 + $0x720] sm:$0xff] %v682
                %v684 = vld [vmem:[%s224 + $0xe48] sm:$0xff]
                %685 = vst [vmem:[%s225 + $0x728] sm:$0xff] %v684
                %v686 = vld [vmem:[%s224 + $0xe50] sm:$0xff]
                %687 = vst [vmem:[%s225 + $0x730] sm:$0xff] %v686
                %v688 = vld [vmem:[%s224 + $0xe58] sm:$0xff]
                %689 = vst [vmem:[%s225 + $0x738] sm:$0xff] %v688
                %v690 = vld [vmem:[%s224 + $0xe80] sm:$0xff]
                %691 = vst [vmem:[%s225 + $0x740] sm:$0xff] %v690
                %v692 = vld [vmem:[%s224 + $0xe88] sm:$0xff]
                %693 = vst [vmem:[%s225 + $0x748] sm:$0xff] %v692
                %v694 = vld [vmem:[%s224 + $0xe90] sm:$0xff]
                %695 = vst [vmem:[%s225 + $0x750] sm:$0xff] %v694
                %v696 = vld [vmem:[%s224 + $0xe98] sm:$0xff]
                %697 = vst [vmem:[%s225 + $0x758] sm:$0xff] %v696
                %v698 = vld [vmem:[%s224 + $0xec0] sm:$0xff]
                %699 = vst [vmem:[%s225 + $0x760] sm:$0xff] %v698
                %v700 = vld [vmem:[%s224 + $0xec8] sm:$0xff]
                %701 = vst [vmem:[%s225 + $0x768] sm:$0xff] %v700
                %v702 = vld [vmem:[%s224 + $0xed0] sm:$0xff]
                %703 = vst [vmem:[%s225 + $0x770] sm:$0xff] %v702
                %v704 = vld [vmem:[%s224 + $0xed8] sm:$0xff]
                %705 = vst [vmem:[%s225 + $0x778] sm:$0xff] %v704
                %v706 = vld [vmem:[%s224 + $0xf00] sm:$0xff]
                %707 = vst [vmem:[%s225 + $0x780] sm:$0xff] %v706
                %v708 = vld [vmem:[%s224 + $0xf08] sm:$0xff]
                %709 = vst [vmem:[%s225 + $0x788] sm:$0xff] %v708
                %v710 = vld [vmem:[%s224 + $0xf10] sm:$0xff]
                %711 = vst [vmem:[%s225 + $0x790] sm:$0xff] %v710
                %v712 = vld [vmem:[%s224 + $0xf18] sm:$0xff]
                %713 = vst [vmem:[%s225 + $0x798] sm:$0xff] %v712
                %v714 = vld [vmem:[%s224 + $0xf40] sm:$0xff]
                %715 = vst [vmem:[%s225 + $0x7a0] sm:$0xff] %v714
                %v716 = vld [vmem:[%s224 + $0xf48] sm:$0xff]
                %717 = vst [vmem:[%s225 + $0x7a8] sm:$0xff] %v716
                %v718 = vld [vmem:[%s224 + $0xf50] sm:$0xff]
                %719 = vst [vmem:[%s225 + $0x7b0] sm:$0xff] %v718
                %v720 = vld [vmem:[%s224 + $0xf58] sm:$0xff]
                %721 = vst [vmem:[%s225 + $0x7b8] sm:$0xff] %v720
                %v722 = vld [vmem:[%s224 + $0xf80] sm:$0xff]
                %723 = vst [vmem:[%s225 + $0x7c0] sm:$0xff] %v722
                %v724 = vld [vmem:[%s224 + $0xf88] sm:$0xff]
                %725 = vst [vmem:[%s225 + $0x7c8] sm:$0xff] %v724
                %v726 = vld [vmem:[%s224 + $0xf90] sm:$0xff]
                %727 = vst [vmem:[%s225 + $0x7d0] sm:$0xff] %v726
                %v728 = vld [vmem:[%s224 + $0xf98] sm:$0xff]
                %729 = vst [vmem:[%s225 + $0x7d8] sm:$0xff] %v728
                %v730 = vld [vmem:[%s224 + $0xfc0] sm:$0xff]
                %731 = vst [vmem:[%s225 + $0x7e0] sm:$0xff] %v730
                %v732 = vld [vmem:[%s224 + $0xfc8] sm:$0xff]
                %733 = vst [vmem:[%s225 + $0x7e8] sm:$0xff] %v732
                %v734 = vld [vmem:[%s224 + $0xfd0] sm:$0xff]
                %735 = vst [vmem:[%s225 + $0x7f0] sm:$0xff] %v734
                %v736 = vld [vmem:[%s224 + $0xfd8] sm:$0xff]
                %737 = vst [vmem:[%s225 + $0x7f8] sm:$0xff] %v736
                %v738 = vld [vmem:[%s224 + $0x1000] sm:$0xff]
                %739 = vst [vmem:[%s225 + $0x800] sm:$0xff] %v738
                %v740 = vld [vmem:[%s224 + $0x1008] sm:$0xff]
                %741 = vst [vmem:[%s225 + $0x808] sm:$0xff] %v740
                %v742 = vld [vmem:[%s224 + $0x1010] sm:$0xff]
                %743 = vst [vmem:[%s225 + $0x810] sm:$0xff] %v742
                %v744 = vld [vmem:[%s224 + $0x1018] sm:$0xff]
                %745 = vst [vmem:[%s225 + $0x818] sm:$0xff] %v744
                %v746 = vld [vmem:[%s224 + $0x1040] sm:$0xff]
                %747 = vst [vmem:[%s225 + $0x820] sm:$0xff] %v746
                %v748 = vld [vmem:[%s224 + $0x1048] sm:$0xff]
                %749 = vst [vmem:[%s225 + $0x828] sm:$0xff] %v748
                %v750 = vld [vmem:[%s224 + $0x1050] sm:$0xff]
                %751 = vst [vmem:[%s225 + $0x830] sm:$0xff] %v750
                %v752 = vld [vmem:[%s224 + $0x1058] sm:$0xff]
                %753 = vst [vmem:[%s225 + $0x838] sm:$0xff] %v752
                %v754 = vld [vmem:[%s224 + $0x1080] sm:$0xff]
                %755 = vst [vmem:[%s225 + $0x840] sm:$0xff] %v754
                %v756 = vld [vmem:[%s224 + $0x1088] sm:$0xff]
                %757 = vst [vmem:[%s225 + $0x848] sm:$0xff] %v756
                %v758 = vld [vmem:[%s224 + $0x1090] sm:$0xff]
                %759 = vst [vmem:[%s225 + $0x850] sm:$0xff] %v758
                %v760 = vld [vmem:[%s224 + $0x1098] sm:$0xff]
                %761 = vst [vmem:[%s225 + $0x858] sm:$0xff] %v760
                %v762 = vld [vmem:[%s224 + $0x10c0] sm:$0xff]
                %763 = vst [vmem:[%s225 + $0x860] sm:$0xff] %v762
                %v764 = vld [vmem:[%s224 + $0x10c8] sm:$0xff]
                %765 = vst [vmem:[%s225 + $0x868] sm:$0xff] %v764
                %v766 = vld [vmem:[%s224 + $0x10d0] sm:$0xff]
                %767 = vst [vmem:[%s225 + $0x870] sm:$0xff] %v766
                %v768 = vld [vmem:[%s224 + $0x10d8] sm:$0xff]
                %769 = vst [vmem:[%s225 + $0x878] sm:$0xff] %v768
                %v770 = vld [vmem:[%s224 + $0x1100] sm:$0xff]
                %771 = vst [vmem:[%s225 + $0x880] sm:$0xff] %v770
                %v772 = vld [vmem:[%s224 + $0x1108] sm:$0xff]
                %773 = vst [vmem:[%s225 + $0x888] sm:$0xff] %v772
                %v774 = vld [vmem:[%s224 + $0x1110] sm:$0xff]
                %775 = vst [vmem:[%s225 + $0x890] sm:$0xff] %v774
                %v776 = vld [vmem:[%s224 + $0x1118] sm:$0xff]
                %777 = vst [vmem:[%s225 + $0x898] sm:$0xff] %v776
                %v778 = vld [vmem:[%s224 + $0x1140] sm:$0xff]
                %779 = vst [vmem:[%s225 + $0x8a0] sm:$0xff] %v778
                %v780 = vld [vmem:[%s224 + $0x1148] sm:$0xff]
                %781 = vst [vmem:[%s225 + $0x8a8] sm:$0xff] %v780
                %v782 = vld [vmem:[%s224 + $0x1150] sm:$0xff]
                %783 = vst [vmem:[%s225 + $0x8b0] sm:$0xff] %v782
                %v784 = vld [vmem:[%s224 + $0x1158] sm:$0xff]
                %785 = vst [vmem:[%s225 + $0x8b8] sm:$0xff] %v784
                %v786 = vld [vmem:[%s224 + $0x1180] sm:$0xff]
                %787 = vst [vmem:[%s225 + $0x8c0] sm:$0xff] %v786
                %v788 = vld [vmem:[%s224 + $0x1188] sm:$0xff]
                %789 = vst [vmem:[%s225 + $0x8c8] sm:$0xff] %v788
                %v790 = vld [vmem:[%s224 + $0x1190] sm:$0xff]
                %791 = vst [vmem:[%s225 + $0x8d0] sm:$0xff] %v790
                %v792 = vld [vmem:[%s224 + $0x1198] sm:$0xff]
                %793 = vst [vmem:[%s225 + $0x8d8] sm:$0xff] %v792
                %v794 = vld [vmem:[%s224 + $0x11c0] sm:$0xff]
                %795 = vst [vmem:[%s225 + $0x8e0] sm:$0xff] %v794
                %v796 = vld [vmem:[%s224 + $0x11c8] sm:$0xff]
                %797 = vst [vmem:[%s225 + $0x8e8] sm:$0xff] %v796
                %v798 = vld [vmem:[%s224 + $0x11d0] sm:$0xff]
                %799 = vst [vmem:[%s225 + $0x8f0] sm:$0xff] %v798
                %v800 = vld [vmem:[%s224 + $0x11d8] sm:$0xff]
                %801 = vst [vmem:[%s225 + $0x8f8] sm:$0xff] %v800
                %v802 = vld [vmem:[%s224 + $0x1200] sm:$0xff]
                %803 = vst [vmem:[%s225 + $0x900] sm:$0xff] %v802
                %v804 = vld [vmem:[%s224 + $0x1208] sm:$0xff]
                %805 = vst [vmem:[%s225 + $0x908] sm:$0xff] %v804
                %v806 = vld [vmem:[%s224 + $0x1210] sm:$0xff]
                %807 = vst [vmem:[%s225 + $0x910] sm:$0xff] %v806
                %v808 = vld [vmem:[%s224 + $0x1218] sm:$0xff]
                %809 = vst [vmem:[%s225 + $0x918] sm:$0xff] %v808
                %v810 = vld [vmem:[%s224 + $0x1240] sm:$0xff]
                %811 = vst [vmem:[%s225 + $0x920] sm:$0xff] %v810
                %v812 = vld [vmem:[%s224 + $0x1248] sm:$0xff]
                %813 = vst [vmem:[%s225 + $0x928] sm:$0xff] %v812
                %v814 = vld [vmem:[%s224 + $0x1250] sm:$0xff]
                %815 = vst [vmem:[%s225 + $0x930] sm:$0xff] %v814
                %v816 = vld [vmem:[%s224 + $0x1258] sm:$0xff]
                %817 = vst [vmem:[%s225 + $0x938] sm:$0xff] %v816
                %v818 = vld [vmem:[%s224 + $0x1280] sm:$0xff]
                %819 = vst [vmem:[%s225 + $0x940] sm:$0xff] %v818
                %v820 = vld [vmem:[%s224 + $0x1288] sm:$0xff]
                %821 = vst [vmem:[%s225 + $0x948] sm:$0xff] %v820
                %v822 = vld [vmem:[%s224 + $0x1290] sm:$0xff]
                %823 = vst [vmem:[%s225 + $0x950] sm:$0xff] %v822
                %v824 = vld [vmem:[%s224 + $0x1298] sm:$0xff]
                %825 = vst [vmem:[%s225 + $0x958] sm:$0xff] %v824
                %v826 = vld [vmem:[%s224 + $0x12c0] sm:$0xff]
                %827 = vst [vmem:[%s225 + $0x960] sm:$0xff] %v826
                %v828 = vld [vmem:[%s224 + $0x12c8] sm:$0xff]
                %829 = vst [vmem:[%s225 + $0x968] sm:$0xff] %v828
                %v830 = vld [vmem:[%s224 + $0x12d0] sm:$0xff]
                %831 = vst [vmem:[%s225 + $0x970] sm:$0xff] %v830
                %v832 = vld [vmem:[%s224 + $0x12d8] sm:$0xff]
                %833 = vst [vmem:[%s225 + $0x978] sm:$0xff] %v832
                %v834 = vld [vmem:[%s224 + $0x1300] sm:$0xff]
                %835 = vst [vmem:[%s225 + $0x980] sm:$0xff] %v834
                %v836 = vld [vmem:[%s224 + $0x1308] sm:$0xff]
                %837 = vst [vmem:[%s225 + $0x988] sm:$0xff] %v836
                %v838 = vld [vmem:[%s224 + $0x1310] sm:$0xff]
                %839 = vst [vmem:[%s225 + $0x990] sm:$0xff] %v838
                %v840 = vld [vmem:[%s224 + $0x1318] sm:$0xff]
                %841 = vst [vmem:[%s225 + $0x998] sm:$0xff] %v840
                %v842 = vld [vmem:[%s224 + $0x1340] sm:$0xff]
                %843 = vst [vmem:[%s225 + $0x9a0] sm:$0xff] %v842
                %v844 = vld [vmem:[%s224 + $0x1348] sm:$0xff]
                %845 = vst [vmem:[%s225 + $0x9a8] sm:$0xff] %v844
                %v846 = vld [vmem:[%s224 + $0x1350] sm:$0xff]
                %847 = vst [vmem:[%s225 + $0x9b0] sm:$0xff] %v846
                %v848 = vld [vmem:[%s224 + $0x1358] sm:$0xff]
                %849 = vst [vmem:[%s225 + $0x9b8] sm:$0xff] %v848
                %v850 = vld [vmem:[%s224 + $0x1380] sm:$0xff]
                %851 = vst [vmem:[%s225 + $0x9c0] sm:$0xff] %v850
                %v852 = vld [vmem:[%s224 + $0x1388] sm:$0xff]
                %853 = vst [vmem:[%s225 + $0x9c8] sm:$0xff] %v852
                %v854 = vld [vmem:[%s224 + $0x1390] sm:$0xff]
                %855 = vst [vmem:[%s225 + $0x9d0] sm:$0xff] %v854
                %v856 = vld [vmem:[%s224 + $0x1398] sm:$0xff]
                %857 = vst [vmem:[%s225 + $0x9d8] sm:$0xff] %v856
                %v858 = vld [vmem:[%s224 + $0x13c0] sm:$0xff]
                %859 = vst [vmem:[%s225 + $0x9e0] sm:$0xff] %v858
                %v860 = vld [vmem:[%s224 + $0x13c8] sm:$0xff]
                %861 = vst [vmem:[%s225 + $0x9e8] sm:$0xff] %v860
                %v862 = vld [vmem:[%s224 + $0x13d0] sm:$0xff]
                %863 = vst [vmem:[%s225 + $0x9f0] sm:$0xff] %v862
                %v864 = vld [vmem:[%s224 + $0x13d8] sm:$0xff]
                %865 = vst [vmem:[%s225 + $0x9f8] sm:$0xff] %v864
                %v866 = vld [vmem:[%s224 + $0x1400] sm:$0xff]
                %867 = vst [vmem:[%s225 + $0xa00] sm:$0xff] %v866
                %v868 = vld [vmem:[%s224 + $0x1408] sm:$0xff]
                %869 = vst [vmem:[%s225 + $0xa08] sm:$0xff] %v868
                %v870 = vld [vmem:[%s224 + $0x1410] sm:$0xff]
                %871 = vst [vmem:[%s225 + $0xa10] sm:$0xff] %v870
                %v872 = vld [vmem:[%s224 + $0x1418] sm:$0xff]
                %873 = vst [vmem:[%s225 + $0xa18] sm:$0xff] %v872
                %v874 = vld [vmem:[%s224 + $0x1440] sm:$0xff]
                %875 = vst [vmem:[%s225 + $0xa20] sm:$0xff] %v874
                %v876 = vld [vmem:[%s224 + $0x1448] sm:$0xff]
                %877 = vst [vmem:[%s225 + $0xa28] sm:$0xff] %v876
                %v878 = vld [vmem:[%s224 + $0x1450] sm:$0xff]
                %879 = vst [vmem:[%s225 + $0xa30] sm:$0xff] %v878
                %v880 = vld [vmem:[%s224 + $0x1458] sm:$0xff]
                %881 = vst [vmem:[%s225 + $0xa38] sm:$0xff] %v880
                %v882 = vld [vmem:[%s224 + $0x1480] sm:$0xff]
                %883 = vst [vmem:[%s225 + $0xa40] sm:$0xff] %v882
                %v884 = vld [vmem:[%s224 + $0x1488] sm:$0xff]
                %885 = vst [vmem:[%s225 + $0xa48] sm:$0xff] %v884
                %v886 = vld [vmem:[%s224 + $0x1490] sm:$0xff]
                %887 = vst [vmem:[%s225 + $0xa50] sm:$0xff] %v886
                %v888 = vld [vmem:[%s224 + $0x1498] sm:$0xff]
                %889 = vst [vmem:[%s225 + $0xa58] sm:$0xff] %v888
                %v890 = vld [vmem:[%s224 + $0x14c0] sm:$0xff]
                %891 = vst [vmem:[%s225 + $0xa60] sm:$0xff] %v890
                %v892 = vld [vmem:[%s224 + $0x14c8] sm:$0xff]
                %893 = vst [vmem:[%s225 + $0xa68] sm:$0xff] %v892
                %v894 = vld [vmem:[%s224 + $0x14d0] sm:$0xff]
                %895 = vst [vmem:[%s225 + $0xa70] sm:$0xff] %v894
                %v896 = vld [vmem:[%s224 + $0x14d8] sm:$0xff]
                %897 = vst [vmem:[%s225 + $0xa78] sm:$0xff] %v896
                %v898 = vld [vmem:[%s224 + $0x1500] sm:$0xff]
                %899 = vst [vmem:[%s225 + $0xa80] sm:$0xff] %v898
                %v900 = vld [vmem:[%s224 + $0x1508] sm:$0xff]
                %901 = vst [vmem:[%s225 + $0xa88] sm:$0xff] %v900
                %v902 = vld [vmem:[%s224 + $0x1510] sm:$0xff]
                %903 = vst [vmem:[%s225 + $0xa90] sm:$0xff] %v902
                %v904 = vld [vmem:[%s224 + $0x1518] sm:$0xff]
                %905 = vst [vmem:[%s225 + $0xa98] sm:$0xff] %v904
                %v906 = vld [vmem:[%s224 + $0x1540] sm:$0xff]
                %907 = vst [vmem:[%s225 + $0xaa0] sm:$0xff] %v906
                %v908 = vld [vmem:[%s224 + $0x1548] sm:$0xff]
                %909 = vst [vmem:[%s225 + $0xaa8] sm:$0xff] %v908
                %v910 = vld [vmem:[%s224 + $0x1550] sm:$0xff]
                %911 = vst [vmem:[%s225 + $0xab0] sm:$0xff] %v910
                %v912 = vld [vmem:[%s224 + $0x1558] sm:$0xff]
                %913 = vst [vmem:[%s225 + $0xab8] sm:$0xff] %v912
                %v914 = vld [vmem:[%s224 + $0x1580] sm:$0xff]
                %915 = vst [vmem:[%s225 + $0xac0] sm:$0xff] %v914
                %v916 = vld [vmem:[%s224 + $0x1588] sm:$0xff]
                %917 = vst [vmem:[%s225 + $0xac8] sm:$0xff] %v916
                %v918 = vld [vmem:[%s224 + $0x1590] sm:$0xff]
                %919 = vst [vmem:[%s225 + $0xad0] sm:$0xff] %v918
                %v920 = vld [vmem:[%s224 + $0x1598] sm:$0xff]
                %921 = vst [vmem:[%s225 + $0xad8] sm:$0xff] %v920
                %v922 = vld [vmem:[%s224 + $0x15c0] sm:$0xff]
                %923 = vst [vmem:[%s225 + $0xae0] sm:$0xff] %v922
                %v924 = vld [vmem:[%s224 + $0x15c8] sm:$0xff]
                %925 = vst [vmem:[%s225 + $0xae8] sm:$0xff] %v924
                %v926 = vld [vmem:[%s224 + $0x15d0] sm:$0xff]
                %927 = vst [vmem:[%s225 + $0xaf0] sm:$0xff] %v926
                %v928 = vld [vmem:[%s224 + $0x15d8] sm:$0xff]
                %929 = vst [vmem:[%s225 + $0xaf8] sm:$0xff] %v928
                %v930 = vld [vmem:[%s224 + $0x1600] sm:$0xff]
                %931 = vst [vmem:[%s225 + $0xb00] sm:$0xff] %v930
                %v932 = vld [vmem:[%s224 + $0x1608] sm:$0xff]
                %933 = vst [vmem:[%s225 + $0xb08] sm:$0xff] %v932
                %v934 = vld [vmem:[%s224 + $0x1610] sm:$0xff]
                %935 = vst [vmem:[%s225 + $0xb10] sm:$0xff] %v934
                %v936 = vld [vmem:[%s224 + $0x1618] sm:$0xff]
                %937 = vst [vmem:[%s225 + $0xb18] sm:$0xff] %v936
                %v938 = vld [vmem:[%s224 + $0x1640] sm:$0xff]
                %939 = vst [vmem:[%s225 + $0xb20] sm:$0xff] %v938
                %v940 = vld [vmem:[%s224 + $0x1648] sm:$0xff]
                %941 = vst [vmem:[%s225 + $0xb28] sm:$0xff] %v940
                %v942 = vld [vmem:[%s224 + $0x1650] sm:$0xff]
                %943 = vst [vmem:[%s225 + $0xb30] sm:$0xff] %v942
                %v944 = vld [vmem:[%s224 + $0x1658] sm:$0xff]
                %945 = vst [vmem:[%s225 + $0xb38] sm:$0xff] %v944
                %v946 = vld [vmem:[%s224 + $0x1680] sm:$0xff]
                %947 = vst [vmem:[%s225 + $0xb40] sm:$0xff] %v946
                %v948 = vld [vmem:[%s224 + $0x1688] sm:$0xff]
                %949 = vst [vmem:[%s225 + $0xb48] sm:$0xff] %v948
                %v950 = vld [vmem:[%s224 + $0x1690] sm:$0xff]
                %951 = vst [vmem:[%s225 + $0xb50] sm:$0xff] %v950
                %v952 = vld [vmem:[%s224 + $0x1698] sm:$0xff]
                %953 = vst [vmem:[%s225 + $0xb58] sm:$0xff] %v952
                %v954 = vld [vmem:[%s224 + $0x16c0] sm:$0xff]
                %955 = vst [vmem:[%s225 + $0xb60] sm:$0xff] %v954
                %v956 = vld [vmem:[%s224 + $0x16c8] sm:$0xff]
                %957 = vst [vmem:[%s225 + $0xb68] sm:$0xff] %v956
                %v958 = vld [vmem:[%s224 + $0x16d0] sm:$0xff]
                %959 = vst [vmem:[%s225 + $0xb70] sm:$0xff] %v958
                %v960 = vld [vmem:[%s224 + $0x16d8] sm:$0xff]
                %961 = vst [vmem:[%s225 + $0xb78] sm:$0xff] %v960
                %v962 = vld [vmem:[%s224 + $0x1700] sm:$0xff]
                %963 = vst [vmem:[%s225 + $0xb80] sm:$0xff] %v962
                %v964 = vld [vmem:[%s224 + $0x1708] sm:$0xff]
                %965 = vst [vmem:[%s225 + $0xb88] sm:$0xff] %v964
                %v966 = vld [vmem:[%s224 + $0x1710] sm:$0xff]
                %967 = vst [vmem:[%s225 + $0xb90] sm:$0xff] %v966
                %v968 = vld [vmem:[%s224 + $0x1718] sm:$0xff]
                %969 = vst [vmem:[%s225 + $0xb98] sm:$0xff] %v968
                %v970 = vld [vmem:[%s224 + $0x1740] sm:$0xff]
                %971 = vst [vmem:[%s225 + $0xba0] sm:$0xff] %v970
                %v972 = vld [vmem:[%s224 + $0x1748] sm:$0xff]
                %973 = vst [vmem:[%s225 + $0xba8] sm:$0xff] %v972
                %v974 = vld [vmem:[%s224 + $0x1750] sm:$0xff]
                %975 = vst [vmem:[%s225 + $0xbb0] sm:$0xff] %v974
                %v976 = vld [vmem:[%s224 + $0x1758] sm:$0xff]
                %977 = vst [vmem:[%s225 + $0xbb8] sm:$0xff] %v976
                %v978 = vld [vmem:[%s224 + $0x1780] sm:$0xff]
                %979 = vst [vmem:[%s225 + $0xbc0] sm:$0xff] %v978
                %v980 = vld [vmem:[%s224 + $0x1788] sm:$0xff]
                %981 = vst [vmem:[%s225 + $0xbc8] sm:$0xff] %v980
                %v982 = vld [vmem:[%s224 + $0x1790] sm:$0xff]
                %983 = vst [vmem:[%s225 + $0xbd0] sm:$0xff] %v982
                %v984 = vld [vmem:[%s224 + $0x1798] sm:$0xff]
                %985 = vst [vmem:[%s225 + $0xbd8] sm:$0xff] %v984
                %v986 = vld [vmem:[%s224 + $0x17c0] sm:$0xff]
                %987 = vst [vmem:[%s225 + $0xbe0] sm:$0xff] %v986
                %v988 = vld [vmem:[%s224 + $0x17c8] sm:$0xff]
                %989 = vst [vmem:[%s225 + $0xbe8] sm:$0xff] %v988
                %v990 = vld [vmem:[%s224 + $0x17d0] sm:$0xff]
                %991 = vst [vmem:[%s225 + $0xbf0] sm:$0xff] %v990
                %v992 = vld [vmem:[%s224 + $0x17d8] sm:$0xff]
                %993 = vst [vmem:[%s225 + $0xbf8] sm:$0xff] %v992
                %v994 = vld [vmem:[%s224 + $0x1800] sm:$0xff]
                %995 = vst [vmem:[%s225 + $0xc00] sm:$0xff] %v994
                %v996 = vld [vmem:[%s224 + $0x1808] sm:$0xff]
                %997 = vst [vmem:[%s225 + $0xc08] sm:$0xff] %v996
                %v998 = vld [vmem:[%s224 + $0x1810] sm:$0xff]
                %999 = vst [vmem:[%s225 + $0xc10] sm:$0xff] %v998
                %v1000 = vld [vmem:[%s224 + $0x1818] sm:$0xff]
                %1001 = vst [vmem:[%s225 + $0xc18] sm:$0xff] %v1000
                %v1002 = vld [vmem:[%s224 + $0x1840] sm:$0xff]
                %1003 = vst [vmem:[%s225 + $0xc20] sm:$0xff] %v1002
                %v1004 = vld [vmem:[%s224 + $0x1848] sm:$0xff]
                %1005 = vst [vmem:[%s225 + $0xc28] sm:$0xff] %v1004
                %v1006 = vld [vmem:[%s224 + $0x1850] sm:$0xff]
                %1007 = vst [vmem:[%s225 + $0xc30] sm:$0xff] %v1006
                %v1008 = vld [vmem:[%s224 + $0x1858] sm:$0xff]
                %1009 = vst [vmem:[%s225 + $0xc38] sm:$0xff] %v1008
                %v1010 = vld [vmem:[%s224 + $0x1880] sm:$0xff]
                %1011 = vst [vmem:[%s225 + $0xc40] sm:$0xff] %v1010
                %v1012 = vld [vmem:[%s224 + $0x1888] sm:$0xff]
                %1013 = vst [vmem:[%s225 + $0xc48] sm:$0xff] %v1012
                %v1014 = vld [vmem:[%s224 + $0x1890] sm:$0xff]
                %1015 = vst [vmem:[%s225 + $0xc50] sm:$0xff] %v1014
                %v1016 = vld [vmem:[%s224 + $0x1898] sm:$0xff]
                %1017 = vst [vmem:[%s225 + $0xc58] sm:$0xff] %v1016
                %v1018 = vld [vmem:[%s224 + $0x18c0] sm:$0xff]
                %1019 = vst [vmem:[%s225 + $0xc60] sm:$0xff] %v1018
                %v1020 = vld [vmem:[%s224 + $0x18c8] sm:$0xff]
                %1021 = vst [vmem:[%s225 + $0xc68] sm:$0xff] %v1020
                %v1022 = vld [vmem:[%s224 + $0x18d0] sm:$0xff]
                %1023 = vst [vmem:[%s225 + $0xc70] sm:$0xff] %v1022
                %v1024 = vld [vmem:[%s224 + $0x18d8] sm:$0xff]
                %1025 = vst [vmem:[%s225 + $0xc78] sm:$0xff] %v1024
                %v1026 = vld [vmem:[%s224 + $0x1900] sm:$0xff]
                %1027 = vst [vmem:[%s225 + $0xc80] sm:$0xff] %v1026
                %v1028 = vld [vmem:[%s224 + $0x1908] sm:$0xff]
                %1029 = vst [vmem:[%s225 + $0xc88] sm:$0xff] %v1028
                %v1030 = vld [vmem:[%s224 + $0x1910] sm:$0xff]
                %1031 = vst [vmem:[%s225 + $0xc90] sm:$0xff] %v1030
                %v1032 = vld [vmem:[%s224 + $0x1918] sm:$0xff]
                %1033 = vst [vmem:[%s225 + $0xc98] sm:$0xff] %v1032
                %v1034 = vld [vmem:[%s224 + $0x1940] sm:$0xff]
                %1035 = vst [vmem:[%s225 + $0xca0] sm:$0xff] %v1034
                %v1036 = vld [vmem:[%s224 + $0x1948] sm:$0xff]
                %1037 = vst [vmem:[%s225 + $0xca8] sm:$0xff] %v1036
                %v1038 = vld [vmem:[%s224 + $0x1950] sm:$0xff]
                %1039 = vst [vmem:[%s225 + $0xcb0] sm:$0xff] %v1038
                %v1040 = vld [vmem:[%s224 + $0x1958] sm:$0xff]
                %1041 = vst [vmem:[%s225 + $0xcb8] sm:$0xff] %v1040
                %v1042 = vld [vmem:[%s224 + $0x1980] sm:$0xff]
                %1043 = vst [vmem:[%s225 + $0xcc0] sm:$0xff] %v1042
                %v1044 = vld [vmem:[%s224 + $0x1988] sm:$0xff]
                %1045 = vst [vmem:[%s225 + $0xcc8] sm:$0xff] %v1044
                %v1046 = vld [vmem:[%s224 + $0x1990] sm:$0xff]
                %1047 = vst [vmem:[%s225 + $0xcd0] sm:$0xff] %v1046
                %v1048 = vld [vmem:[%s224 + $0x1998] sm:$0xff]
                %1049 = vst [vmem:[%s225 + $0xcd8] sm:$0xff] %v1048
                %v1050 = vld [vmem:[%s224 + $0x19c0] sm:$0xff]
                %1051 = vst [vmem:[%s225 + $0xce0] sm:$0xff] %v1050
                %v1052 = vld [vmem:[%s224 + $0x19c8] sm:$0xff]
                %1053 = vst [vmem:[%s225 + $0xce8] sm:$0xff] %v1052
                %v1054 = vld [vmem:[%s224 + $0x19d0] sm:$0xff]
                %1055 = vst [vmem:[%s225 + $0xcf0] sm:$0xff] %v1054
                %v1056 = vld [vmem:[%s224 + $0x19d8] sm:$0xff]
                %1057 = vst [vmem:[%s225 + $0xcf8] sm:$0xff] %v1056
                %v1058 = vld [vmem:[%s224 + $0x1a00] sm:$0xff]
                %1059 = vst [vmem:[%s225 + $0xd00] sm:$0xff] %v1058
                %v1060 = vld [vmem:[%s224 + $0x1a08] sm:$0xff]
                %1061 = vst [vmem:[%s225 + $0xd08] sm:$0xff] %v1060
                %v1062 = vld [vmem:[%s224 + $0x1a10] sm:$0xff]
                %1063 = vst [vmem:[%s225 + $0xd10] sm:$0xff] %v1062
                %v1064 = vld [vmem:[%s224 + $0x1a18] sm:$0xff]
                %1065 = vst [vmem:[%s225 + $0xd18] sm:$0xff] %v1064
                %v1066 = vld [vmem:[%s224 + $0x1a40] sm:$0xff]
                %1067 = vst [vmem:[%s225 + $0xd20] sm:$0xff] %v1066
                %v1068 = vld [vmem:[%s224 + $0x1a48] sm:$0xff]
                %1069 = vst [vmem:[%s225 + $0xd28] sm:$0xff] %v1068
                %v1070 = vld [vmem:[%s224 + $0x1a50] sm:$0xff]
                %1071 = vst [vmem:[%s225 + $0xd30] sm:$0xff] %v1070
                %v1072 = vld [vmem:[%s224 + $0x1a58] sm:$0xff]
                %1073 = vst [vmem:[%s225 + $0xd38] sm:$0xff] %v1072
                %v1074 = vld [vmem:[%s224 + $0x1a80] sm:$0xff]
                %1075 = vst [vmem:[%s225 + $0xd40] sm:$0xff] %v1074
                %v1076 = vld [vmem:[%s224 + $0x1a88] sm:$0xff]
                %1077 = vst [vmem:[%s225 + $0xd48] sm:$0xff] %v1076
                %v1078 = vld [vmem:[%s224 + $0x1a90] sm:$0xff]
                %1079 = vst [vmem:[%s225 + $0xd50] sm:$0xff] %v1078
                %v1080 = vld [vmem:[%s224 + $0x1a98] sm:$0xff]
                %1081 = vst [vmem:[%s225 + $0xd58] sm:$0xff] %v1080
                %v1082 = vld [vmem:[%s224 + $0x1ac0] sm:$0xff]
                %1083 = vst [vmem:[%s225 + $0xd60] sm:$0xff] %v1082
                %v1084 = vld [vmem:[%s224 + $0x1ac8] sm:$0xff]
                %1085 = vst [vmem:[%s225 + $0xd68] sm:$0xff] %v1084
                %v1086 = vld [vmem:[%s224 + $0x1ad0] sm:$0xff]
                %1087 = vst [vmem:[%s225 + $0xd70] sm:$0xff] %v1086
                %v1088 = vld [vmem:[%s224 + $0x1ad8] sm:$0xff]
                %1089 = vst [vmem:[%s225 + $0xd78] sm:$0xff] %v1088
                %v1090 = vld [vmem:[%s224 + $0x1b00] sm:$0xff]
                %1091 = vst [vmem:[%s225 + $0xd80] sm:$0xff] %v1090
                %v1092 = vld [vmem:[%s224 + $0x1b08] sm:$0xff]
                %1093 = vst [vmem:[%s225 + $0xd88] sm:$0xff] %v1092
                %v1094 = vld [vmem:[%s224 + $0x1b10] sm:$0xff]
                %1095 = vst [vmem:[%s225 + $0xd90] sm:$0xff] %v1094
                %v1096 = vld [vmem:[%s224 + $0x1b18] sm:$0xff]
                %1097 = vst [vmem:[%s225 + $0xd98] sm:$0xff] %v1096
                %v1098 = vld [vmem:[%s224 + $0x1b40] sm:$0xff]
                %1099 = vst [vmem:[%s225 + $0xda0] sm:$0xff] %v1098
                %v1100 = vld [vmem:[%s224 + $0x1b48] sm:$0xff]
                %1101 = vst [vmem:[%s225 + $0xda8] sm:$0xff] %v1100
                %v1102 = vld [vmem:[%s224 + $0x1b50] sm:$0xff]
                %1103 = vst [vmem:[%s225 + $0xdb0] sm:$0xff] %v1102
                %v1104 = vld [vmem:[%s224 + $0x1b58] sm:$0xff]
                %1105 = vst [vmem:[%s225 + $0xdb8] sm:$0xff] %v1104
                %v1106 = vld [vmem:[%s224 + $0x1b80] sm:$0xff]
                %1107 = vst [vmem:[%s225 + $0xdc0] sm:$0xff] %v1106
                %v1108 = vld [vmem:[%s224 + $0x1b88] sm:$0xff]
                %1109 = vst [vmem:[%s225 + $0xdc8] sm:$0xff] %v1108
                %v1110 = vld [vmem:[%s224 + $0x1b90] sm:$0xff]
                %1111 = vst [vmem:[%s225 + $0xdd0] sm:$0xff] %v1110
                %v1112 = vld [vmem:[%s224 + $0x1b98] sm:$0xff]
                %1113 = vst [vmem:[%s225 + $0xdd8] sm:$0xff] %v1112
                %v1114 = vld [vmem:[%s224 + $0x1bc0] sm:$0xff]
                %1115 = vst [vmem:[%s225 + $0xde0] sm:$0xff] %v1114
                %v1116 = vld [vmem:[%s224 + $0x1bc8] sm:$0xff]
                %1117 = vst [vmem:[%s225 + $0xde8] sm:$0xff] %v1116
                %v1118 = vld [vmem:[%s224 + $0x1bd0] sm:$0xff]
                %1119 = vst [vmem:[%s225 + $0xdf0] sm:$0xff] %v1118
                %v1120 = vld [vmem:[%s224 + $0x1bd8] sm:$0xff]
                %1121 = vst [vmem:[%s225 + $0xdf8] sm:$0xff] %v1120
                %v1122 = vld [vmem:[%s224 + $0x1c00] sm:$0xff]
                %1123 = vst [vmem:[%s225 + $0xe00] sm:$0xff] %v1122
                %v1124 = vld [vmem:[%s224 + $0x1c08] sm:$0xff]
                %1125 = vst [vmem:[%s225 + $0xe08] sm:$0xff] %v1124
                %v1126 = vld [vmem:[%s224 + $0x1c10] sm:$0xff]
                %1127 = vst [vmem:[%s225 + $0xe10] sm:$0xff] %v1126
                %v1128 = vld [vmem:[%s224 + $0x1c18] sm:$0xff]
                %1129 = vst [vmem:[%s225 + $0xe18] sm:$0xff] %v1128
                %v1130 = vld [vmem:[%s224 + $0x1c40] sm:$0xff]
                %1131 = vst [vmem:[%s225 + $0xe20] sm:$0xff] %v1130
                %v1132 = vld [vmem:[%s224 + $0x1c48] sm:$0xff]
                %1133 = vst [vmem:[%s225 + $0xe28] sm:$0xff] %v1132
                %v1134 = vld [vmem:[%s224 + $0x1c50] sm:$0xff]
                %1135 = vst [vmem:[%s225 + $0xe30] sm:$0xff] %v1134
                %v1136 = vld [vmem:[%s224 + $0x1c58] sm:$0xff]
                %1137 = vst [vmem:[%s225 + $0xe38] sm:$0xff] %v1136
                %v1138 = vld [vmem:[%s224 + $0x1c80] sm:$0xff]
                %1139 = vst [vmem:[%s225 + $0xe40] sm:$0xff] %v1138
                %v1140 = vld [vmem:[%s224 + $0x1c88] sm:$0xff]
                %1141 = vst [vmem:[%s225 + $0xe48] sm:$0xff] %v1140
                %v1142 = vld [vmem:[%s224 + $0x1c90] sm:$0xff]
                %1143 = vst [vmem:[%s225 + $0xe50] sm:$0xff] %v1142
                %v1144 = vld [vmem:[%s224 + $0x1c98] sm:$0xff]
                %1145 = vst [vmem:[%s225 + $0xe58] sm:$0xff] %v1144
                %v1146 = vld [vmem:[%s224 + $0x1cc0] sm:$0xff]
                %1147 = vst [vmem:[%s225 + $0xe60] sm:$0xff] %v1146
                %v1148 = vld [vmem:[%s224 + $0x1cc8] sm:$0xff]
                %1149 = vst [vmem:[%s225 + $0xe68] sm:$0xff] %v1148
                %v1150 = vld [vmem:[%s224 + $0x1cd0] sm:$0xff]
                %1151 = vst [vmem:[%s225 + $0xe70] sm:$0xff] %v1150
                %v1152 = vld [vmem:[%s224 + $0x1cd8] sm:$0xff]
                %1153 = vst [vmem:[%s225 + $0xe78] sm:$0xff] %v1152
                %v1154 = vld [vmem:[%s224 + $0x1d00] sm:$0xff]
                %1155 = vst [vmem:[%s225 + $0xe80] sm:$0xff] %v1154
                %v1156 = vld [vmem:[%s224 + $0x1d08] sm:$0xff]
                %1157 = vst [vmem:[%s225 + $0xe88] sm:$0xff] %v1156
                %v1158 = vld [vmem:[%s224 + $0x1d10] sm:$0xff]
                %1159 = vst [vmem:[%s225 + $0xe90] sm:$0xff] %v1158
                %v1160 = vld [vmem:[%s224 + $0x1d18] sm:$0xff]
                %1161 = vst [vmem:[%s225 + $0xe98] sm:$0xff] %v1160
                %v1162 = vld [vmem:[%s224 + $0x1d40] sm:$0xff]
                %1163 = vst [vmem:[%s225 + $0xea0] sm:$0xff] %v1162
                %v1164 = vld [vmem:[%s224 + $0x1d48] sm:$0xff]
                %1165 = vst [vmem:[%s225 + $0xea8] sm:$0xff] %v1164
                %v1166 = vld [vmem:[%s224 + $0x1d50] sm:$0xff]
                %1167 = vst [vmem:[%s225 + $0xeb0] sm:$0xff] %v1166
                %v1168 = vld [vmem:[%s224 + $0x1d58] sm:$0xff]
                %1169 = vst [vmem:[%s225 + $0xeb8] sm:$0xff] %v1168
                %v1170 = vld [vmem:[%s224 + $0x1d80] sm:$0xff]
                %1171 = vst [vmem:[%s225 + $0xec0] sm:$0xff] %v1170
                %v1172 = vld [vmem:[%s224 + $0x1d88] sm:$0xff]
                %1173 = vst [vmem:[%s225 + $0xec8] sm:$0xff] %v1172
                %v1174 = vld [vmem:[%s224 + $0x1d90] sm:$0xff]
                %1175 = vst [vmem:[%s225 + $0xed0] sm:$0xff] %v1174
                %v1176 = vld [vmem:[%s224 + $0x1d98] sm:$0xff]
                %1177 = vst [vmem:[%s225 + $0xed8] sm:$0xff] %v1176
                %v1178 = vld [vmem:[%s224 + $0x1dc0] sm:$0xff]
                %1179 = vst [vmem:[%s225 + $0xee0] sm:$0xff] %v1178
                %v1180 = vld [vmem:[%s224 + $0x1dc8] sm:$0xff]
                %1181 = vst [vmem:[%s225 + $0xee8] sm:$0xff] %v1180
                %v1182 = vld [vmem:[%s224 + $0x1dd0] sm:$0xff]
                %1183 = vst [vmem:[%s225 + $0xef0] sm:$0xff] %v1182
                %v1184 = vld [vmem:[%s224 + $0x1dd8] sm:$0xff]
                %1185 = vst [vmem:[%s225 + $0xef8] sm:$0xff] %v1184
                %v1186 = vld [vmem:[%s224 + $0x1e00] sm:$0xff]
                %1187 = vst [vmem:[%s225 + $0xf00] sm:$0xff] %v1186
                %v1188 = vld [vmem:[%s224 + $0x1e08] sm:$0xff]
                %1189 = vst [vmem:[%s225 + $0xf08] sm:$0xff] %v1188
                %v1190 = vld [vmem:[%s224 + $0x1e10] sm:$0xff]
                %1191 = vst [vmem:[%s225 + $0xf10] sm:$0xff] %v1190
                %v1192 = vld [vmem:[%s224 + $0x1e18] sm:$0xff]
                %1193 = vst [vmem:[%s225 + $0xf18] sm:$0xff] %v1192
                %v1194 = vld [vmem:[%s224 + $0x1e40] sm:$0xff]
                %1195 = vst [vmem:[%s225 + $0xf20] sm:$0xff] %v1194
                %v1196 = vld [vmem:[%s224 + $0x1e48] sm:$0xff]
                %1197 = vst [vmem:[%s225 + $0xf28] sm:$0xff] %v1196
                %v1198 = vld [vmem:[%s224 + $0x1e50] sm:$0xff]
                %1199 = vst [vmem:[%s225 + $0xf30] sm:$0xff] %v1198
                %v1200 = vld [vmem:[%s224 + $0x1e58] sm:$0xff]
                %1201 = vst [vmem:[%s225 + $0xf38] sm:$0xff] %v1200
                %v1202 = vld [vmem:[%s224 + $0x1e80] sm:$0xff]
                %1203 = vst [vmem:[%s225 + $0xf40] sm:$0xff] %v1202
                %v1204 = vld [vmem:[%s224 + $0x1e88] sm:$0xff]
                %1205 = vst [vmem:[%s225 + $0xf48] sm:$0xff] %v1204
                %v1206 = vld [vmem:[%s224 + $0x1e90] sm:$0xff]
                %1207 = vst [vmem:[%s225 + $0xf50] sm:$0xff] %v1206
                %v1208 = vld [vmem:[%s224 + $0x1e98] sm:$0xff]
                %1209 = vst [vmem:[%s225 + $0xf58] sm:$0xff] %v1208
                %v1210 = vld [vmem:[%s224 + $0x1ec0] sm:$0xff]
                %1211 = vst [vmem:[%s225 + $0xf60] sm:$0xff] %v1210
                %v1212 = vld [vmem:[%s224 + $0x1ec8] sm:$0xff]
                %1213 = vst [vmem:[%s225 + $0xf68] sm:$0xff] %v1212
                %v1214 = vld [vmem:[%s224 + $0x1ed0] sm:$0xff]
                %1215 = vst [vmem:[%s225 + $0xf70] sm:$0xff] %v1214
                %v1216 = vld [vmem:[%s224 + $0x1ed8] sm:$0xff]
                %1217 = vst [vmem:[%s225 + $0xf78] sm:$0xff] %v1216
                %v1218 = vld [vmem:[%s224 + $0x1f00] sm:$0xff]
                %1219 = vst [vmem:[%s225 + $0xf80] sm:$0xff] %v1218
                %v1220 = vld [vmem:[%s224 + $0x1f08] sm:$0xff]
                %1221 = vst [vmem:[%s225 + $0xf88] sm:$0xff] %v1220
                %v1222 = vld [vmem:[%s224 + $0x1f10] sm:$0xff]
                %1223 = vst [vmem:[%s225 + $0xf90] sm:$0xff] %v1222
                %v1224 = vld [vmem:[%s224 + $0x1f18] sm:$0xff]
                %1225 = vst [vmem:[%s225 + $0xf98] sm:$0xff] %v1224
                %v1226 = vld [vmem:[%s224 + $0x1f40] sm:$0xff]
                %1227 = vst [vmem:[%s225 + $0xfa0] sm:$0xff] %v1226
                %v1228 = vld [vmem:[%s224 + $0x1f48] sm:$0xff]
                %1229 = vst [vmem:[%s225 + $0xfa8] sm:$0xff] %v1228
                %v1230 = vld [vmem:[%s224 + $0x1f50] sm:$0xff]
                %1231 = vst [vmem:[%s225 + $0xfb0] sm:$0xff] %v1230
                %v1232 = vld [vmem:[%s224 + $0x1f58] sm:$0xff]
                %1233 = vst [vmem:[%s225 + $0xfb8] sm:$0xff] %v1232
                %v1234 = vld [vmem:[%s224 + $0x1f80] sm:$0xff]
                %1235 = vst [vmem:[%s225 + $0xfc0] sm:$0xff] %v1234
                %v1236 = vld [vmem:[%s224 + $0x1f88] sm:$0xff]
                %1237 = vst [vmem:[%s225 + $0xfc8] sm:$0xff] %v1236
                %v1238 = vld [vmem:[%s224 + $0x1f90] sm:$0xff]
                %1239 = vst [vmem:[%s225 + $0xfd0] sm:$0xff] %v1238
                %v1240 = vld [vmem:[%s224 + $0x1f98] sm:$0xff]
                %1241 = vst [vmem:[%s225 + $0xfd8] sm:$0xff] %v1240
                %v1242 = vld [vmem:[%s224 + $0x1fc0] sm:$0xff]
                %1243 = vst [vmem:[%s225 + $0xfe0] sm:$0xff] %v1242
                %v1244 = vld [vmem:[%s224 + $0x1fc8] sm:$0xff]
                %1245 = vst [vmem:[%s225 + $0xfe8] sm:$0xff] %v1244
                %v1246 = vld [vmem:[%s224 + $0x1fd0] sm:$0xff]
                %1247 = vst [vmem:[%s225 + $0xff0] sm:$0xff] %v1246
                %v1248 = vld [vmem:[%s224 + $0x1fd8] sm:$0xff]
                %1249 = vst [vmem:[%s225 + $0xff8] sm:$0xff] %v1248
              $region41: #{cnn_femnist_server_forward.1} parent=35 // loop_footer
                %s223 = sadd.s32 1, %s219
              $region42: #{cnn_femnist_server_forward.1} parent=35 // loop_footer_branch
                %218 = sbr.rel target = $region38
              $region43: #{cnn_femnist_server_forward.1} parent=35 // loop_exit
                _
            $region36: #{cnn_femnist_server_forward.1} parent=31 // pred_fallthru
              _
            // Predicated region
            $region44: #{cnn_femnist_server_forward.1} parent=31 // pred_check
              _
            $region45: #{cnn_femnist_server_forward.1} parent=31 // pred_check_branch
              %1251 = sbr.rel target = $region47
            $region46: #{cnn_femnist_server_forward.1} parent=31 // pred_region
              _
            $region47: #{cnn_femnist_server_forward.1} parent=31 // pred_fallthru
              _
          $region32: #{cnn_femnist_server_forward.1} parent=27 // pred_fallthru
            _
          %1252 = vnop
        $region28: #{cnn_femnist_server_forward.1} parent=23 // pred_fallthru
          _
        // Predicated region
        $region48: #{cnn_femnist_server_forward.1} parent=23 // pred_check
          %p1253 = pneg %p95
        $region49: #{cnn_femnist_server_forward.1} parent=23 // pred_check_branch
          %1255 = sbr.rel (%p1253) target = $region51
        $region50: #{cnn_femnist_server_forward.1} parent=23 // pred_region
          %s1256 = smul.u32 8, %s19
          %p1257 = scmp.lt.s32.totalorder %s1256, 15
          %s1258 = scalar_select %p1257, %s1256, 15
          %s1259 = scalar_lea.vmem %s2, %s1258
          %s1260 = smul.u32 8, %s19
        $region51: #{cnn_femnist_server_forward.1} parent=23 // pred_fallthru
          _
        // Predicated region
        $region52: #{cnn_femnist_server_forward.1} parent=23 // pred_check
          %p1261 = pneg %p121
        $region53: #{cnn_femnist_server_forward.1} parent=23 // pred_check_branch
          %1263 = sbr.rel (%p1261) target = $region55
        $region54: #{cnn_femnist_server_forward.1} parent=23 // pred_region
          %s1264 = smul.u32 128, %s19
          %p1265 = scmp.lt.s32.totalorder %s1264, 255
          %s1266 = scalar_select %p1265, %s1264, 255
          %s1267 = smul.addr %s1266, 4
          %s1268 = scalar_lea.vmem %s3, %s1267
          %s1269 = smul.u32 128, %s19
        $region55: #{cnn_femnist_server_forward.1} parent=23 // pred_fallthru
          _
      $region24: #{cnn_femnist_server_forward.1} parent=5 // pred_fallthru
        _
      %p1270 = scmp.le.s32.totalorder 1, %s11
      %p1271 = scmp.lt.s32.totalorder %s11, 3
      %p1272 = pnand %p1270, %p1271
      %p1273 = pneg %p1272
      // Predicated region
      $region56: #{cnn_femnist_server_forward.1} parent=5 // pred_check
        _
      $region57: #{cnn_femnist_server_forward.1} parent=5 // pred_check_branch
        %1275 = sbr.rel (%p1272) target = $region59
      $region58: #{cnn_femnist_server_forward.1} parent=5 // pred_region
        %s1276 = ssub.s32 %s11, 1
        %s1277 = sand.u32 %s62, 1
        %s1278 = sand.u32 %s62, 1
        %s1279 = smul.addr %s1278, 4096
        %s1280 = scalar_lea.vmem [#allocation2], %s1279
        // Predicated region
        $region60: #{cnn_femnist_server_forward.1} parent=58 // pred_check
          %p1281 = pneg %p75
        $region61: #{cnn_femnist_server_forward.1} parent=58 // pred_check_branch
          %1283 = sbr.rel (%p1281) target = $region63
        $region62: #{cnn_femnist_server_forward.1} parent=58 // pred_region
          _
        $region63: #{cnn_femnist_server_forward.1} parent=58 // pred_fallthru
          _
        %p1284 = scmp.lt.s32.totalorder %s20, 0
        %s1285 = scalar_select %p1284, %s20, 0
        %s1286 = smul.addr %s1285, 8
        %s1287 = smul.addr %s1286, 4
        %s1288 = scalar_lea.vmem %s0, %s1287
        %p1289 = pneg %p49
        %p1290 = pneg %p46
        %s1291 = sand.u32 %s62, 1
        %s1292 = sand.u32 %s62, 1
        %s1293 = smul.addr %s1292, 4096
        %s1294 = scalar_lea.vmem [#allocation2], %s1293
        %p1295 = pneg %p75
        %p1296 = pneg %p72
        %s1297 = smul.u32 8, %s21
        %p1298 = scmp.lt.s32.totalorder %s1297, 15
        %s1299 = scalar_select %p1298, %s1297, 15
        %s1300 = scalar_lea.vmem %s2, %s1299
        %p1301 = pneg %p101
        %p1302 = pneg %p98
        %s1303 = smul.u32 128, %s21
        %p1304 = scmp.lt.s32.totalorder %s1303, 255
        %s1305 = scalar_select %p1304, %s1303, 255
        %s1306 = smul.addr %s1305, 4
        %s1307 = scalar_lea.vmem %s3, %s1306
        %p1308 = pneg %p127
        %p1309 = pneg %p124
        %p1310 = pneg %p148
        %p1311 = pneg %p145
        %p1312 = pneg %p174
        %p1313 = pneg %p171
        %p1314 = scmp.lt.s32.totalorder %s20, 0
        %s1315 = scalar_select %p1314, %s20, 0
        %s1316 = smul.addr %s1315, 8
        %s1317 = scalar_lea.vmem %s5, %s1316
        %p1318 = scmp.lt.s32.totalorder %s20, 0
        %s1319 = scalar_select %p1318, %s20, 0
        %s1320 = smul.addr %s1319, 8
        %s1321 = smul.addr %s1320, 4
        %s1322 = scalar_lea.vmem %s0, %s1321
        %s1323 = smul.u32 8, %s21
        %s1324 = smul.u32 8, %s21
        %p1325 = scmp.lt.s32.totalorder %s1324, 15
        %s1326 = scalar_select %p1325, %s1324, 15
        %s1327 = scalar_lea.vmem %s2, %s1326
        %s1328 = smul.u32 8, %s21
        %s1329 = smul.u32 128, %s21
        %p1330 = scmp.lt.s32.totalorder %s1329, 255
        %s1331 = scalar_select %p1330, %s1329, 255
        %s1332 = smul.addr %s1331, 4
        %s1333 = scalar_lea.vmem %s3, %s1332
        %s1334 = smul.u32 128, %s21
        %p1335 = scmp.lt.s32.totalorder %s20, 0
        %s1336 = scalar_select %p1335, %s20, 0
        %s1337 = smul.addr %s1336, 8
        %s1338 = scalar_lea.vmem %s5, %s1337
        %p1340 = scmp.eq.s32.totalorder %s21, 0
        // Predicated region
        $region64: #{cnn_femnist_server_forward.1} parent=58 // pred_check
          %p1341 = pneg %p1340
        $region65: #{cnn_femnist_server_forward.1} parent=58 // pred_check_branch
          %1343 = sbr.rel (%p1341) target = $region67
        $region66: #{cnn_femnist_server_forward.1} parent=58 // pred_region
          %1344 = vst [vmem:[%s1338] sm:$0xff] 0.0
        $region67: #{cnn_femnist_server_forward.1} parent=58 // pred_fallthru
          _
        %v1345 = vld [vmem:[%s1322] sm:$0xff]
        %v1346 = vld [vmem:[%s1322 + $0x8] sm:$0xff]
        %v1347 = vld [vmem:[%s1322 + $0x10] sm:$0xff]
        %v1348 = vld [vmem:[%s1322 + $0x18] sm:$0xff]
        %v1349 = vld [vmem:[%s1280] sm:$0xff]
        %v1350 = vld [vmem:[%s1280 + $0x8] sm:$0xff]
        %v1351 = vld [vmem:[%s1280 + $0x10] sm:$0xff]
        %v1352 = vld [vmem:[%s1280 + $0x18] sm:$0xff]
        %v1353 = vld [vmem:[%s1280 + $0x20] sm:$0xff]
        %v1354 = vld [vmem:[%s1280 + $0x28] sm:$0xff]
        %v1355 = vld [vmem:[%s1280 + $0x30] sm:$0xff]
        %v1356 = vld [vmem:[%s1280 + $0x38] sm:$0xff]
        %v1357 = vld [vmem:[%s1280 + $0x40] sm:$0xff]
        %v1358 = vld [vmem:[%s1280 + $0x48] sm:$0xff]
        %v1359 = vld [vmem:[%s1280 + $0x50] sm:$0xff]
        %v1360 = vld [vmem:[%s1280 + $0x58] sm:$0xff]
        %v1361 = vld [vmem:[%s1280 + $0x60] sm:$0xff]
        %v1362 = vld [vmem:[%s1280 + $0x68] sm:$0xff]
        %v1363 = vld [vmem:[%s1280 + $0x70] sm:$0xff]
        %v1364 = vld [vmem:[%s1280 + $0x78] sm:$0xff]
        %v1365 = vld [vmem:[%s1280 + $0x80] sm:$0xff]
        %v1366 = vld [vmem:[%s1280 + $0x88] sm:$0xff]
        %v1367 = vld [vmem:[%s1280 + $0x90] sm:$0xff]
        %v1368 = vld [vmem:[%s1280 + $0x98] sm:$0xff]
        %v1369 = vld [vmem:[%s1280 + $0xa0] sm:$0xff]
        %v1370 = vld [vmem:[%s1280 + $0xa8] sm:$0xff]
        %v1371 = vld [vmem:[%s1280 + $0xb0] sm:$0xff]
        %v1372 = vld [vmem:[%s1280 + $0xb8] sm:$0xff]
        %v1373 = vld [vmem:[%s1280 + $0xc0] sm:$0xff]
        %v1374 = vld [vmem:[%s1280 + $0xc8] sm:$0xff]
        %v1375 = vld [vmem:[%s1280 + $0xd0] sm:$0xff]
        %v1376 = vld [vmem:[%s1280 + $0xd8] sm:$0xff]
        %v1377 = vld [vmem:[%s1280 + $0xe0] sm:$0xff]
        %v1378 = vld [vmem:[%s1280 + $0xe8] sm:$0xff]
        %v1379 = vld [vmem:[%s1280 + $0xf0] sm:$0xff]
        %v1380 = vld [vmem:[%s1280 + $0xf8] sm:$0xff]
        %v1381 = vld [vmem:[%s1280 + $0x100] sm:$0xff]
        %v1382 = vld [vmem:[%s1280 + $0x108] sm:$0xff]
        %v1383 = vld [vmem:[%s1280 + $0x110] sm:$0xff]
        %v1384 = vld [vmem:[%s1280 + $0x118] sm:$0xff]
        %v1385 = vld [vmem:[%s1280 + $0x120] sm:$0xff]
        %v1386 = vld [vmem:[%s1280 + $0x128] sm:$0xff]
        %v1387 = vld [vmem:[%s1280 + $0x130] sm:$0xff]
        %v1388 = vld [vmem:[%s1280 + $0x138] sm:$0xff]
        %v1389 = vld [vmem:[%s1280 + $0x140] sm:$0xff]
        %v1390 = vld [vmem:[%s1280 + $0x148] sm:$0xff]
        %v1391 = vld [vmem:[%s1280 + $0x150] sm:$0xff]
        %v1392 = vld [vmem:[%s1280 + $0x158] sm:$0xff]
        %v1393 = vld [vmem:[%s1280 + $0x160] sm:$0xff]
        %v1394 = vld [vmem:[%s1280 + $0x168] sm:$0xff]
        %v1395 = vld [vmem:[%s1280 + $0x170] sm:$0xff]
        %v1396 = vld [vmem:[%s1280 + $0x178] sm:$0xff]
        %v1397 = vld [vmem:[%s1280 + $0x180] sm:$0xff]
        %v1398 = vld [vmem:[%s1280 + $0x188] sm:$0xff]
        %v1399 = vld [vmem:[%s1280 + $0x190] sm:$0xff]
        %v1400 = vld [vmem:[%s1280 + $0x198] sm:$0xff]
        %v1401 = vld [vmem:[%s1280 + $0x1a0] sm:$0xff]
        %v1402 = vld [vmem:[%s1280 + $0x1a8] sm:$0xff]
        %v1403 = vld [vmem:[%s1280 + $0x1b0] sm:$0xff]
        %v1404 = vld [vmem:[%s1280 + $0x1b8] sm:$0xff]
        %v1405 = vld [vmem:[%s1280 + $0x1c0] sm:$0xff]
        %v1406 = vld [vmem:[%s1280 + $0x1c8] sm:$0xff]
        %v1407 = vld [vmem:[%s1280 + $0x1d0] sm:$0xff]
        %v1408 = vld [vmem:[%s1280 + $0x1d8] sm:$0xff]
        %v1409 = vld [vmem:[%s1280 + $0x1e0] sm:$0xff]
        %v1410 = vld [vmem:[%s1280 + $0x1e8] sm:$0xff]
        %v1411 = vld [vmem:[%s1280 + $0x1f0] sm:$0xff]
        %v1412 = vld [vmem:[%s1280 + $0x1f8] sm:$0xff]
        %v1413 = vld [vmem:[%s1280 + $0x200] sm:$0xff]
        %v1414 = vld [vmem:[%s1280 + $0x208] sm:$0xff]
        %v1415 = vld [vmem:[%s1280 + $0x210] sm:$0xff]
        %v1416 = vld [vmem:[%s1280 + $0x218] sm:$0xff]
        %v1417 = vld [vmem:[%s1280 + $0x220] sm:$0xff]
        %v1418 = vld [vmem:[%s1280 + $0x228] sm:$0xff]
        %v1419 = vld [vmem:[%s1280 + $0x230] sm:$0xff]
        %v1420 = vld [vmem:[%s1280 + $0x238] sm:$0xff]
        %v1421 = vld [vmem:[%s1280 + $0x240] sm:$0xff]
        %v1422 = vld [vmem:[%s1280 + $0x248] sm:$0xff]
        %v1423 = vld [vmem:[%s1280 + $0x250] sm:$0xff]
        %v1424 = vld [vmem:[%s1280 + $0x258] sm:$0xff]
        %v1425 = vld [vmem:[%s1280 + $0x260] sm:$0xff]
        %v1426 = vld [vmem:[%s1280 + $0x268] sm:$0xff]
        %v1427 = vld [vmem:[%s1280 + $0x270] sm:$0xff]
        %v1428 = vld [vmem:[%s1280 + $0x278] sm:$0xff]
        %v1429 = vld [vmem:[%s1280 + $0x280] sm:$0xff]
        %v1430 = vld [vmem:[%s1280 + $0x288] sm:$0xff]
        %v1431 = vld [vmem:[%s1280 + $0x290] sm:$0xff]
        %v1432 = vld [vmem:[%s1280 + $0x298] sm:$0xff]
        %v1433 = vld [vmem:[%s1280 + $0x2a0] sm:$0xff]
        %v1434 = vld [vmem:[%s1280 + $0x2a8] sm:$0xff]
        %v1435 = vld [vmem:[%s1280 + $0x2b0] sm:$0xff]
        %v1436 = vld [vmem:[%s1280 + $0x2b8] sm:$0xff]
        %v1437 = vld [vmem:[%s1280 + $0x2c0] sm:$0xff]
        %v1438 = vld [vmem:[%s1280 + $0x2c8] sm:$0xff]
        %v1439 = vld [vmem:[%s1280 + $0x2d0] sm:$0xff]
        %v1440 = vld [vmem:[%s1280 + $0x2d8] sm:$0xff]
        %v1441 = vld [vmem:[%s1280 + $0x2e0] sm:$0xff]
        %v1442 = vld [vmem:[%s1280 + $0x2e8] sm:$0xff]
        %v1443 = vld [vmem:[%s1280 + $0x2f0] sm:$0xff]
        %v1444 = vld [vmem:[%s1280 + $0x2f8] sm:$0xff]
        %v1445 = vld [vmem:[%s1280 + $0x300] sm:$0xff]
        %v1446 = vld [vmem:[%s1280 + $0x308] sm:$0xff]
        %v1447 = vld [vmem:[%s1280 + $0x310] sm:$0xff]
        %v1448 = vld [vmem:[%s1280 + $0x318] sm:$0xff]
        %v1449 = vld [vmem:[%s1280 + $0x320] sm:$0xff]
        %v1450 = vld [vmem:[%s1280 + $0x328] sm:$0xff]
        %v1451 = vld [vmem:[%s1280 + $0x330] sm:$0xff]
        %v1452 = vld [vmem:[%s1280 + $0x338] sm:$0xff]
        %v1453 = vld [vmem:[%s1280 + $0x340] sm:$0xff]
        %v1454 = vld [vmem:[%s1280 + $0x348] sm:$0xff]
        %v1455 = vld [vmem:[%s1280 + $0x350] sm:$0xff]
        %v1456 = vld [vmem:[%s1280 + $0x358] sm:$0xff]
        %v1457 = vld [vmem:[%s1280 + $0x360] sm:$0xff]
        %v1458 = vld [vmem:[%s1280 + $0x368] sm:$0xff]
        %v1459 = vld [vmem:[%s1280 + $0x370] sm:$0xff]
        %v1460 = vld [vmem:[%s1280 + $0x378] sm:$0xff]
        %v1461 = vld [vmem:[%s1280 + $0x380] sm:$0xff]
        %v1462 = vld [vmem:[%s1280 + $0x388] sm:$0xff]
        %v1463 = vld [vmem:[%s1280 + $0x390] sm:$0xff]
        %v1464 = vld [vmem:[%s1280 + $0x398] sm:$0xff]
        %v1465 = vld [vmem:[%s1280 + $0x3a0] sm:$0xff]
        %v1466 = vld [vmem:[%s1280 + $0x3a8] sm:$0xff]
        %v1467 = vld [vmem:[%s1280 + $0x3b0] sm:$0xff]
        %v1468 = vld [vmem:[%s1280 + $0x3b8] sm:$0xff]
        %v1469 = vld [vmem:[%s1280 + $0x3c0] sm:$0xff]
        %v1470 = vld [vmem:[%s1280 + $0x3c8] sm:$0xff]
        %v1471 = vld [vmem:[%s1280 + $0x3d0] sm:$0xff]
        %v1472 = vld [vmem:[%s1280 + $0x3d8] sm:$0xff]
        %v1473 = vld [vmem:[%s1280 + $0x3e0] sm:$0xff]
        %v1474 = vld [vmem:[%s1280 + $0x3e8] sm:$0xff]
        %v1475 = vld [vmem:[%s1280 + $0x3f0] sm:$0xff]
        %v1476 = vld [vmem:[%s1280 + $0x3f8] sm:$0xff]
        %v1477 = vld [vmem:[%s1280 + $0x400] sm:$0xff]
        %v1478 = vld [vmem:[%s1280 + $0x408] sm:$0xff]
        %v1479 = vld [vmem:[%s1280 + $0x410] sm:$0xff]
        %v1480 = vld [vmem:[%s1280 + $0x418] sm:$0xff]
        %v1481 = vld [vmem:[%s1280 + $0x420] sm:$0xff]
        %v1482 = vld [vmem:[%s1280 + $0x428] sm:$0xff]
        %v1483 = vld [vmem:[%s1280 + $0x430] sm:$0xff]
        %v1484 = vld [vmem:[%s1280 + $0x438] sm:$0xff]
        %v1485 = vld [vmem:[%s1280 + $0x440] sm:$0xff]
        %v1486 = vld [vmem:[%s1280 + $0x448] sm:$0xff]
        %v1487 = vld [vmem:[%s1280 + $0x450] sm:$0xff]
        %v1488 = vld [vmem:[%s1280 + $0x458] sm:$0xff]
        %v1489 = vld [vmem:[%s1280 + $0x460] sm:$0xff]
        %v1490 = vld [vmem:[%s1280 + $0x468] sm:$0xff]
        %v1491 = vld [vmem:[%s1280 + $0x470] sm:$0xff]
        %v1492 = vld [vmem:[%s1280 + $0x478] sm:$0xff]
        %v1493 = vld [vmem:[%s1280 + $0x480] sm:$0xff]
        %v1494 = vld [vmem:[%s1280 + $0x488] sm:$0xff]
        %v1495 = vld [vmem:[%s1280 + $0x490] sm:$0xff]
        %v1496 = vld [vmem:[%s1280 + $0x498] sm:$0xff]
        %v1497 = vld [vmem:[%s1280 + $0x4a0] sm:$0xff]
        %v1498 = vld [vmem:[%s1280 + $0x4a8] sm:$0xff]
        %v1499 = vld [vmem:[%s1280 + $0x4b0] sm:$0xff]
        %v1500 = vld [vmem:[%s1280 + $0x4b8] sm:$0xff]
        %v1501 = vld [vmem:[%s1280 + $0x4c0] sm:$0xff]
        %v1502 = vld [vmem:[%s1280 + $0x4c8] sm:$0xff]
        %v1503 = vld [vmem:[%s1280 + $0x4d0] sm:$0xff]
        %v1504 = vld [vmem:[%s1280 + $0x4d8] sm:$0xff]
        %v1505 = vld [vmem:[%s1280 + $0x4e0] sm:$0xff]
        %v1506 = vld [vmem:[%s1280 + $0x4e8] sm:$0xff]
        %v1507 = vld [vmem:[%s1280 + $0x4f0] sm:$0xff]
        %v1508 = vld [vmem:[%s1280 + $0x4f8] sm:$0xff]
        %v1509 = vld [vmem:[%s1280 + $0x500] sm:$0xff]
        %v1510 = vld [vmem:[%s1280 + $0x508] sm:$0xff]
        %v1511 = vld [vmem:[%s1280 + $0x510] sm:$0xff]
        %v1512 = vld [vmem:[%s1280 + $0x518] sm:$0xff]
        %v1513 = vld [vmem:[%s1280 + $0x520] sm:$0xff]
        %v1514 = vld [vmem:[%s1280 + $0x528] sm:$0xff]
        %v1515 = vld [vmem:[%s1280 + $0x530] sm:$0xff]
        %v1516 = vld [vmem:[%s1280 + $0x538] sm:$0xff]
        %v1517 = vld [vmem:[%s1280 + $0x540] sm:$0xff]
        %v1518 = vld [vmem:[%s1280 + $0x548] sm:$0xff]
        %v1519 = vld [vmem:[%s1280 + $0x550] sm:$0xff]
        %v1520 = vld [vmem:[%s1280 + $0x558] sm:$0xff]
        %v1521 = vld [vmem:[%s1280 + $0x560] sm:$0xff]
        %v1522 = vld [vmem:[%s1280 + $0x568] sm:$0xff]
        %v1523 = vld [vmem:[%s1280 + $0x570] sm:$0xff]
        %v1524 = vld [vmem:[%s1280 + $0x578] sm:$0xff]
        %v1525 = vld [vmem:[%s1280 + $0x580] sm:$0xff]
        %v1526 = vld [vmem:[%s1280 + $0x588] sm:$0xff]
        %v1527 = vld [vmem:[%s1280 + $0x590] sm:$0xff]
        %v1528 = vld [vmem:[%s1280 + $0x598] sm:$0xff]
        %v1529 = vld [vmem:[%s1280 + $0x5a0] sm:$0xff]
        %v1530 = vld [vmem:[%s1280 + $0x5a8] sm:$0xff]
        %v1531 = vld [vmem:[%s1280 + $0x5b0] sm:$0xff]
        %v1532 = vld [vmem:[%s1280 + $0x5b8] sm:$0xff]
        %v1533 = vld [vmem:[%s1280 + $0x5c0] sm:$0xff]
        %v1534 = vld [vmem:[%s1280 + $0x5c8] sm:$0xff]
        %v1535 = vld [vmem:[%s1280 + $0x5d0] sm:$0xff]
        %v1536 = vld [vmem:[%s1280 + $0x5d8] sm:$0xff]
        %v1537 = vld [vmem:[%s1280 + $0x5e0] sm:$0xff]
        %v1538 = vld [vmem:[%s1280 + $0x5e8] sm:$0xff]
        %v1539 = vld [vmem:[%s1280 + $0x5f0] sm:$0xff]
        %v1540 = vld [vmem:[%s1280 + $0x5f8] sm:$0xff]
        %v1541 = vld [vmem:[%s1280 + $0x600] sm:$0xff]
        %v1542 = vld [vmem:[%s1280 + $0x608] sm:$0xff]
        %v1543 = vld [vmem:[%s1280 + $0x610] sm:$0xff]
        %v1544 = vld [vmem:[%s1280 + $0x618] sm:$0xff]
        %v1545 = vld [vmem:[%s1280 + $0x620] sm:$0xff]
        %v1546 = vld [vmem:[%s1280 + $0x628] sm:$0xff]
        %v1547 = vld [vmem:[%s1280 + $0x630] sm:$0xff]
        %v1548 = vld [vmem:[%s1280 + $0x638] sm:$0xff]
        %v1549 = vld [vmem:[%s1280 + $0x640] sm:$0xff]
        %v1550 = vld [vmem:[%s1280 + $0x648] sm:$0xff]
        %v1551 = vld [vmem:[%s1280 + $0x650] sm:$0xff]
        %v1552 = vld [vmem:[%s1280 + $0x658] sm:$0xff]
        %v1553 = vld [vmem:[%s1280 + $0x660] sm:$0xff]
        %v1554 = vld [vmem:[%s1280 + $0x668] sm:$0xff]
        %v1555 = vld [vmem:[%s1280 + $0x670] sm:$0xff]
        %v1556 = vld [vmem:[%s1280 + $0x678] sm:$0xff]
        %v1557 = vld [vmem:[%s1280 + $0x680] sm:$0xff]
        %v1558 = vld [vmem:[%s1280 + $0x688] sm:$0xff]
        %v1559 = vld [vmem:[%s1280 + $0x690] sm:$0xff]
        %v1560 = vld [vmem:[%s1280 + $0x698] sm:$0xff]
        %v1561 = vld [vmem:[%s1280 + $0x6a0] sm:$0xff]
        %v1562 = vld [vmem:[%s1280 + $0x6a8] sm:$0xff]
        %v1563 = vld [vmem:[%s1280 + $0x6b0] sm:$0xff]
        %v1564 = vld [vmem:[%s1280 + $0x6b8] sm:$0xff]
        %v1565 = vld [vmem:[%s1280 + $0x6c0] sm:$0xff]
        %v1566 = vld [vmem:[%s1280 + $0x6c8] sm:$0xff]
        %v1567 = vld [vmem:[%s1280 + $0x6d0] sm:$0xff]
        %v1568 = vld [vmem:[%s1280 + $0x6d8] sm:$0xff]
        %v1569 = vld [vmem:[%s1280 + $0x6e0] sm:$0xff]
        %v1570 = vld [vmem:[%s1280 + $0x6e8] sm:$0xff]
        %v1571 = vld [vmem:[%s1280 + $0x6f0] sm:$0xff]
        %v1572 = vld [vmem:[%s1280 + $0x6f8] sm:$0xff]
        %v1573 = vld [vmem:[%s1280 + $0x700] sm:$0xff]
        %v1574 = vld [vmem:[%s1280 + $0x708] sm:$0xff]
        %v1575 = vld [vmem:[%s1280 + $0x710] sm:$0xff]
        %v1576 = vld [vmem:[%s1280 + $0x718] sm:$0xff]
        %v1577 = vld [vmem:[%s1280 + $0x720] sm:$0xff]
        %v1578 = vld [vmem:[%s1280 + $0x728] sm:$0xff]
        %v1579 = vld [vmem:[%s1280 + $0x730] sm:$0xff]
        %v1580 = vld [vmem:[%s1280 + $0x738] sm:$0xff]
        %v1581 = vld [vmem:[%s1280 + $0x740] sm:$0xff]
        %v1582 = vld [vmem:[%s1280 + $0x748] sm:$0xff]
        %v1583 = vld [vmem:[%s1280 + $0x750] sm:$0xff]
        %v1584 = vld [vmem:[%s1280 + $0x758] sm:$0xff]
        %v1585 = vld [vmem:[%s1280 + $0x760] sm:$0xff]
        %v1586 = vld [vmem:[%s1280 + $0x768] sm:$0xff]
        %v1587 = vld [vmem:[%s1280 + $0x770] sm:$0xff]
        %v1588 = vld [vmem:[%s1280 + $0x778] sm:$0xff]
        %v1589 = vld [vmem:[%s1280 + $0x780] sm:$0xff]
        %v1590 = vld [vmem:[%s1280 + $0x788] sm:$0xff]
        %v1591 = vld [vmem:[%s1280 + $0x790] sm:$0xff]
        %v1592 = vld [vmem:[%s1280 + $0x798] sm:$0xff]
        %v1593 = vld [vmem:[%s1280 + $0x7a0] sm:$0xff]
        %v1594 = vld [vmem:[%s1280 + $0x7a8] sm:$0xff]
        %v1595 = vld [vmem:[%s1280 + $0x7b0] sm:$0xff]
        %v1596 = vld [vmem:[%s1280 + $0x7b8] sm:$0xff]
        %v1597 = vld [vmem:[%s1280 + $0x7c0] sm:$0xff]
        %v1598 = vld [vmem:[%s1280 + $0x7c8] sm:$0xff]
        %v1599 = vld [vmem:[%s1280 + $0x7d0] sm:$0xff]
        %v1600 = vld [vmem:[%s1280 + $0x7d8] sm:$0xff]
        %v1601 = vld [vmem:[%s1280 + $0x7e0] sm:$0xff]
        %v1602 = vld [vmem:[%s1280 + $0x7e8] sm:$0xff]
        %v1603 = vld [vmem:[%s1280 + $0x7f0] sm:$0xff]
        %v1604 = vld [vmem:[%s1280 + $0x7f8] sm:$0xff]
        %v1605 = vld [vmem:[%s1280 + $0x800] sm:$0xff]
        %v1606 = vld [vmem:[%s1280 + $0x808] sm:$0xff]
        %v1607 = vld [vmem:[%s1280 + $0x810] sm:$0xff]
        %v1608 = vld [vmem:[%s1280 + $0x818] sm:$0xff]
        %v1609 = vld [vmem:[%s1280 + $0x820] sm:$0xff]
        %v1610 = vld [vmem:[%s1280 + $0x828] sm:$0xff]
        %v1611 = vld [vmem:[%s1280 + $0x830] sm:$0xff]
        %v1612 = vld [vmem:[%s1280 + $0x838] sm:$0xff]
        %v1613 = vld [vmem:[%s1280 + $0x840] sm:$0xff]
        %v1614 = vld [vmem:[%s1280 + $0x848] sm:$0xff]
        %v1615 = vld [vmem:[%s1280 + $0x850] sm:$0xff]
        %v1616 = vld [vmem:[%s1280 + $0x858] sm:$0xff]
        %v1617 = vld [vmem:[%s1280 + $0x860] sm:$0xff]
        %v1618 = vld [vmem:[%s1280 + $0x868] sm:$0xff]
        %v1619 = vld [vmem:[%s1280 + $0x870] sm:$0xff]
        %v1620 = vld [vmem:[%s1280 + $0x878] sm:$0xff]
        %v1621 = vld [vmem:[%s1280 + $0x880] sm:$0xff]
        %v1622 = vld [vmem:[%s1280 + $0x888] sm:$0xff]
        %v1623 = vld [vmem:[%s1280 + $0x890] sm:$0xff]
        %v1624 = vld [vmem:[%s1280 + $0x898] sm:$0xff]
        %v1625 = vld [vmem:[%s1280 + $0x8a0] sm:$0xff]
        %v1626 = vld [vmem:[%s1280 + $0x8a8] sm:$0xff]
        %v1627 = vld [vmem:[%s1280 + $0x8b0] sm:$0xff]
        %v1628 = vld [vmem:[%s1280 + $0x8b8] sm:$0xff]
        %v1629 = vld [vmem:[%s1280 + $0x8c0] sm:$0xff]
        %v1630 = vld [vmem:[%s1280 + $0x8c8] sm:$0xff]
        %v1631 = vld [vmem:[%s1280 + $0x8d0] sm:$0xff]
        %v1632 = vld [vmem:[%s1280 + $0x8d8] sm:$0xff]
        %v1633 = vld [vmem:[%s1280 + $0x8e0] sm:$0xff]
        %v1634 = vld [vmem:[%s1280 + $0x8e8] sm:$0xff]
        %v1635 = vld [vmem:[%s1280 + $0x8f0] sm:$0xff]
        %v1636 = vld [vmem:[%s1280 + $0x8f8] sm:$0xff]
        %v1637 = vld [vmem:[%s1280 + $0x900] sm:$0xff]
        %v1638 = vld [vmem:[%s1280 + $0x908] sm:$0xff]
        %v1639 = vld [vmem:[%s1280 + $0x910] sm:$0xff]
        %v1640 = vld [vmem:[%s1280 + $0x918] sm:$0xff]
        %v1641 = vld [vmem:[%s1280 + $0x920] sm:$0xff]
        %v1642 = vld [vmem:[%s1280 + $0x928] sm:$0xff]
        %v1643 = vld [vmem:[%s1280 + $0x930] sm:$0xff]
        %v1644 = vld [vmem:[%s1280 + $0x938] sm:$0xff]
        %v1645 = vld [vmem:[%s1280 + $0x940] sm:$0xff]
        %v1646 = vld [vmem:[%s1280 + $0x948] sm:$0xff]
        %v1647 = vld [vmem:[%s1280 + $0x950] sm:$0xff]
        %v1648 = vld [vmem:[%s1280 + $0x958] sm:$0xff]
        %v1649 = vld [vmem:[%s1280 + $0x960] sm:$0xff]
        %v1650 = vld [vmem:[%s1280 + $0x968] sm:$0xff]
        %v1651 = vld [vmem:[%s1280 + $0x970] sm:$0xff]
        %v1652 = vld [vmem:[%s1280 + $0x978] sm:$0xff]
        %v1653 = vld [vmem:[%s1280 + $0x980] sm:$0xff]
        %v1654 = vld [vmem:[%s1280 + $0x988] sm:$0xff]
        %v1655 = vld [vmem:[%s1280 + $0x990] sm:$0xff]
        %v1656 = vld [vmem:[%s1280 + $0x998] sm:$0xff]
        %v1657 = vld [vmem:[%s1280 + $0x9a0] sm:$0xff]
        %v1658 = vld [vmem:[%s1280 + $0x9a8] sm:$0xff]
        %v1659 = vld [vmem:[%s1280 + $0x9b0] sm:$0xff]
        %v1660 = vld [vmem:[%s1280 + $0x9b8] sm:$0xff]
        %v1661 = vld [vmem:[%s1280 + $0x9c0] sm:$0xff]
        %v1662 = vld [vmem:[%s1280 + $0x9c8] sm:$0xff]
        %v1663 = vld [vmem:[%s1280 + $0x9d0] sm:$0xff]
        %v1664 = vld [vmem:[%s1280 + $0x9d8] sm:$0xff]
        %v1665 = vld [vmem:[%s1280 + $0x9e0] sm:$0xff]
        %v1666 = vld [vmem:[%s1280 + $0x9e8] sm:$0xff]
        %v1667 = vld [vmem:[%s1280 + $0x9f0] sm:$0xff]
        %v1668 = vld [vmem:[%s1280 + $0x9f8] sm:$0xff]
        %v1669 = vld [vmem:[%s1280 + $0xa00] sm:$0xff]
        %v1670 = vld [vmem:[%s1280 + $0xa08] sm:$0xff]
        %v1671 = vld [vmem:[%s1280 + $0xa10] sm:$0xff]
        %v1672 = vld [vmem:[%s1280 + $0xa18] sm:$0xff]
        %v1673 = vld [vmem:[%s1280 + $0xa20] sm:$0xff]
        %v1674 = vld [vmem:[%s1280 + $0xa28] sm:$0xff]
        %v1675 = vld [vmem:[%s1280 + $0xa30] sm:$0xff]
        %v1676 = vld [vmem:[%s1280 + $0xa38] sm:$0xff]
        %v1677 = vld [vmem:[%s1280 + $0xa40] sm:$0xff]
        %v1678 = vld [vmem:[%s1280 + $0xa48] sm:$0xff]
        %v1679 = vld [vmem:[%s1280 + $0xa50] sm:$0xff]
        %v1680 = vld [vmem:[%s1280 + $0xa58] sm:$0xff]
        %v1681 = vld [vmem:[%s1280 + $0xa60] sm:$0xff]
        %v1682 = vld [vmem:[%s1280 + $0xa68] sm:$0xff]
        %v1683 = vld [vmem:[%s1280 + $0xa70] sm:$0xff]
        %v1684 = vld [vmem:[%s1280 + $0xa78] sm:$0xff]
        %v1685 = vld [vmem:[%s1280 + $0xa80] sm:$0xff]
        %v1686 = vld [vmem:[%s1280 + $0xa88] sm:$0xff]
        %v1687 = vld [vmem:[%s1280 + $0xa90] sm:$0xff]
        %v1688 = vld [vmem:[%s1280 + $0xa98] sm:$0xff]
        %v1689 = vld [vmem:[%s1280 + $0xaa0] sm:$0xff]
        %v1690 = vld [vmem:[%s1280 + $0xaa8] sm:$0xff]
        %v1691 = vld [vmem:[%s1280 + $0xab0] sm:$0xff]
        %v1692 = vld [vmem:[%s1280 + $0xab8] sm:$0xff]
        %v1693 = vld [vmem:[%s1280 + $0xac0] sm:$0xff]
        %v1694 = vld [vmem:[%s1280 + $0xac8] sm:$0xff]
        %v1695 = vld [vmem:[%s1280 + $0xad0] sm:$0xff]
        %v1696 = vld [vmem:[%s1280 + $0xad8] sm:$0xff]
        %v1697 = vld [vmem:[%s1280 + $0xae0] sm:$0xff]
        %v1698 = vld [vmem:[%s1280 + $0xae8] sm:$0xff]
        %v1699 = vld [vmem:[%s1280 + $0xaf0] sm:$0xff]
        %v1700 = vld [vmem:[%s1280 + $0xaf8] sm:$0xff]
        %v1701 = vld [vmem:[%s1280 + $0xb00] sm:$0xff]
        %v1702 = vld [vmem:[%s1280 + $0xb08] sm:$0xff]
        %v1703 = vld [vmem:[%s1280 + $0xb10] sm:$0xff]
        %v1704 = vld [vmem:[%s1280 + $0xb18] sm:$0xff]
        %v1705 = vld [vmem:[%s1280 + $0xb20] sm:$0xff]
        %v1706 = vld [vmem:[%s1280 + $0xb28] sm:$0xff]
        %v1707 = vld [vmem:[%s1280 + $0xb30] sm:$0xff]
        %v1708 = vld [vmem:[%s1280 + $0xb38] sm:$0xff]
        %v1709 = vld [vmem:[%s1280 + $0xb40] sm:$0xff]
        %v1710 = vld [vmem:[%s1280 + $0xb48] sm:$0xff]
        %v1711 = vld [vmem:[%s1280 + $0xb50] sm:$0xff]
        %v1712 = vld [vmem:[%s1280 + $0xb58] sm:$0xff]
        %v1713 = vld [vmem:[%s1280 + $0xb60] sm:$0xff]
        %v1714 = vld [vmem:[%s1280 + $0xb68] sm:$0xff]
        %v1715 = vld [vmem:[%s1280 + $0xb70] sm:$0xff]
        %v1716 = vld [vmem:[%s1280 + $0xb78] sm:$0xff]
        %v1717 = vld [vmem:[%s1280 + $0xb80] sm:$0xff]
        %v1718 = vld [vmem:[%s1280 + $0xb88] sm:$0xff]
        %v1719 = vld [vmem:[%s1280 + $0xb90] sm:$0xff]
        %v1720 = vld [vmem:[%s1280 + $0xb98] sm:$0xff]
        %v1721 = vld [vmem:[%s1280 + $0xba0] sm:$0xff]
        %v1722 = vld [vmem:[%s1280 + $0xba8] sm:$0xff]
        %v1723 = vld [vmem:[%s1280 + $0xbb0] sm:$0xff]
        %v1724 = vld [vmem:[%s1280 + $0xbb8] sm:$0xff]
        %v1725 = vld [vmem:[%s1280 + $0xbc0] sm:$0xff]
        %v1726 = vld [vmem:[%s1280 + $0xbc8] sm:$0xff]
        %v1727 = vld [vmem:[%s1280 + $0xbd0] sm:$0xff]
        %v1728 = vld [vmem:[%s1280 + $0xbd8] sm:$0xff]
        %v1729 = vld [vmem:[%s1280 + $0xbe0] sm:$0xff]
        %v1730 = vld [vmem:[%s1280 + $0xbe8] sm:$0xff]
        %v1731 = vld [vmem:[%s1280 + $0xbf0] sm:$0xff]
        %v1732 = vld [vmem:[%s1280 + $0xbf8] sm:$0xff]
        %v1733 = vld [vmem:[%s1280 + $0xc00] sm:$0xff]
        %v1734 = vld [vmem:[%s1280 + $0xc08] sm:$0xff]
        %v1735 = vld [vmem:[%s1280 + $0xc10] sm:$0xff]
        %v1736 = vld [vmem:[%s1280 + $0xc18] sm:$0xff]
        %v1737 = vld [vmem:[%s1280 + $0xc20] sm:$0xff]
        %v1738 = vld [vmem:[%s1280 + $0xc28] sm:$0xff]
        %v1739 = vld [vmem:[%s1280 + $0xc30] sm:$0xff]
        %v1740 = vld [vmem:[%s1280 + $0xc38] sm:$0xff]
        %v1741 = vld [vmem:[%s1280 + $0xc40] sm:$0xff]
        %v1742 = vld [vmem:[%s1280 + $0xc48] sm:$0xff]
        %v1743 = vld [vmem:[%s1280 + $0xc50] sm:$0xff]
        %v1744 = vld [vmem:[%s1280 + $0xc58] sm:$0xff]
        %v1745 = vld [vmem:[%s1280 + $0xc60] sm:$0xff]
        %v1746 = vld [vmem:[%s1280 + $0xc68] sm:$0xff]
        %v1747 = vld [vmem:[%s1280 + $0xc70] sm:$0xff]
        %v1748 = vld [vmem:[%s1280 + $0xc78] sm:$0xff]
        %v1749 = vld [vmem:[%s1280 + $0xc80] sm:$0xff]
        %v1750 = vld [vmem:[%s1280 + $0xc88] sm:$0xff]
        %v1751 = vld [vmem:[%s1280 + $0xc90] sm:$0xff]
        %v1752 = vld [vmem:[%s1280 + $0xc98] sm:$0xff]
        %v1753 = vld [vmem:[%s1280 + $0xca0] sm:$0xff]
        %v1754 = vld [vmem:[%s1280 + $0xca8] sm:$0xff]
        %v1755 = vld [vmem:[%s1280 + $0xcb0] sm:$0xff]
        %v1756 = vld [vmem:[%s1280 + $0xcb8] sm:$0xff]
        %v1757 = vld [vmem:[%s1280 + $0xcc0] sm:$0xff]
        %v1758 = vld [vmem:[%s1280 + $0xcc8] sm:$0xff]
        %v1759 = vld [vmem:[%s1280 + $0xcd0] sm:$0xff]
        %v1760 = vld [vmem:[%s1280 + $0xcd8] sm:$0xff]
        %v1761 = vld [vmem:[%s1280 + $0xce0] sm:$0xff]
        %v1762 = vld [vmem:[%s1280 + $0xce8] sm:$0xff]
        %v1763 = vld [vmem:[%s1280 + $0xcf0] sm:$0xff]
        %v1764 = vld [vmem:[%s1280 + $0xcf8] sm:$0xff]
        %v1765 = vld [vmem:[%s1280 + $0xd00] sm:$0xff]
        %v1766 = vld [vmem:[%s1280 + $0xd08] sm:$0xff]
        %v1767 = vld [vmem:[%s1280 + $0xd10] sm:$0xff]
        %v1768 = vld [vmem:[%s1280 + $0xd18] sm:$0xff]
        %v1769 = vld [vmem:[%s1280 + $0xd20] sm:$0xff]
        %v1770 = vld [vmem:[%s1280 + $0xd28] sm:$0xff]
        %v1771 = vld [vmem:[%s1280 + $0xd30] sm:$0xff]
        %v1772 = vld [vmem:[%s1280 + $0xd38] sm:$0xff]
        %v1773 = vld [vmem:[%s1280 + $0xd40] sm:$0xff]
        %v1774 = vld [vmem:[%s1280 + $0xd48] sm:$0xff]
        %v1775 = vld [vmem:[%s1280 + $0xd50] sm:$0xff]
        %v1776 = vld [vmem:[%s1280 + $0xd58] sm:$0xff]
        %v1777 = vld [vmem:[%s1280 + $0xd60] sm:$0xff]
        %v1778 = vld [vmem:[%s1280 + $0xd68] sm:$0xff]
        %v1779 = vld [vmem:[%s1280 + $0xd70] sm:$0xff]
        %v1780 = vld [vmem:[%s1280 + $0xd78] sm:$0xff]
        %v1781 = vld [vmem:[%s1280 + $0xd80] sm:$0xff]
        %v1782 = vld [vmem:[%s1280 + $0xd88] sm:$0xff]
        %v1783 = vld [vmem:[%s1280 + $0xd90] sm:$0xff]
        %v1784 = vld [vmem:[%s1280 + $0xd98] sm:$0xff]
        %v1785 = vld [vmem:[%s1280 + $0xda0] sm:$0xff]
        %v1786 = vld [vmem:[%s1280 + $0xda8] sm:$0xff]
        %v1787 = vld [vmem:[%s1280 + $0xdb0] sm:$0xff]
        %v1788 = vld [vmem:[%s1280 + $0xdb8] sm:$0xff]
        %v1789 = vld [vmem:[%s1280 + $0xdc0] sm:$0xff]
        %v1790 = vld [vmem:[%s1280 + $0xdc8] sm:$0xff]
        %v1791 = vld [vmem:[%s1280 + $0xdd0] sm:$0xff]
        %v1792 = vld [vmem:[%s1280 + $0xdd8] sm:$0xff]
        %v1793 = vld [vmem:[%s1280 + $0xde0] sm:$0xff]
        %v1794 = vld [vmem:[%s1280 + $0xde8] sm:$0xff]
        %v1795 = vld [vmem:[%s1280 + $0xdf0] sm:$0xff]
        %v1796 = vld [vmem:[%s1280 + $0xdf8] sm:$0xff]
        %v1797 = vld [vmem:[%s1280 + $0xe00] sm:$0xff]
        %v1798 = vld [vmem:[%s1280 + $0xe08] sm:$0xff]
        %v1799 = vld [vmem:[%s1280 + $0xe10] sm:$0xff]
        %v1800 = vld [vmem:[%s1280 + $0xe18] sm:$0xff]
        %v1801 = vld [vmem:[%s1280 + $0xe20] sm:$0xff]
        %v1802 = vld [vmem:[%s1280 + $0xe28] sm:$0xff]
        %v1803 = vld [vmem:[%s1280 + $0xe30] sm:$0xff]
        %v1804 = vld [vmem:[%s1280 + $0xe38] sm:$0xff]
        %v1805 = vld [vmem:[%s1280 + $0xe40] sm:$0xff]
        %v1806 = vld [vmem:[%s1280 + $0xe48] sm:$0xff]
        %v1807 = vld [vmem:[%s1280 + $0xe50] sm:$0xff]
        %v1808 = vld [vmem:[%s1280 + $0xe58] sm:$0xff]
        %v1809 = vld [vmem:[%s1280 + $0xe60] sm:$0xff]
        %v1810 = vld [vmem:[%s1280 + $0xe68] sm:$0xff]
        %v1811 = vld [vmem:[%s1280 + $0xe70] sm:$0xff]
        %v1812 = vld [vmem:[%s1280 + $0xe78] sm:$0xff]
        %v1813 = vld [vmem:[%s1280 + $0xe80] sm:$0xff]
        %v1814 = vld [vmem:[%s1280 + $0xe88] sm:$0xff]
        %v1815 = vld [vmem:[%s1280 + $0xe90] sm:$0xff]
        %v1816 = vld [vmem:[%s1280 + $0xe98] sm:$0xff]
        %v1817 = vld [vmem:[%s1280 + $0xea0] sm:$0xff]
        %v1818 = vld [vmem:[%s1280 + $0xea8] sm:$0xff]
        %v1819 = vld [vmem:[%s1280 + $0xeb0] sm:$0xff]
        %v1820 = vld [vmem:[%s1280 + $0xeb8] sm:$0xff]
        %v1821 = vld [vmem:[%s1280 + $0xec0] sm:$0xff]
        %v1822 = vld [vmem:[%s1280 + $0xec8] sm:$0xff]
        %v1823 = vld [vmem:[%s1280 + $0xed0] sm:$0xff]
        %v1824 = vld [vmem:[%s1280 + $0xed8] sm:$0xff]
        %v1825 = vld [vmem:[%s1280 + $0xee0] sm:$0xff]
        %v1826 = vld [vmem:[%s1280 + $0xee8] sm:$0xff]
        %v1827 = vld [vmem:[%s1280 + $0xef0] sm:$0xff]
        %v1828 = vld [vmem:[%s1280 + $0xef8] sm:$0xff]
        %v1829 = vld [vmem:[%s1280 + $0xf00] sm:$0xff]
        %v1830 = vld [vmem:[%s1280 + $0xf08] sm:$0xff]
        %v1831 = vld [vmem:[%s1280 + $0xf10] sm:$0xff]
        %v1832 = vld [vmem:[%s1280 + $0xf18] sm:$0xff]
        %v1833 = vld [vmem:[%s1280 + $0xf20] sm:$0xff]
        %v1834 = vld [vmem:[%s1280 + $0xf28] sm:$0xff]
        %v1835 = vld [vmem:[%s1280 + $0xf30] sm:$0xff]
        %v1836 = vld [vmem:[%s1280 + $0xf38] sm:$0xff]
        %v1837 = vld [vmem:[%s1280 + $0xf40] sm:$0xff]
        %v1838 = vld [vmem:[%s1280 + $0xf48] sm:$0xff]
        %v1839 = vld [vmem:[%s1280 + $0xf50] sm:$0xff]
        %v1840 = vld [vmem:[%s1280 + $0xf58] sm:$0xff]
        %v1841 = vld [vmem:[%s1280 + $0xf60] sm:$0xff]
        %v1842 = vld [vmem:[%s1280 + $0xf68] sm:$0xff]
        %v1843 = vld [vmem:[%s1280 + $0xf70] sm:$0xff]
        %v1844 = vld [vmem:[%s1280 + $0xf78] sm:$0xff]
        %v1845 = vld [vmem:[%s1280 + $0xf80] sm:$0xff]
        %v1846 = vld [vmem:[%s1280 + $0xf88] sm:$0xff]
        %v1847 = vld [vmem:[%s1280 + $0xf90] sm:$0xff]
        %v1848 = vld [vmem:[%s1280 + $0xf98] sm:$0xff]
        %v1849 = vld [vmem:[%s1280 + $0xfa0] sm:$0xff]
        %v1850 = vld [vmem:[%s1280 + $0xfa8] sm:$0xff]
        %v1851 = vld [vmem:[%s1280 + $0xfb0] sm:$0xff]
        %v1852 = vld [vmem:[%s1280 + $0xfb8] sm:$0xff]
        %v1853 = vld [vmem:[%s1280 + $0xfc0] sm:$0xff]
        %v1854 = vld [vmem:[%s1280 + $0xfc8] sm:$0xff]
        %v1855 = vld [vmem:[%s1280 + $0xfd0] sm:$0xff]
        %v1856 = vld [vmem:[%s1280 + $0xfd8] sm:$0xff]
        %v1857 = vld [vmem:[%s1280 + $0xfe0] sm:$0xff]
        %v1858 = vld [vmem:[%s1280 + $0xfe8] sm:$0xff]
        %v1859 = vld [vmem:[%s1280 + $0xff0] sm:$0xff]
        %v1860 = vld [vmem:[%s1280 + $0xff8] sm:$0xff]
        %v1861 = vld [vmem:[%s1327] sm:$0xff]
        %v1863 = vlaneseq
        %v1864 = vshrl.u32 %v1863, 7
        %v1865 = vsub.s32 0, %v1864
        %v1866 = vrot.slane %v1861, %v1865
        %v1867 = vlaneseq
        %v1868 = vshrl.u32 %v1867, 7
        %v1869 = vsub.s32 1, %v1868
        %v1870 = vrot.slane %v1861, %v1869
        %v1871 = vlaneseq
        %v1872 = vshrl.u32 %v1871, 7
        %v1873 = vsub.s32 2, %v1872
        %v1874 = vrot.slane %v1861, %v1873
        %v1875 = vlaneseq
        %v1876 = vshrl.u32 %v1875, 7
        %v1877 = vsub.s32 3, %v1876
        %v1878 = vrot.slane %v1861, %v1877
        %v1879 = vlaneseq
        %v1880 = vshrl.u32 %v1879, 7
        %v1881 = vsub.s32 4, %v1880
        %v1882 = vrot.slane %v1861, %v1881
        %v1883 = vlaneseq
        %v1884 = vshrl.u32 %v1883, 7
        %v1885 = vsub.s32 5, %v1884
        %v1886 = vrot.slane %v1861, %v1885
        %v1887 = vlaneseq
        %v1888 = vshrl.u32 %v1887, 7
        %v1889 = vsub.s32 6, %v1888
        %v1890 = vrot.slane %v1861, %v1889
        %v1891 = vlaneseq
        %v1892 = vshrl.u32 %v1891, 7
        %v1893 = vsub.s32 7, %v1892
        %v1894 = vrot.slane %v1861, %v1893
        %v1907 = vunpack.c.l.b16 %v1345
        %v1908 = vunpack.c.h.b16 %v1345
        %v1909 = vunpack.c.l.b16 %v1346
        %v1910 = vunpack.c.h.b16 %v1346
        %v1911 = vunpack.c.l.b16 %v1347
        %v1912 = vunpack.c.h.b16 %v1347
        %v1913 = vunpack.c.l.b16 %v1348
        %v1914 = vunpack.c.h.b16 %v1348
        %v1915 = vpack.c.b16 %v1907, %v1907
        %v1916 = vpack.c.b16 %v1908, %v1908
        %v1917 = vpack.c.b16 %v1909, %v1909
        %v1918 = vpack.c.b16 %v1910, %v1910
        %v1919 = vpack.c.b16 %v1911, %v1911
        %v1920 = vpack.c.b16 %v1912, %v1912
        %v1921 = vpack.c.b16 %v1913, %v1913
        %v1922 = vpack.c.b16 %v1914, %v1914
        %v2443 = vunpack.c.l.b16 %v1349
        %v2444 = vunpack.c.h.b16 %v1349
        %v2445 = vunpack.c.l.b16 %v1350
        %v2446 = vunpack.c.h.b16 %v1350
        %v2447 = vunpack.c.l.b16 %v1351
        %v2448 = vunpack.c.h.b16 %v1351
        %v2449 = vunpack.c.l.b16 %v1352
        %v2450 = vunpack.c.h.b16 %v1352
        %v2451 = vunpack.c.l.b16 %v1353
        %v2452 = vunpack.c.h.b16 %v1353
        %v2453 = vunpack.c.l.b16 %v1354
        %v2454 = vunpack.c.h.b16 %v1354
        %v2455 = vunpack.c.l.b16 %v1355
        %v2456 = vunpack.c.h.b16 %v1355
        %v2457 = vunpack.c.l.b16 %v1356
        %v2458 = vunpack.c.h.b16 %v1356
        %v2459 = vunpack.c.l.b16 %v1357
        %v2460 = vunpack.c.h.b16 %v1357
        %v2461 = vunpack.c.l.b16 %v1358
        %v2462 = vunpack.c.h.b16 %v1358
        %v2463 = vunpack.c.l.b16 %v1359
        %v2464 = vunpack.c.h.b16 %v1359
        %v2465 = vunpack.c.l.b16 %v1360
        %v2466 = vunpack.c.h.b16 %v1360
        %v2467 = vunpack.c.l.b16 %v1361
        %v2468 = vunpack.c.h.b16 %v1361
        %v2469 = vunpack.c.l.b16 %v1362
        %v2470 = vunpack.c.h.b16 %v1362
        %v2471 = vunpack.c.l.b16 %v1363
        %v2472 = vunpack.c.h.b16 %v1363
        %v2473 = vunpack.c.l.b16 %v1364
        %v2474 = vunpack.c.h.b16 %v1364
        %v2475 = vunpack.c.l.b16 %v1365
        %v2476 = vunpack.c.h.b16 %v1365
        %v2477 = vunpack.c.l.b16 %v1366
        %v2478 = vunpack.c.h.b16 %v1366
        %v2479 = vunpack.c.l.b16 %v1367
        %v2480 = vunpack.c.h.b16 %v1367
        %v2481 = vunpack.c.l.b16 %v1368
        %v2482 = vunpack.c.h.b16 %v1368
        %v2483 = vunpack.c.l.b16 %v1369
        %v2484 = vunpack.c.h.b16 %v1369
        %v2485 = vunpack.c.l.b16 %v1370
        %v2486 = vunpack.c.h.b16 %v1370
        %v2487 = vunpack.c.l.b16 %v1371
        %v2488 = vunpack.c.h.b16 %v1371
        %v2489 = vunpack.c.l.b16 %v1372
        %v2490 = vunpack.c.h.b16 %v1372
        %v2491 = vunpack.c.l.b16 %v1373
        %v2492 = vunpack.c.h.b16 %v1373
        %v2493 = vunpack.c.l.b16 %v1374
        %v2494 = vunpack.c.h.b16 %v1374
        %v2495 = vunpack.c.l.b16 %v1375
        %v2496 = vunpack.c.h.b16 %v1375
        %v2497 = vunpack.c.l.b16 %v1376
        %v2498 = vunpack.c.h.b16 %v1376
        %v2499 = vunpack.c.l.b16 %v1377
        %v2500 = vunpack.c.h.b16 %v1377
        %v2501 = vunpack.c.l.b16 %v1378
        %v2502 = vunpack.c.h.b16 %v1378
        %v2503 = vunpack.c.l.b16 %v1379
        %v2504 = vunpack.c.h.b16 %v1379
        %v2505 = vunpack.c.l.b16 %v1380
        %v2506 = vunpack.c.h.b16 %v1380
        %v2507 = vunpack.c.l.b16 %v1381
        %v2508 = vunpack.c.h.b16 %v1381
        %v2509 = vunpack.c.l.b16 %v1382
        %v2510 = vunpack.c.h.b16 %v1382
        %v2511 = vunpack.c.l.b16 %v1383
        %v2512 = vunpack.c.h.b16 %v1383
        %v2513 = vunpack.c.l.b16 %v1384
        %v2514 = vunpack.c.h.b16 %v1384
        %v2515 = vunpack.c.l.b16 %v1385
        %v2516 = vunpack.c.h.b16 %v1385
        %v2517 = vunpack.c.l.b16 %v1386
        %v2518 = vunpack.c.h.b16 %v1386
        %v2519 = vunpack.c.l.b16 %v1387
        %v2520 = vunpack.c.h.b16 %v1387
        %v2521 = vunpack.c.l.b16 %v1388
        %v2522 = vunpack.c.h.b16 %v1388
        %v2523 = vunpack.c.l.b16 %v1389
        %v2524 = vunpack.c.h.b16 %v1389
        %v2525 = vunpack.c.l.b16 %v1390
        %v2526 = vunpack.c.h.b16 %v1390
        %v2527 = vunpack.c.l.b16 %v1391
        %v2528 = vunpack.c.h.b16 %v1391
        %v2529 = vunpack.c.l.b16 %v1392
        %v2530 = vunpack.c.h.b16 %v1392
        %v2531 = vunpack.c.l.b16 %v1393
        %v2532 = vunpack.c.h.b16 %v1393
        %v2533 = vunpack.c.l.b16 %v1394
        %v2534 = vunpack.c.h.b16 %v1394
        %v2535 = vunpack.c.l.b16 %v1395
        %v2536 = vunpack.c.h.b16 %v1395
        %v2537 = vunpack.c.l.b16 %v1396
        %v2538 = vunpack.c.h.b16 %v1396
        %v2539 = vunpack.c.l.b16 %v1397
        %v2540 = vunpack.c.h.b16 %v1397
        %v2541 = vunpack.c.l.b16 %v1398
        %v2542 = vunpack.c.h.b16 %v1398
        %v2543 = vunpack.c.l.b16 %v1399
        %v2544 = vunpack.c.h.b16 %v1399
        %v2545 = vunpack.c.l.b16 %v1400
        %v2546 = vunpack.c.h.b16 %v1400
        %v2547 = vunpack.c.l.b16 %v1401
        %v2548 = vunpack.c.h.b16 %v1401
        %v2549 = vunpack.c.l.b16 %v1402
        %v2550 = vunpack.c.h.b16 %v1402
        %v2551 = vunpack.c.l.b16 %v1403
        %v2552 = vunpack.c.h.b16 %v1403
        %v2553 = vunpack.c.l.b16 %v1404
        %v2554 = vunpack.c.h.b16 %v1404
        %v2555 = vunpack.c.l.b16 %v1405
        %v2556 = vunpack.c.h.b16 %v1405
        %v2557 = vunpack.c.l.b16 %v1406
        %v2558 = vunpack.c.h.b16 %v1406
        %v2559 = vunpack.c.l.b16 %v1407
        %v2560 = vunpack.c.h.b16 %v1407
        %v2561 = vunpack.c.l.b16 %v1408
        %v2562 = vunpack.c.h.b16 %v1408
        %v2563 = vunpack.c.l.b16 %v1409
        %v2564 = vunpack.c.h.b16 %v1409
        %v2565 = vunpack.c.l.b16 %v1410
        %v2566 = vunpack.c.h.b16 %v1410
        %v2567 = vunpack.c.l.b16 %v1411
        %v2568 = vunpack.c.h.b16 %v1411
        %v2569 = vunpack.c.l.b16 %v1412
        %v2570 = vunpack.c.h.b16 %v1412
        %v2571 = vunpack.c.l.b16 %v1413
        %v2572 = vunpack.c.h.b16 %v1413
        %v2573 = vunpack.c.l.b16 %v1414
        %v2574 = vunpack.c.h.b16 %v1414
        %v2575 = vunpack.c.l.b16 %v1415
        %v2576 = vunpack.c.h.b16 %v1415
        %v2577 = vunpack.c.l.b16 %v1416
        %v2578 = vunpack.c.h.b16 %v1416
        %v2579 = vunpack.c.l.b16 %v1417
        %v2580 = vunpack.c.h.b16 %v1417
        %v2581 = vunpack.c.l.b16 %v1418
        %v2582 = vunpack.c.h.b16 %v1418
        %v2583 = vunpack.c.l.b16 %v1419
        %v2584 = vunpack.c.h.b16 %v1419
        %v2585 = vunpack.c.l.b16 %v1420
        %v2586 = vunpack.c.h.b16 %v1420
        %v2587 = vunpack.c.l.b16 %v1421
        %v2588 = vunpack.c.h.b16 %v1421
        %v2589 = vunpack.c.l.b16 %v1422
        %v2590 = vunpack.c.h.b16 %v1422
        %v2591 = vunpack.c.l.b16 %v1423
        %v2592 = vunpack.c.h.b16 %v1423
        %v2593 = vunpack.c.l.b16 %v1424
        %v2594 = vunpack.c.h.b16 %v1424
        %v2595 = vunpack.c.l.b16 %v1425
        %v2596 = vunpack.c.h.b16 %v1425
        %v2597 = vunpack.c.l.b16 %v1426
        %v2598 = vunpack.c.h.b16 %v1426
        %v2599 = vunpack.c.l.b16 %v1427
        %v2600 = vunpack.c.h.b16 %v1427
        %v2601 = vunpack.c.l.b16 %v1428
        %v2602 = vunpack.c.h.b16 %v1428
        %v2603 = vunpack.c.l.b16 %v1429
        %v2604 = vunpack.c.h.b16 %v1429
        %v2605 = vunpack.c.l.b16 %v1430
        %v2606 = vunpack.c.h.b16 %v1430
        %v2607 = vunpack.c.l.b16 %v1431
        %v2608 = vunpack.c.h.b16 %v1431
        %v2609 = vunpack.c.l.b16 %v1432
        %v2610 = vunpack.c.h.b16 %v1432
        %v2611 = vunpack.c.l.b16 %v1433
        %v2612 = vunpack.c.h.b16 %v1433
        %v2613 = vunpack.c.l.b16 %v1434
        %v2614 = vunpack.c.h.b16 %v1434
        %v2615 = vunpack.c.l.b16 %v1435
        %v2616 = vunpack.c.h.b16 %v1435
        %v2617 = vunpack.c.l.b16 %v1436
        %v2618 = vunpack.c.h.b16 %v1436
        %v2619 = vunpack.c.l.b16 %v1437
        %v2620 = vunpack.c.h.b16 %v1437
        %v2621 = vunpack.c.l.b16 %v1438
        %v2622 = vunpack.c.h.b16 %v1438
        %v2623 = vunpack.c.l.b16 %v1439
        %v2624 = vunpack.c.h.b16 %v1439
        %v2625 = vunpack.c.l.b16 %v1440
        %v2626 = vunpack.c.h.b16 %v1440
        %v2627 = vunpack.c.l.b16 %v1441
        %v2628 = vunpack.c.h.b16 %v1441
        %v2629 = vunpack.c.l.b16 %v1442
        %v2630 = vunpack.c.h.b16 %v1442
        %v2631 = vunpack.c.l.b16 %v1443
        %v2632 = vunpack.c.h.b16 %v1443
        %v2633 = vunpack.c.l.b16 %v1444
        %v2634 = vunpack.c.h.b16 %v1444
        %v2635 = vunpack.c.l.b16 %v1445
        %v2636 = vunpack.c.h.b16 %v1445
        %v2637 = vunpack.c.l.b16 %v1446
        %v2638 = vunpack.c.h.b16 %v1446
        %v2639 = vunpack.c.l.b16 %v1447
        %v2640 = vunpack.c.h.b16 %v1447
        %v2641 = vunpack.c.l.b16 %v1448
        %v2642 = vunpack.c.h.b16 %v1448
        %v2643 = vunpack.c.l.b16 %v1449
        %v2644 = vunpack.c.h.b16 %v1449
        %v2645 = vunpack.c.l.b16 %v1450
        %v2646 = vunpack.c.h.b16 %v1450
        %v2647 = vunpack.c.l.b16 %v1451
        %v2648 = vunpack.c.h.b16 %v1451
        %v2649 = vunpack.c.l.b16 %v1452
        %v2650 = vunpack.c.h.b16 %v1452
        %v2651 = vunpack.c.l.b16 %v1453
        %v2652 = vunpack.c.h.b16 %v1453
        %v2653 = vunpack.c.l.b16 %v1454
        %v2654 = vunpack.c.h.b16 %v1454
        %v2655 = vunpack.c.l.b16 %v1455
        %v2656 = vunpack.c.h.b16 %v1455
        %v2657 = vunpack.c.l.b16 %v1456
        %v2658 = vunpack.c.h.b16 %v1456
        %v2659 = vunpack.c.l.b16 %v1457
        %v2660 = vunpack.c.h.b16 %v1457
        %v2661 = vunpack.c.l.b16 %v1458
        %v2662 = vunpack.c.h.b16 %v1458
        %v2663 = vunpack.c.l.b16 %v1459
        %v2664 = vunpack.c.h.b16 %v1459
        %v2665 = vunpack.c.l.b16 %v1460
        %v2666 = vunpack.c.h.b16 %v1460
        %v2667 = vunpack.c.l.b16 %v1461
        %v2668 = vunpack.c.h.b16 %v1461
        %v2669 = vunpack.c.l.b16 %v1462
        %v2670 = vunpack.c.h.b16 %v1462
        %v2671 = vunpack.c.l.b16 %v1463
        %v2672 = vunpack.c.h.b16 %v1463
        %v2673 = vunpack.c.l.b16 %v1464
        %v2674 = vunpack.c.h.b16 %v1464
        %v2675 = vunpack.c.l.b16 %v1465
        %v2676 = vunpack.c.h.b16 %v1465
        %v2677 = vunpack.c.l.b16 %v1466
        %v2678 = vunpack.c.h.b16 %v1466
        %v2679 = vunpack.c.l.b16 %v1467
        %v2680 = vunpack.c.h.b16 %v1467
        %v2681 = vunpack.c.l.b16 %v1468
        %v2682 = vunpack.c.h.b16 %v1468
        %v2683 = vunpack.c.l.b16 %v1469
        %v2684 = vunpack.c.h.b16 %v1469
        %v2685 = vunpack.c.l.b16 %v1470
        %v2686 = vunpack.c.h.b16 %v1470
        %v2687 = vunpack.c.l.b16 %v1471
        %v2688 = vunpack.c.h.b16 %v1471
        %v2689 = vunpack.c.l.b16 %v1472
        %v2690 = vunpack.c.h.b16 %v1472
        %v2691 = vunpack.c.l.b16 %v1473
        %v2692 = vunpack.c.h.b16 %v1473
        %v2693 = vunpack.c.l.b16 %v1474
        %v2694 = vunpack.c.h.b16 %v1474
        %v2695 = vunpack.c.l.b16 %v1475
        %v2696 = vunpack.c.h.b16 %v1475
        %v2697 = vunpack.c.l.b16 %v1476
        %v2698 = vunpack.c.h.b16 %v1476
        %v2699 = vunpack.c.l.b16 %v1477
        %v2700 = vunpack.c.h.b16 %v1477
        %v2701 = vunpack.c.l.b16 %v1478
        %v2702 = vunpack.c.h.b16 %v1478
        %v2703 = vunpack.c.l.b16 %v1479
        %v2704 = vunpack.c.h.b16 %v1479
        %v2705 = vunpack.c.l.b16 %v1480
        %v2706 = vunpack.c.h.b16 %v1480
        %v2707 = vunpack.c.l.b16 %v1481
        %v2708 = vunpack.c.h.b16 %v1481
        %v2709 = vunpack.c.l.b16 %v1482
        %v2710 = vunpack.c.h.b16 %v1482
        %v2711 = vunpack.c.l.b16 %v1483
        %v2712 = vunpack.c.h.b16 %v1483
        %v2713 = vunpack.c.l.b16 %v1484
        %v2714 = vunpack.c.h.b16 %v1484
        %v2715 = vunpack.c.l.b16 %v1485
        %v2716 = vunpack.c.h.b16 %v1485
        %v2717 = vunpack.c.l.b16 %v1486
        %v2718 = vunpack.c.h.b16 %v1486
        %v2719 = vunpack.c.l.b16 %v1487
        %v2720 = vunpack.c.h.b16 %v1487
        %v2721 = vunpack.c.l.b16 %v1488
        %v2722 = vunpack.c.h.b16 %v1488
        %v2723 = vunpack.c.l.b16 %v1489
        %v2724 = vunpack.c.h.b16 %v1489
        %v2725 = vunpack.c.l.b16 %v1490
        %v2726 = vunpack.c.h.b16 %v1490
        %v2727 = vunpack.c.l.b16 %v1491
        %v2728 = vunpack.c.h.b16 %v1491
        %v2729 = vunpack.c.l.b16 %v1492
        %v2730 = vunpack.c.h.b16 %v1492
        %v2731 = vunpack.c.l.b16 %v1493
        %v2732 = vunpack.c.h.b16 %v1493
        %v2733 = vunpack.c.l.b16 %v1494
        %v2734 = vunpack.c.h.b16 %v1494
        %v2735 = vunpack.c.l.b16 %v1495
        %v2736 = vunpack.c.h.b16 %v1495
        %v2737 = vunpack.c.l.b16 %v1496
        %v2738 = vunpack.c.h.b16 %v1496
        %v2739 = vunpack.c.l.b16 %v1497
        %v2740 = vunpack.c.h.b16 %v1497
        %v2741 = vunpack.c.l.b16 %v1498
        %v2742 = vunpack.c.h.b16 %v1498
        %v2743 = vunpack.c.l.b16 %v1499
        %v2744 = vunpack.c.h.b16 %v1499
        %v2745 = vunpack.c.l.b16 %v1500
        %v2746 = vunpack.c.h.b16 %v1500
        %v2747 = vunpack.c.l.b16 %v1501
        %v2748 = vunpack.c.h.b16 %v1501
        %v2749 = vunpack.c.l.b16 %v1502
        %v2750 = vunpack.c.h.b16 %v1502
        %v2751 = vunpack.c.l.b16 %v1503
        %v2752 = vunpack.c.h.b16 %v1503
        %v2753 = vunpack.c.l.b16 %v1504
        %v2754 = vunpack.c.h.b16 %v1504
        %v2755 = vunpack.c.l.b16 %v1505
        %v2756 = vunpack.c.h.b16 %v1505
        %v2757 = vunpack.c.l.b16 %v1506
        %v2758 = vunpack.c.h.b16 %v1506
        %v2759 = vunpack.c.l.b16 %v1507
        %v2760 = vunpack.c.h.b16 %v1507
        %v2761 = vunpack.c.l.b16 %v1508
        %v2762 = vunpack.c.h.b16 %v1508
        %v2763 = vunpack.c.l.b16 %v1509
        %v2764 = vunpack.c.h.b16 %v1509
        %v2765 = vunpack.c.l.b16 %v1510
        %v2766 = vunpack.c.h.b16 %v1510
        %v2767 = vunpack.c.l.b16 %v1511
        %v2768 = vunpack.c.h.b16 %v1511
        %v2769 = vunpack.c.l.b16 %v1512
        %v2770 = vunpack.c.h.b16 %v1512
        %v2771 = vunpack.c.l.b16 %v1513
        %v2772 = vunpack.c.h.b16 %v1513
        %v2773 = vunpack.c.l.b16 %v1514
        %v2774 = vunpack.c.h.b16 %v1514
        %v2775 = vunpack.c.l.b16 %v1515
        %v2776 = vunpack.c.h.b16 %v1515
        %v2777 = vunpack.c.l.b16 %v1516
        %v2778 = vunpack.c.h.b16 %v1516
        %v2779 = vunpack.c.l.b16 %v1517
        %v2780 = vunpack.c.h.b16 %v1517
        %v2781 = vunpack.c.l.b16 %v1518
        %v2782 = vunpack.c.h.b16 %v1518
        %v2783 = vunpack.c.l.b16 %v1519
        %v2784 = vunpack.c.h.b16 %v1519
        %v2785 = vunpack.c.l.b16 %v1520
        %v2786 = vunpack.c.h.b16 %v1520
        %v2787 = vunpack.c.l.b16 %v1521
        %v2788 = vunpack.c.h.b16 %v1521
        %v2789 = vunpack.c.l.b16 %v1522
        %v2790 = vunpack.c.h.b16 %v1522
        %v2791 = vunpack.c.l.b16 %v1523
        %v2792 = vunpack.c.h.b16 %v1523
        %v2793 = vunpack.c.l.b16 %v1524
        %v2794 = vunpack.c.h.b16 %v1524
        %v2795 = vunpack.c.l.b16 %v1525
        %v2796 = vunpack.c.h.b16 %v1525
        %v2797 = vunpack.c.l.b16 %v1526
        %v2798 = vunpack.c.h.b16 %v1526
        %v2799 = vunpack.c.l.b16 %v1527
        %v2800 = vunpack.c.h.b16 %v1527
        %v2801 = vunpack.c.l.b16 %v1528
        %v2802 = vunpack.c.h.b16 %v1528
        %v2803 = vunpack.c.l.b16 %v1529
        %v2804 = vunpack.c.h.b16 %v1529
        %v2805 = vunpack.c.l.b16 %v1530
        %v2806 = vunpack.c.h.b16 %v1530
        %v2807 = vunpack.c.l.b16 %v1531
        %v2808 = vunpack.c.h.b16 %v1531
        %v2809 = vunpack.c.l.b16 %v1532
        %v2810 = vunpack.c.h.b16 %v1532
        %v2811 = vunpack.c.l.b16 %v1533
        %v2812 = vunpack.c.h.b16 %v1533
        %v2813 = vunpack.c.l.b16 %v1534
        %v2814 = vunpack.c.h.b16 %v1534
        %v2815 = vunpack.c.l.b16 %v1535
        %v2816 = vunpack.c.h.b16 %v1535
        %v2817 = vunpack.c.l.b16 %v1536
        %v2818 = vunpack.c.h.b16 %v1536
        %v2819 = vunpack.c.l.b16 %v1537
        %v2820 = vunpack.c.h.b16 %v1537
        %v2821 = vunpack.c.l.b16 %v1538
        %v2822 = vunpack.c.h.b16 %v1538
        %v2823 = vunpack.c.l.b16 %v1539
        %v2824 = vunpack.c.h.b16 %v1539
        %v2825 = vunpack.c.l.b16 %v1540
        %v2826 = vunpack.c.h.b16 %v1540
        %v2827 = vunpack.c.l.b16 %v1541
        %v2828 = vunpack.c.h.b16 %v1541
        %v2829 = vunpack.c.l.b16 %v1542
        %v2830 = vunpack.c.h.b16 %v1542
        %v2831 = vunpack.c.l.b16 %v1543
        %v2832 = vunpack.c.h.b16 %v1543
        %v2833 = vunpack.c.l.b16 %v1544
        %v2834 = vunpack.c.h.b16 %v1544
        %v2835 = vunpack.c.l.b16 %v1545
        %v2836 = vunpack.c.h.b16 %v1545
        %v2837 = vunpack.c.l.b16 %v1546
        %v2838 = vunpack.c.h.b16 %v1546
        %v2839 = vunpack.c.l.b16 %v1547
        %v2840 = vunpack.c.h.b16 %v1547
        %v2841 = vunpack.c.l.b16 %v1548
        %v2842 = vunpack.c.h.b16 %v1548
        %v2843 = vunpack.c.l.b16 %v1549
        %v2844 = vunpack.c.h.b16 %v1549
        %v2845 = vunpack.c.l.b16 %v1550
        %v2846 = vunpack.c.h.b16 %v1550
        %v2847 = vunpack.c.l.b16 %v1551
        %v2848 = vunpack.c.h.b16 %v1551
        %v2849 = vunpack.c.l.b16 %v1552
        %v2850 = vunpack.c.h.b16 %v1552
        %v2851 = vunpack.c.l.b16 %v1553
        %v2852 = vunpack.c.h.b16 %v1553
        %v2853 = vunpack.c.l.b16 %v1554
        %v2854 = vunpack.c.h.b16 %v1554
        %v2855 = vunpack.c.l.b16 %v1555
        %v2856 = vunpack.c.h.b16 %v1555
        %v2857 = vunpack.c.l.b16 %v1556
        %v2858 = vunpack.c.h.b16 %v1556
        %v2859 = vunpack.c.l.b16 %v1557
        %v2860 = vunpack.c.h.b16 %v1557
        %v2861 = vunpack.c.l.b16 %v1558
        %v2862 = vunpack.c.h.b16 %v1558
        %v2863 = vunpack.c.l.b16 %v1559
        %v2864 = vunpack.c.h.b16 %v1559
        %v2865 = vunpack.c.l.b16 %v1560
        %v2866 = vunpack.c.h.b16 %v1560
        %v2867 = vunpack.c.l.b16 %v1561
        %v2868 = vunpack.c.h.b16 %v1561
        %v2869 = vunpack.c.l.b16 %v1562
        %v2870 = vunpack.c.h.b16 %v1562
        %v2871 = vunpack.c.l.b16 %v1563
        %v2872 = vunpack.c.h.b16 %v1563
        %v2873 = vunpack.c.l.b16 %v1564
        %v2874 = vunpack.c.h.b16 %v1564
        %v2875 = vunpack.c.l.b16 %v1565
        %v2876 = vunpack.c.h.b16 %v1565
        %v2877 = vunpack.c.l.b16 %v1566
        %v2878 = vunpack.c.h.b16 %v1566
        %v2879 = vunpack.c.l.b16 %v1567
        %v2880 = vunpack.c.h.b16 %v1567
        %v2881 = vunpack.c.l.b16 %v1568
        %v2882 = vunpack.c.h.b16 %v1568
        %v2883 = vunpack.c.l.b16 %v1569
        %v2884 = vunpack.c.h.b16 %v1569
        %v2885 = vunpack.c.l.b16 %v1570
        %v2886 = vunpack.c.h.b16 %v1570
        %v2887 = vunpack.c.l.b16 %v1571
        %v2888 = vunpack.c.h.b16 %v1571
        %v2889 = vunpack.c.l.b16 %v1572
        %v2890 = vunpack.c.h.b16 %v1572
        %v2891 = vunpack.c.l.b16 %v1573
        %v2892 = vunpack.c.h.b16 %v1573
        %v2893 = vunpack.c.l.b16 %v1574
        %v2894 = vunpack.c.h.b16 %v1574
        %v2895 = vunpack.c.l.b16 %v1575
        %v2896 = vunpack.c.h.b16 %v1575
        %v2897 = vunpack.c.l.b16 %v1576
        %v2898 = vunpack.c.h.b16 %v1576
        %v2899 = vunpack.c.l.b16 %v1577
        %v2900 = vunpack.c.h.b16 %v1577
        %v2901 = vunpack.c.l.b16 %v1578
        %v2902 = vunpack.c.h.b16 %v1578
        %v2903 = vunpack.c.l.b16 %v1579
        %v2904 = vunpack.c.h.b16 %v1579
        %v2905 = vunpack.c.l.b16 %v1580
        %v2906 = vunpack.c.h.b16 %v1580
        %v2907 = vunpack.c.l.b16 %v1581
        %v2908 = vunpack.c.h.b16 %v1581
        %v2909 = vunpack.c.l.b16 %v1582
        %v2910 = vunpack.c.h.b16 %v1582
        %v2911 = vunpack.c.l.b16 %v1583
        %v2912 = vunpack.c.h.b16 %v1583
        %v2913 = vunpack.c.l.b16 %v1584
        %v2914 = vunpack.c.h.b16 %v1584
        %v2915 = vunpack.c.l.b16 %v1585
        %v2916 = vunpack.c.h.b16 %v1585
        %v2917 = vunpack.c.l.b16 %v1586
        %v2918 = vunpack.c.h.b16 %v1586
        %v2919 = vunpack.c.l.b16 %v1587
        %v2920 = vunpack.c.h.b16 %v1587
        %v2921 = vunpack.c.l.b16 %v1588
        %v2922 = vunpack.c.h.b16 %v1588
        %v2923 = vunpack.c.l.b16 %v1589
        %v2924 = vunpack.c.h.b16 %v1589
        %v2925 = vunpack.c.l.b16 %v1590
        %v2926 = vunpack.c.h.b16 %v1590
        %v2927 = vunpack.c.l.b16 %v1591
        %v2928 = vunpack.c.h.b16 %v1591
        %v2929 = vunpack.c.l.b16 %v1592
        %v2930 = vunpack.c.h.b16 %v1592
        %v2931 = vunpack.c.l.b16 %v1593
        %v2932 = vunpack.c.h.b16 %v1593
        %v2933 = vunpack.c.l.b16 %v1594
        %v2934 = vunpack.c.h.b16 %v1594
        %v2935 = vunpack.c.l.b16 %v1595
        %v2936 = vunpack.c.h.b16 %v1595
        %v2937 = vunpack.c.l.b16 %v1596
        %v2938 = vunpack.c.h.b16 %v1596
        %v2939 = vunpack.c.l.b16 %v1597
        %v2940 = vunpack.c.h.b16 %v1597
        %v2941 = vunpack.c.l.b16 %v1598
        %v2942 = vunpack.c.h.b16 %v1598
        %v2943 = vunpack.c.l.b16 %v1599
        %v2944 = vunpack.c.h.b16 %v1599
        %v2945 = vunpack.c.l.b16 %v1600
        %v2946 = vunpack.c.h.b16 %v1600
        %v2947 = vunpack.c.l.b16 %v1601
        %v2948 = vunpack.c.h.b16 %v1601
        %v2949 = vunpack.c.l.b16 %v1602
        %v2950 = vunpack.c.h.b16 %v1602
        %v2951 = vunpack.c.l.b16 %v1603
        %v2952 = vunpack.c.h.b16 %v1603
        %v2953 = vunpack.c.l.b16 %v1604
        %v2954 = vunpack.c.h.b16 %v1604
        %v2955 = vunpack.c.l.b16 %v1605
        %v2956 = vunpack.c.h.b16 %v1605
        %v2957 = vunpack.c.l.b16 %v1606
        %v2958 = vunpack.c.h.b16 %v1606
        %v2959 = vunpack.c.l.b16 %v1607
        %v2960 = vunpack.c.h.b16 %v1607
        %v2961 = vunpack.c.l.b16 %v1608
        %v2962 = vunpack.c.h.b16 %v1608
        %v2963 = vunpack.c.l.b16 %v1609
        %v2964 = vunpack.c.h.b16 %v1609
        %v2965 = vunpack.c.l.b16 %v1610
        %v2966 = vunpack.c.h.b16 %v1610
        %v2967 = vunpack.c.l.b16 %v1611
        %v2968 = vunpack.c.h.b16 %v1611
        %v2969 = vunpack.c.l.b16 %v1612
        %v2970 = vunpack.c.h.b16 %v1612
        %v2971 = vunpack.c.l.b16 %v1613
        %v2972 = vunpack.c.h.b16 %v1613
        %v2973 = vunpack.c.l.b16 %v1614
        %v2974 = vunpack.c.h.b16 %v1614
        %v2975 = vunpack.c.l.b16 %v1615
        %v2976 = vunpack.c.h.b16 %v1615
        %v2977 = vunpack.c.l.b16 %v1616
        %v2978 = vunpack.c.h.b16 %v1616
        %v2979 = vunpack.c.l.b16 %v1617
        %v2980 = vunpack.c.h.b16 %v1617
        %v2981 = vunpack.c.l.b16 %v1618
        %v2982 = vunpack.c.h.b16 %v1618
        %v2983 = vunpack.c.l.b16 %v1619
        %v2984 = vunpack.c.h.b16 %v1619
        %v2985 = vunpack.c.l.b16 %v1620
        %v2986 = vunpack.c.h.b16 %v1620
        %v2987 = vunpack.c.l.b16 %v1621
        %v2988 = vunpack.c.h.b16 %v1621
        %v2989 = vunpack.c.l.b16 %v1622
        %v2990 = vunpack.c.h.b16 %v1622
        %v2991 = vunpack.c.l.b16 %v1623
        %v2992 = vunpack.c.h.b16 %v1623
        %v2993 = vunpack.c.l.b16 %v1624
        %v2994 = vunpack.c.h.b16 %v1624
        %v2995 = vunpack.c.l.b16 %v1625
        %v2996 = vunpack.c.h.b16 %v1625
        %v2997 = vunpack.c.l.b16 %v1626
        %v2998 = vunpack.c.h.b16 %v1626
        %v2999 = vunpack.c.l.b16 %v1627
        %v3000 = vunpack.c.h.b16 %v1627
        %v3001 = vunpack.c.l.b16 %v1628
        %v3002 = vunpack.c.h.b16 %v1628
        %v3003 = vunpack.c.l.b16 %v1629
        %v3004 = vunpack.c.h.b16 %v1629
        %v3005 = vunpack.c.l.b16 %v1630
        %v3006 = vunpack.c.h.b16 %v1630
        %v3007 = vunpack.c.l.b16 %v1631
        %v3008 = vunpack.c.h.b16 %v1631
        %v3009 = vunpack.c.l.b16 %v1632
        %v3010 = vunpack.c.h.b16 %v1632
        %v3011 = vunpack.c.l.b16 %v1633
        %v3012 = vunpack.c.h.b16 %v1633
        %v3013 = vunpack.c.l.b16 %v1634
        %v3014 = vunpack.c.h.b16 %v1634
        %v3015 = vunpack.c.l.b16 %v1635
        %v3016 = vunpack.c.h.b16 %v1635
        %v3017 = vunpack.c.l.b16 %v1636
        %v3018 = vunpack.c.h.b16 %v1636
        %v3019 = vunpack.c.l.b16 %v1637
        %v3020 = vunpack.c.h.b16 %v1637
        %v3021 = vunpack.c.l.b16 %v1638
        %v3022 = vunpack.c.h.b16 %v1638
        %v3023 = vunpack.c.l.b16 %v1639
        %v3024 = vunpack.c.h.b16 %v1639
        %v3025 = vunpack.c.l.b16 %v1640
        %v3026 = vunpack.c.h.b16 %v1640
        %v3027 = vunpack.c.l.b16 %v1641
        %v3028 = vunpack.c.h.b16 %v1641
        %v3029 = vunpack.c.l.b16 %v1642
        %v3030 = vunpack.c.h.b16 %v1642
        %v3031 = vunpack.c.l.b16 %v1643
        %v3032 = vunpack.c.h.b16 %v1643
        %v3033 = vunpack.c.l.b16 %v1644
        %v3034 = vunpack.c.h.b16 %v1644
        %v3035 = vunpack.c.l.b16 %v1645
        %v3036 = vunpack.c.h.b16 %v1645
        %v3037 = vunpack.c.l.b16 %v1646
        %v3038 = vunpack.c.h.b16 %v1646
        %v3039 = vunpack.c.l.b16 %v1647
        %v3040 = vunpack.c.h.b16 %v1647
        %v3041 = vunpack.c.l.b16 %v1648
        %v3042 = vunpack.c.h.b16 %v1648
        %v3043 = vunpack.c.l.b16 %v1649
        %v3044 = vunpack.c.h.b16 %v1649
        %v3045 = vunpack.c.l.b16 %v1650
        %v3046 = vunpack.c.h.b16 %v1650
        %v3047 = vunpack.c.l.b16 %v1651
        %v3048 = vunpack.c.h.b16 %v1651
        %v3049 = vunpack.c.l.b16 %v1652
        %v3050 = vunpack.c.h.b16 %v1652
        %v3051 = vunpack.c.l.b16 %v1653
        %v3052 = vunpack.c.h.b16 %v1653
        %v3053 = vunpack.c.l.b16 %v1654
        %v3054 = vunpack.c.h.b16 %v1654
        %v3055 = vunpack.c.l.b16 %v1655
        %v3056 = vunpack.c.h.b16 %v1655
        %v3057 = vunpack.c.l.b16 %v1656
        %v3058 = vunpack.c.h.b16 %v1656
        %v3059 = vunpack.c.l.b16 %v1657
        %v3060 = vunpack.c.h.b16 %v1657
        %v3061 = vunpack.c.l.b16 %v1658
        %v3062 = vunpack.c.h.b16 %v1658
        %v3063 = vunpack.c.l.b16 %v1659
        %v3064 = vunpack.c.h.b16 %v1659
        %v3065 = vunpack.c.l.b16 %v1660
        %v3066 = vunpack.c.h.b16 %v1660
        %v3067 = vunpack.c.l.b16 %v1661
        %v3068 = vunpack.c.h.b16 %v1661
        %v3069 = vunpack.c.l.b16 %v1662
        %v3070 = vunpack.c.h.b16 %v1662
        %v3071 = vunpack.c.l.b16 %v1663
        %v3072 = vunpack.c.h.b16 %v1663
        %v3073 = vunpack.c.l.b16 %v1664
        %v3074 = vunpack.c.h.b16 %v1664
        %v3075 = vunpack.c.l.b16 %v1665
        %v3076 = vunpack.c.h.b16 %v1665
        %v3077 = vunpack.c.l.b16 %v1666
        %v3078 = vunpack.c.h.b16 %v1666
        %v3079 = vunpack.c.l.b16 %v1667
        %v3080 = vunpack.c.h.b16 %v1667
        %v3081 = vunpack.c.l.b16 %v1668
        %v3082 = vunpack.c.h.b16 %v1668
        %v3083 = vunpack.c.l.b16 %v1669
        %v3084 = vunpack.c.h.b16 %v1669
        %v3085 = vunpack.c.l.b16 %v1670
        %v3086 = vunpack.c.h.b16 %v1670
        %v3087 = vunpack.c.l.b16 %v1671
        %v3088 = vunpack.c.h.b16 %v1671
        %v3089 = vunpack.c.l.b16 %v1672
        %v3090 = vunpack.c.h.b16 %v1672
        %v3091 = vunpack.c.l.b16 %v1673
        %v3092 = vunpack.c.h.b16 %v1673
        %v3093 = vunpack.c.l.b16 %v1674
        %v3094 = vunpack.c.h.b16 %v1674
        %v3095 = vunpack.c.l.b16 %v1675
        %v3096 = vunpack.c.h.b16 %v1675
        %v3097 = vunpack.c.l.b16 %v1676
        %v3098 = vunpack.c.h.b16 %v1676
        %v3099 = vunpack.c.l.b16 %v1677
        %v3100 = vunpack.c.h.b16 %v1677
        %v3101 = vunpack.c.l.b16 %v1678
        %v3102 = vunpack.c.h.b16 %v1678
        %v3103 = vunpack.c.l.b16 %v1679
        %v3104 = vunpack.c.h.b16 %v1679
        %v3105 = vunpack.c.l.b16 %v1680
        %v3106 = vunpack.c.h.b16 %v1680
        %v3107 = vunpack.c.l.b16 %v1681
        %v3108 = vunpack.c.h.b16 %v1681
        %v3109 = vunpack.c.l.b16 %v1682
        %v3110 = vunpack.c.h.b16 %v1682
        %v3111 = vunpack.c.l.b16 %v1683
        %v3112 = vunpack.c.h.b16 %v1683
        %v3113 = vunpack.c.l.b16 %v1684
        %v3114 = vunpack.c.h.b16 %v1684
        %v3115 = vunpack.c.l.b16 %v1685
        %v3116 = vunpack.c.h.b16 %v1685
        %v3117 = vunpack.c.l.b16 %v1686
        %v3118 = vunpack.c.h.b16 %v1686
        %v3119 = vunpack.c.l.b16 %v1687
        %v3120 = vunpack.c.h.b16 %v1687
        %v3121 = vunpack.c.l.b16 %v1688
        %v3122 = vunpack.c.h.b16 %v1688
        %v3123 = vunpack.c.l.b16 %v1689
        %v3124 = vunpack.c.h.b16 %v1689
        %v3125 = vunpack.c.l.b16 %v1690
        %v3126 = vunpack.c.h.b16 %v1690
        %v3127 = vunpack.c.l.b16 %v1691
        %v3128 = vunpack.c.h.b16 %v1691
        %v3129 = vunpack.c.l.b16 %v1692
        %v3130 = vunpack.c.h.b16 %v1692
        %v3131 = vunpack.c.l.b16 %v1693
        %v3132 = vunpack.c.h.b16 %v1693
        %v3133 = vunpack.c.l.b16 %v1694
        %v3134 = vunpack.c.h.b16 %v1694
        %v3135 = vunpack.c.l.b16 %v1695
        %v3136 = vunpack.c.h.b16 %v1695
        %v3137 = vunpack.c.l.b16 %v1696
        %v3138 = vunpack.c.h.b16 %v1696
        %v3139 = vunpack.c.l.b16 %v1697
        %v3140 = vunpack.c.h.b16 %v1697
        %v3141 = vunpack.c.l.b16 %v1698
        %v3142 = vunpack.c.h.b16 %v1698
        %v3143 = vunpack.c.l.b16 %v1699
        %v3144 = vunpack.c.h.b16 %v1699
        %v3145 = vunpack.c.l.b16 %v1700
        %v3146 = vunpack.c.h.b16 %v1700
        %v3147 = vunpack.c.l.b16 %v1701
        %v3148 = vunpack.c.h.b16 %v1701
        %v3149 = vunpack.c.l.b16 %v1702
        %v3150 = vunpack.c.h.b16 %v1702
        %v3151 = vunpack.c.l.b16 %v1703
        %v3152 = vunpack.c.h.b16 %v1703
        %v3153 = vunpack.c.l.b16 %v1704
        %v3154 = vunpack.c.h.b16 %v1704
        %v3155 = vunpack.c.l.b16 %v1705
        %v3156 = vunpack.c.h.b16 %v1705
        %v3157 = vunpack.c.l.b16 %v1706
        %v3158 = vunpack.c.h.b16 %v1706
        %v3159 = vunpack.c.l.b16 %v1707
        %v3160 = vunpack.c.h.b16 %v1707
        %v3161 = vunpack.c.l.b16 %v1708
        %v3162 = vunpack.c.h.b16 %v1708
        %v3163 = vunpack.c.l.b16 %v1709
        %v3164 = vunpack.c.h.b16 %v1709
        %v3165 = vunpack.c.l.b16 %v1710
        %v3166 = vunpack.c.h.b16 %v1710
        %v3167 = vunpack.c.l.b16 %v1711
        %v3168 = vunpack.c.h.b16 %v1711
        %v3169 = vunpack.c.l.b16 %v1712
        %v3170 = vunpack.c.h.b16 %v1712
        %v3171 = vunpack.c.l.b16 %v1713
        %v3172 = vunpack.c.h.b16 %v1713
        %v3173 = vunpack.c.l.b16 %v1714
        %v3174 = vunpack.c.h.b16 %v1714
        %v3175 = vunpack.c.l.b16 %v1715
        %v3176 = vunpack.c.h.b16 %v1715
        %v3177 = vunpack.c.l.b16 %v1716
        %v3178 = vunpack.c.h.b16 %v1716
        %v3179 = vunpack.c.l.b16 %v1717
        %v3180 = vunpack.c.h.b16 %v1717
        %v3181 = vunpack.c.l.b16 %v1718
        %v3182 = vunpack.c.h.b16 %v1718
        %v3183 = vunpack.c.l.b16 %v1719
        %v3184 = vunpack.c.h.b16 %v1719
        %v3185 = vunpack.c.l.b16 %v1720
        %v3186 = vunpack.c.h.b16 %v1720
        %v3187 = vunpack.c.l.b16 %v1721
        %v3188 = vunpack.c.h.b16 %v1721
        %v3189 = vunpack.c.l.b16 %v1722
        %v3190 = vunpack.c.h.b16 %v1722
        %v3191 = vunpack.c.l.b16 %v1723
        %v3192 = vunpack.c.h.b16 %v1723
        %v3193 = vunpack.c.l.b16 %v1724
        %v3194 = vunpack.c.h.b16 %v1724
        %v3195 = vunpack.c.l.b16 %v1725
        %v3196 = vunpack.c.h.b16 %v1725
        %v3197 = vunpack.c.l.b16 %v1726
        %v3198 = vunpack.c.h.b16 %v1726
        %v3199 = vunpack.c.l.b16 %v1727
        %v3200 = vunpack.c.h.b16 %v1727
        %v3201 = vunpack.c.l.b16 %v1728
        %v3202 = vunpack.c.h.b16 %v1728
        %v3203 = vunpack.c.l.b16 %v1729
        %v3204 = vunpack.c.h.b16 %v1729
        %v3205 = vunpack.c.l.b16 %v1730
        %v3206 = vunpack.c.h.b16 %v1730
        %v3207 = vunpack.c.l.b16 %v1731
        %v3208 = vunpack.c.h.b16 %v1731
        %v3209 = vunpack.c.l.b16 %v1732
        %v3210 = vunpack.c.h.b16 %v1732
        %v3211 = vunpack.c.l.b16 %v1733
        %v3212 = vunpack.c.h.b16 %v1733
        %v3213 = vunpack.c.l.b16 %v1734
        %v3214 = vunpack.c.h.b16 %v1734
        %v3215 = vunpack.c.l.b16 %v1735
        %v3216 = vunpack.c.h.b16 %v1735
        %v3217 = vunpack.c.l.b16 %v1736
        %v3218 = vunpack.c.h.b16 %v1736
        %v3219 = vunpack.c.l.b16 %v1737
        %v3220 = vunpack.c.h.b16 %v1737
        %v3221 = vunpack.c.l.b16 %v1738
        %v3222 = vunpack.c.h.b16 %v1738
        %v3223 = vunpack.c.l.b16 %v1739
        %v3224 = vunpack.c.h.b16 %v1739
        %v3225 = vunpack.c.l.b16 %v1740
        %v3226 = vunpack.c.h.b16 %v1740
        %v3227 = vunpack.c.l.b16 %v1741
        %v3228 = vunpack.c.h.b16 %v1741
        %v3229 = vunpack.c.l.b16 %v1742
        %v3230 = vunpack.c.h.b16 %v1742
        %v3231 = vunpack.c.l.b16 %v1743
        %v3232 = vunpack.c.h.b16 %v1743
        %v3233 = vunpack.c.l.b16 %v1744
        %v3234 = vunpack.c.h.b16 %v1744
        %v3235 = vunpack.c.l.b16 %v1745
        %v3236 = vunpack.c.h.b16 %v1745
        %v3237 = vunpack.c.l.b16 %v1746
        %v3238 = vunpack.c.h.b16 %v1746
        %v3239 = vunpack.c.l.b16 %v1747
        %v3240 = vunpack.c.h.b16 %v1747
        %v3241 = vunpack.c.l.b16 %v1748
        %v3242 = vunpack.c.h.b16 %v1748
        %v3243 = vunpack.c.l.b16 %v1749
        %v3244 = vunpack.c.h.b16 %v1749
        %v3245 = vunpack.c.l.b16 %v1750
        %v3246 = vunpack.c.h.b16 %v1750
        %v3247 = vunpack.c.l.b16 %v1751
        %v3248 = vunpack.c.h.b16 %v1751
        %v3249 = vunpack.c.l.b16 %v1752
        %v3250 = vunpack.c.h.b16 %v1752
        %v3251 = vunpack.c.l.b16 %v1753
        %v3252 = vunpack.c.h.b16 %v1753
        %v3253 = vunpack.c.l.b16 %v1754
        %v3254 = vunpack.c.h.b16 %v1754
        %v3255 = vunpack.c.l.b16 %v1755
        %v3256 = vunpack.c.h.b16 %v1755
        %v3257 = vunpack.c.l.b16 %v1756
        %v3258 = vunpack.c.h.b16 %v1756
        %v3259 = vunpack.c.l.b16 %v1757
        %v3260 = vunpack.c.h.b16 %v1757
        %v3261 = vunpack.c.l.b16 %v1758
        %v3262 = vunpack.c.h.b16 %v1758
        %v3263 = vunpack.c.l.b16 %v1759
        %v3264 = vunpack.c.h.b16 %v1759
        %v3265 = vunpack.c.l.b16 %v1760
        %v3266 = vunpack.c.h.b16 %v1760
        %v3267 = vunpack.c.l.b16 %v1761
        %v3268 = vunpack.c.h.b16 %v1761
        %v3269 = vunpack.c.l.b16 %v1762
        %v3270 = vunpack.c.h.b16 %v1762
        %v3271 = vunpack.c.l.b16 %v1763
        %v3272 = vunpack.c.h.b16 %v1763
        %v3273 = vunpack.c.l.b16 %v1764
        %v3274 = vunpack.c.h.b16 %v1764
        %v3275 = vunpack.c.l.b16 %v1765
        %v3276 = vunpack.c.h.b16 %v1765
        %v3277 = vunpack.c.l.b16 %v1766
        %v3278 = vunpack.c.h.b16 %v1766
        %v3279 = vunpack.c.l.b16 %v1767
        %v3280 = vunpack.c.h.b16 %v1767
        %v3281 = vunpack.c.l.b16 %v1768
        %v3282 = vunpack.c.h.b16 %v1768
        %v3283 = vunpack.c.l.b16 %v1769
        %v3284 = vunpack.c.h.b16 %v1769
        %v3285 = vunpack.c.l.b16 %v1770
        %v3286 = vunpack.c.h.b16 %v1770
        %v3287 = vunpack.c.l.b16 %v1771
        %v3288 = vunpack.c.h.b16 %v1771
        %v3289 = vunpack.c.l.b16 %v1772
        %v3290 = vunpack.c.h.b16 %v1772
        %v3291 = vunpack.c.l.b16 %v1773
        %v3292 = vunpack.c.h.b16 %v1773
        %v3293 = vunpack.c.l.b16 %v1774
        %v3294 = vunpack.c.h.b16 %v1774
        %v3295 = vunpack.c.l.b16 %v1775
        %v3296 = vunpack.c.h.b16 %v1775
        %v3297 = vunpack.c.l.b16 %v1776
        %v3298 = vunpack.c.h.b16 %v1776
        %v3299 = vunpack.c.l.b16 %v1777
        %v3300 = vunpack.c.h.b16 %v1777
        %v3301 = vunpack.c.l.b16 %v1778
        %v3302 = vunpack.c.h.b16 %v1778
        %v3303 = vunpack.c.l.b16 %v1779
        %v3304 = vunpack.c.h.b16 %v1779
        %v3305 = vunpack.c.l.b16 %v1780
        %v3306 = vunpack.c.h.b16 %v1780
        %v3307 = vunpack.c.l.b16 %v1781
        %v3308 = vunpack.c.h.b16 %v1781
        %v3309 = vunpack.c.l.b16 %v1782
        %v3310 = vunpack.c.h.b16 %v1782
        %v3311 = vunpack.c.l.b16 %v1783
        %v3312 = vunpack.c.h.b16 %v1783
        %v3313 = vunpack.c.l.b16 %v1784
        %v3314 = vunpack.c.h.b16 %v1784
        %v3315 = vunpack.c.l.b16 %v1785
        %v3316 = vunpack.c.h.b16 %v1785
        %v3317 = vunpack.c.l.b16 %v1786
        %v3318 = vunpack.c.h.b16 %v1786
        %v3319 = vunpack.c.l.b16 %v1787
        %v3320 = vunpack.c.h.b16 %v1787
        %v3321 = vunpack.c.l.b16 %v1788
        %v3322 = vunpack.c.h.b16 %v1788
        %v3323 = vunpack.c.l.b16 %v1789
        %v3324 = vunpack.c.h.b16 %v1789
        %v3325 = vunpack.c.l.b16 %v1790
        %v3326 = vunpack.c.h.b16 %v1790
        %v3327 = vunpack.c.l.b16 %v1791
        %v3328 = vunpack.c.h.b16 %v1791
        %v3329 = vunpack.c.l.b16 %v1792
        %v3330 = vunpack.c.h.b16 %v1792
        %v3331 = vunpack.c.l.b16 %v1793
        %v3332 = vunpack.c.h.b16 %v1793
        %v3333 = vunpack.c.l.b16 %v1794
        %v3334 = vunpack.c.h.b16 %v1794
        %v3335 = vunpack.c.l.b16 %v1795
        %v3336 = vunpack.c.h.b16 %v1795
        %v3337 = vunpack.c.l.b16 %v1796
        %v3338 = vunpack.c.h.b16 %v1796
        %v3339 = vunpack.c.l.b16 %v1797
        %v3340 = vunpack.c.h.b16 %v1797
        %v3341 = vunpack.c.l.b16 %v1798
        %v3342 = vunpack.c.h.b16 %v1798
        %v3343 = vunpack.c.l.b16 %v1799
        %v3344 = vunpack.c.h.b16 %v1799
        %v3345 = vunpack.c.l.b16 %v1800
        %v3346 = vunpack.c.h.b16 %v1800
        %v3347 = vunpack.c.l.b16 %v1801
        %v3348 = vunpack.c.h.b16 %v1801
        %v3349 = vunpack.c.l.b16 %v1802
        %v3350 = vunpack.c.h.b16 %v1802
        %v3351 = vunpack.c.l.b16 %v1803
        %v3352 = vunpack.c.h.b16 %v1803
        %v3353 = vunpack.c.l.b16 %v1804
        %v3354 = vunpack.c.h.b16 %v1804
        %v3355 = vunpack.c.l.b16 %v1805
        %v3356 = vunpack.c.h.b16 %v1805
        %v3357 = vunpack.c.l.b16 %v1806
        %v3358 = vunpack.c.h.b16 %v1806
        %v3359 = vunpack.c.l.b16 %v1807
        %v3360 = vunpack.c.h.b16 %v1807
        %v3361 = vunpack.c.l.b16 %v1808
        %v3362 = vunpack.c.h.b16 %v1808
        %v3363 = vunpack.c.l.b16 %v1809
        %v3364 = vunpack.c.h.b16 %v1809
        %v3365 = vunpack.c.l.b16 %v1810
        %v3366 = vunpack.c.h.b16 %v1810
        %v3367 = vunpack.c.l.b16 %v1811
        %v3368 = vunpack.c.h.b16 %v1811
        %v3369 = vunpack.c.l.b16 %v1812
        %v3370 = vunpack.c.h.b16 %v1812
        %v3371 = vunpack.c.l.b16 %v1813
        %v3372 = vunpack.c.h.b16 %v1813
        %v3373 = vunpack.c.l.b16 %v1814
        %v3374 = vunpack.c.h.b16 %v1814
        %v3375 = vunpack.c.l.b16 %v1815
        %v3376 = vunpack.c.h.b16 %v1815
        %v3377 = vunpack.c.l.b16 %v1816
        %v3378 = vunpack.c.h.b16 %v1816
        %v3379 = vunpack.c.l.b16 %v1817
        %v3380 = vunpack.c.h.b16 %v1817
        %v3381 = vunpack.c.l.b16 %v1818
        %v3382 = vunpack.c.h.b16 %v1818
        %v3383 = vunpack.c.l.b16 %v1819
        %v3384 = vunpack.c.h.b16 %v1819
        %v3385 = vunpack.c.l.b16 %v1820
        %v3386 = vunpack.c.h.b16 %v1820
        %v3387 = vunpack.c.l.b16 %v1821
        %v3388 = vunpack.c.h.b16 %v1821
        %v3389 = vunpack.c.l.b16 %v1822
        %v3390 = vunpack.c.h.b16 %v1822
        %v3391 = vunpack.c.l.b16 %v1823
        %v3392 = vunpack.c.h.b16 %v1823
        %v3393 = vunpack.c.l.b16 %v1824
        %v3394 = vunpack.c.h.b16 %v1824
        %v3395 = vunpack.c.l.b16 %v1825
        %v3396 = vunpack.c.h.b16 %v1825
        %v3397 = vunpack.c.l.b16 %v1826
        %v3398 = vunpack.c.h.b16 %v1826
        %v3399 = vunpack.c.l.b16 %v1827
        %v3400 = vunpack.c.h.b16 %v1827
        %v3401 = vunpack.c.l.b16 %v1828
        %v3402 = vunpack.c.h.b16 %v1828
        %v3403 = vunpack.c.l.b16 %v1829
        %v3404 = vunpack.c.h.b16 %v1829
        %v3405 = vunpack.c.l.b16 %v1830
        %v3406 = vunpack.c.h.b16 %v1830
        %v3407 = vunpack.c.l.b16 %v1831
        %v3408 = vunpack.c.h.b16 %v1831
        %v3409 = vunpack.c.l.b16 %v1832
        %v3410 = vunpack.c.h.b16 %v1832
        %v3411 = vunpack.c.l.b16 %v1833
        %v3412 = vunpack.c.h.b16 %v1833
        %v3413 = vunpack.c.l.b16 %v1834
        %v3414 = vunpack.c.h.b16 %v1834
        %v3415 = vunpack.c.l.b16 %v1835
        %v3416 = vunpack.c.h.b16 %v1835
        %v3417 = vunpack.c.l.b16 %v1836
        %v3418 = vunpack.c.h.b16 %v1836
        %v3419 = vunpack.c.l.b16 %v1837
        %v3420 = vunpack.c.h.b16 %v1837
        %v3421 = vunpack.c.l.b16 %v1838
        %v3422 = vunpack.c.h.b16 %v1838
        %v3423 = vunpack.c.l.b16 %v1839
        %v3424 = vunpack.c.h.b16 %v1839
        %v3425 = vunpack.c.l.b16 %v1840
        %v3426 = vunpack.c.h.b16 %v1840
        %v3427 = vunpack.c.l.b16 %v1841
        %v3428 = vunpack.c.h.b16 %v1841
        %v3429 = vunpack.c.l.b16 %v1842
        %v3430 = vunpack.c.h.b16 %v1842
        %v3431 = vunpack.c.l.b16 %v1843
        %v3432 = vunpack.c.h.b16 %v1843
        %v3433 = vunpack.c.l.b16 %v1844
        %v3434 = vunpack.c.h.b16 %v1844
        %v3435 = vunpack.c.l.b16 %v1845
        %v3436 = vunpack.c.h.b16 %v1845
        %v3437 = vunpack.c.l.b16 %v1846
        %v3438 = vunpack.c.h.b16 %v1846
        %v3439 = vunpack.c.l.b16 %v1847
        %v3440 = vunpack.c.h.b16 %v1847
        %v3441 = vunpack.c.l.b16 %v1848
        %v3442 = vunpack.c.h.b16 %v1848
        %v3443 = vunpack.c.l.b16 %v1849
        %v3444 = vunpack.c.h.b16 %v1849
        %v3445 = vunpack.c.l.b16 %v1850
        %v3446 = vunpack.c.h.b16 %v1850
        %v3447 = vunpack.c.l.b16 %v1851
        %v3448 = vunpack.c.h.b16 %v1851
        %v3449 = vunpack.c.l.b16 %v1852
        %v3450 = vunpack.c.h.b16 %v1852
        %v3451 = vunpack.c.l.b16 %v1853
        %v3452 = vunpack.c.h.b16 %v1853
        %v3453 = vunpack.c.l.b16 %v1854
        %v3454 = vunpack.c.h.b16 %v1854
        %v3455 = vunpack.c.l.b16 %v1855
        %v3456 = vunpack.c.h.b16 %v1855
        %v3457 = vunpack.c.l.b16 %v1856
        %v3458 = vunpack.c.h.b16 %v1856
        %v3459 = vunpack.c.l.b16 %v1857
        %v3460 = vunpack.c.h.b16 %v1857
        %v3461 = vunpack.c.l.b16 %v1858
        %v3462 = vunpack.c.h.b16 %v1858
        %v3463 = vunpack.c.l.b16 %v1859
        %v3464 = vunpack.c.h.b16 %v1859
        %v3465 = vunpack.c.l.b16 %v1860
        %v3466 = vunpack.c.h.b16 %v1860
        %v3467 = vpack.c.b16 %v2451, %v2443
        %v3468 = vpack.c.b16 %v2452, %v2444
        %v3469 = vpack.c.b16 %v2453, %v2445
        %v3470 = vpack.c.b16 %v2454, %v2446
        %v3471 = vpack.c.b16 %v2455, %v2447
        %v3472 = vpack.c.b16 %v2456, %v2448
        %v3473 = vpack.c.b16 %v2457, %v2449
        %v3474 = vpack.c.b16 %v2458, %v2450
        %v3475 = vpack.c.b16 %v2467, %v2459
        %v3476 = vpack.c.b16 %v2468, %v2460
        %v3477 = vpack.c.b16 %v2469, %v2461
        %v3478 = vpack.c.b16 %v2470, %v2462
        %v3479 = vpack.c.b16 %v2471, %v2463
        %v3480 = vpack.c.b16 %v2472, %v2464
        %v3481 = vpack.c.b16 %v2473, %v2465
        %v3482 = vpack.c.b16 %v2474, %v2466
        %v3483 = vpack.c.b16 %v2483, %v2475
        %v3484 = vpack.c.b16 %v2484, %v2476
        %v3485 = vpack.c.b16 %v2485, %v2477
        %v3486 = vpack.c.b16 %v2486, %v2478
        %v3487 = vpack.c.b16 %v2487, %v2479
        %v3488 = vpack.c.b16 %v2488, %v2480
        %v3489 = vpack.c.b16 %v2489, %v2481
        %v3490 = vpack.c.b16 %v2490, %v2482
        %v3491 = vpack.c.b16 %v2499, %v2491
        %v3492 = vpack.c.b16 %v2500, %v2492
        %v3493 = vpack.c.b16 %v2501, %v2493
        %v3494 = vpack.c.b16 %v2502, %v2494
        %v3495 = vpack.c.b16 %v2503, %v2495
        %v3496 = vpack.c.b16 %v2504, %v2496
        %v3497 = vpack.c.b16 %v2505, %v2497
        %v3498 = vpack.c.b16 %v2506, %v2498
        %v3499 = vpack.c.b16 %v2515, %v2507
        %v3500 = vpack.c.b16 %v2516, %v2508
        %v3501 = vpack.c.b16 %v2517, %v2509
        %v3502 = vpack.c.b16 %v2518, %v2510
        %v3503 = vpack.c.b16 %v2519, %v2511
        %v3504 = vpack.c.b16 %v2520, %v2512
        %v3505 = vpack.c.b16 %v2521, %v2513
        %v3506 = vpack.c.b16 %v2522, %v2514
        %v3507 = vpack.c.b16 %v2531, %v2523
        %v3508 = vpack.c.b16 %v2532, %v2524
        %v3509 = vpack.c.b16 %v2533, %v2525
        %v3510 = vpack.c.b16 %v2534, %v2526
        %v3511 = vpack.c.b16 %v2535, %v2527
        %v3512 = vpack.c.b16 %v2536, %v2528
        %v3513 = vpack.c.b16 %v2537, %v2529
        %v3514 = vpack.c.b16 %v2538, %v2530
        %v3515 = vpack.c.b16 %v2547, %v2539
        %v3516 = vpack.c.b16 %v2548, %v2540
        %v3517 = vpack.c.b16 %v2549, %v2541
        %v3518 = vpack.c.b16 %v2550, %v2542
        %v3519 = vpack.c.b16 %v2551, %v2543
        %v3520 = vpack.c.b16 %v2552, %v2544
        %v3521 = vpack.c.b16 %v2553, %v2545
        %v3522 = vpack.c.b16 %v2554, %v2546
        %v3523 = vpack.c.b16 %v2563, %v2555
        %v3524 = vpack.c.b16 %v2564, %v2556
        %v3525 = vpack.c.b16 %v2565, %v2557
        %v3526 = vpack.c.b16 %v2566, %v2558
        %v3527 = vpack.c.b16 %v2567, %v2559
        %v3528 = vpack.c.b16 %v2568, %v2560
        %v3529 = vpack.c.b16 %v2569, %v2561
        %v3530 = vpack.c.b16 %v2570, %v2562
        %v3531 = vpack.c.b16 %v2579, %v2571
        %v3532 = vpack.c.b16 %v2580, %v2572
        %v3533 = vpack.c.b16 %v2581, %v2573
        %v3534 = vpack.c.b16 %v2582, %v2574
        %v3535 = vpack.c.b16 %v2583, %v2575
        %v3536 = vpack.c.b16 %v2584, %v2576
        %v3537 = vpack.c.b16 %v2585, %v2577
        %v3538 = vpack.c.b16 %v2586, %v2578
        %v3539 = vpack.c.b16 %v2595, %v2587
        %v3540 = vpack.c.b16 %v2596, %v2588
        %v3541 = vpack.c.b16 %v2597, %v2589
        %v3542 = vpack.c.b16 %v2598, %v2590
        %v3543 = vpack.c.b16 %v2599, %v2591
        %v3544 = vpack.c.b16 %v2600, %v2592
        %v3545 = vpack.c.b16 %v2601, %v2593
        %v3546 = vpack.c.b16 %v2602, %v2594
        %v3547 = vpack.c.b16 %v2611, %v2603
        %v3548 = vpack.c.b16 %v2612, %v2604
        %v3549 = vpack.c.b16 %v2613, %v2605
        %v3550 = vpack.c.b16 %v2614, %v2606
        %v3551 = vpack.c.b16 %v2615, %v2607
        %v3552 = vpack.c.b16 %v2616, %v2608
        %v3553 = vpack.c.b16 %v2617, %v2609
        %v3554 = vpack.c.b16 %v2618, %v2610
        %v3555 = vpack.c.b16 %v2627, %v2619
        %v3556 = vpack.c.b16 %v2628, %v2620
        %v3557 = vpack.c.b16 %v2629, %v2621
        %v3558 = vpack.c.b16 %v2630, %v2622
        %v3559 = vpack.c.b16 %v2631, %v2623
        %v3560 = vpack.c.b16 %v2632, %v2624
        %v3561 = vpack.c.b16 %v2633, %v2625
        %v3562 = vpack.c.b16 %v2634, %v2626
        %v3563 = vpack.c.b16 %v2643, %v2635
        %v3564 = vpack.c.b16 %v2644, %v2636
        %v3565 = vpack.c.b16 %v2645, %v2637
        %v3566 = vpack.c.b16 %v2646, %v2638
        %v3567 = vpack.c.b16 %v2647, %v2639
        %v3568 = vpack.c.b16 %v2648, %v2640
        %v3569 = vpack.c.b16 %v2649, %v2641
        %v3570 = vpack.c.b16 %v2650, %v2642
        %v3571 = vpack.c.b16 %v2659, %v2651
        %v3572 = vpack.c.b16 %v2660, %v2652
        %v3573 = vpack.c.b16 %v2661, %v2653
        %v3574 = vpack.c.b16 %v2662, %v2654
        %v3575 = vpack.c.b16 %v2663, %v2655
        %v3576 = vpack.c.b16 %v2664, %v2656
        %v3577 = vpack.c.b16 %v2665, %v2657
        %v3578 = vpack.c.b16 %v2666, %v2658
        %v3579 = vpack.c.b16 %v2675, %v2667
        %v3580 = vpack.c.b16 %v2676, %v2668
        %v3581 = vpack.c.b16 %v2677, %v2669
        %v3582 = vpack.c.b16 %v2678, %v2670
        %v3583 = vpack.c.b16 %v2679, %v2671
        %v3584 = vpack.c.b16 %v2680, %v2672
        %v3585 = vpack.c.b16 %v2681, %v2673
        %v3586 = vpack.c.b16 %v2682, %v2674
        %v3587 = vpack.c.b16 %v2691, %v2683
        %v3588 = vpack.c.b16 %v2692, %v2684
        %v3589 = vpack.c.b16 %v2693, %v2685
        %v3590 = vpack.c.b16 %v2694, %v2686
        %v3591 = vpack.c.b16 %v2695, %v2687
        %v3592 = vpack.c.b16 %v2696, %v2688
        %v3593 = vpack.c.b16 %v2697, %v2689
        %v3594 = vpack.c.b16 %v2698, %v2690
        %v3595 = vpack.c.b16 %v2707, %v2699
        %v3596 = vpack.c.b16 %v2708, %v2700
        %v3597 = vpack.c.b16 %v2709, %v2701
        %v3598 = vpack.c.b16 %v2710, %v2702
        %v3599 = vpack.c.b16 %v2711, %v2703
        %v3600 = vpack.c.b16 %v2712, %v2704
        %v3601 = vpack.c.b16 %v2713, %v2705
        %v3602 = vpack.c.b16 %v2714, %v2706
        %v3603 = vpack.c.b16 %v2723, %v2715
        %v3604 = vpack.c.b16 %v2724, %v2716
        %v3605 = vpack.c.b16 %v2725, %v2717
        %v3606 = vpack.c.b16 %v2726, %v2718
        %v3607 = vpack.c.b16 %v2727, %v2719
        %v3608 = vpack.c.b16 %v2728, %v2720
        %v3609 = vpack.c.b16 %v2729, %v2721
        %v3610 = vpack.c.b16 %v2730, %v2722
        %v3611 = vpack.c.b16 %v2739, %v2731
        %v3612 = vpack.c.b16 %v2740, %v2732
        %v3613 = vpack.c.b16 %v2741, %v2733
        %v3614 = vpack.c.b16 %v2742, %v2734
        %v3615 = vpack.c.b16 %v2743, %v2735
        %v3616 = vpack.c.b16 %v2744, %v2736
        %v3617 = vpack.c.b16 %v2745, %v2737
        %v3618 = vpack.c.b16 %v2746, %v2738
        %v3619 = vpack.c.b16 %v2755, %v2747
        %v3620 = vpack.c.b16 %v2756, %v2748
        %v3621 = vpack.c.b16 %v2757, %v2749
        %v3622 = vpack.c.b16 %v2758, %v2750
        %v3623 = vpack.c.b16 %v2759, %v2751
        %v3624 = vpack.c.b16 %v2760, %v2752
        %v3625 = vpack.c.b16 %v2761, %v2753
        %v3626 = vpack.c.b16 %v2762, %v2754
        %v3627 = vpack.c.b16 %v2771, %v2763
        %v3628 = vpack.c.b16 %v2772, %v2764
        %v3629 = vpack.c.b16 %v2773, %v2765
        %v3630 = vpack.c.b16 %v2774, %v2766
        %v3631 = vpack.c.b16 %v2775, %v2767
        %v3632 = vpack.c.b16 %v2776, %v2768
        %v3633 = vpack.c.b16 %v2777, %v2769
        %v3634 = vpack.c.b16 %v2778, %v2770
        %v3635 = vpack.c.b16 %v2787, %v2779
        %v3636 = vpack.c.b16 %v2788, %v2780
        %v3637 = vpack.c.b16 %v2789, %v2781
        %v3638 = vpack.c.b16 %v2790, %v2782
        %v3639 = vpack.c.b16 %v2791, %v2783
        %v3640 = vpack.c.b16 %v2792, %v2784
        %v3641 = vpack.c.b16 %v2793, %v2785
        %v3642 = vpack.c.b16 %v2794, %v2786
        %v3643 = vpack.c.b16 %v2803, %v2795
        %v3644 = vpack.c.b16 %v2804, %v2796
        %v3645 = vpack.c.b16 %v2805, %v2797
        %v3646 = vpack.c.b16 %v2806, %v2798
        %v3647 = vpack.c.b16 %v2807, %v2799
        %v3648 = vpack.c.b16 %v2808, %v2800
        %v3649 = vpack.c.b16 %v2809, %v2801
        %v3650 = vpack.c.b16 %v2810, %v2802
        %v3651 = vpack.c.b16 %v2819, %v2811
        %v3652 = vpack.c.b16 %v2820, %v2812
        %v3653 = vpack.c.b16 %v2821, %v2813
        %v3654 = vpack.c.b16 %v2822, %v2814
        %v3655 = vpack.c.b16 %v2823, %v2815
        %v3656 = vpack.c.b16 %v2824, %v2816
        %v3657 = vpack.c.b16 %v2825, %v2817
        %v3658 = vpack.c.b16 %v2826, %v2818
        %v3659 = vpack.c.b16 %v2835, %v2827
        %v3660 = vpack.c.b16 %v2836, %v2828
        %v3661 = vpack.c.b16 %v2837, %v2829
        %v3662 = vpack.c.b16 %v2838, %v2830
        %v3663 = vpack.c.b16 %v2839, %v2831
        %v3664 = vpack.c.b16 %v2840, %v2832
        %v3665 = vpack.c.b16 %v2841, %v2833
        %v3666 = vpack.c.b16 %v2842, %v2834
        %v3667 = vpack.c.b16 %v2851, %v2843
        %v3668 = vpack.c.b16 %v2852, %v2844
        %v3669 = vpack.c.b16 %v2853, %v2845
        %v3670 = vpack.c.b16 %v2854, %v2846
        %v3671 = vpack.c.b16 %v2855, %v2847
        %v3672 = vpack.c.b16 %v2856, %v2848
        %v3673 = vpack.c.b16 %v2857, %v2849
        %v3674 = vpack.c.b16 %v2858, %v2850
        %v3675 = vpack.c.b16 %v2867, %v2859
        %v3676 = vpack.c.b16 %v2868, %v2860
        %v3677 = vpack.c.b16 %v2869, %v2861
        %v3678 = vpack.c.b16 %v2870, %v2862
        %v3679 = vpack.c.b16 %v2871, %v2863
        %v3680 = vpack.c.b16 %v2872, %v2864
        %v3681 = vpack.c.b16 %v2873, %v2865
        %v3682 = vpack.c.b16 %v2874, %v2866
        %v3683 = vpack.c.b16 %v2883, %v2875
        %v3684 = vpack.c.b16 %v2884, %v2876
        %v3685 = vpack.c.b16 %v2885, %v2877
        %v3686 = vpack.c.b16 %v2886, %v2878
        %v3687 = vpack.c.b16 %v2887, %v2879
        %v3688 = vpack.c.b16 %v2888, %v2880
        %v3689 = vpack.c.b16 %v2889, %v2881
        %v3690 = vpack.c.b16 %v2890, %v2882
        %v3691 = vpack.c.b16 %v2899, %v2891
        %v3692 = vpack.c.b16 %v2900, %v2892
        %v3693 = vpack.c.b16 %v2901, %v2893
        %v3694 = vpack.c.b16 %v2902, %v2894
        %v3695 = vpack.c.b16 %v2903, %v2895
        %v3696 = vpack.c.b16 %v2904, %v2896
        %v3697 = vpack.c.b16 %v2905, %v2897
        %v3698 = vpack.c.b16 %v2906, %v2898
        %v3699 = vpack.c.b16 %v2915, %v2907
        %v3700 = vpack.c.b16 %v2916, %v2908
        %v3701 = vpack.c.b16 %v2917, %v2909
        %v3702 = vpack.c.b16 %v2918, %v2910
        %v3703 = vpack.c.b16 %v2919, %v2911
        %v3704 = vpack.c.b16 %v2920, %v2912
        %v3705 = vpack.c.b16 %v2921, %v2913
        %v3706 = vpack.c.b16 %v2922, %v2914
        %v3707 = vpack.c.b16 %v2931, %v2923
        %v3708 = vpack.c.b16 %v2932, %v2924
        %v3709 = vpack.c.b16 %v2933, %v2925
        %v3710 = vpack.c.b16 %v2934, %v2926
        %v3711 = vpack.c.b16 %v2935, %v2927
        %v3712 = vpack.c.b16 %v2936, %v2928
        %v3713 = vpack.c.b16 %v2937, %v2929
        %v3714 = vpack.c.b16 %v2938, %v2930
        %v3715 = vpack.c.b16 %v2947, %v2939
        %v3716 = vpack.c.b16 %v2948, %v2940
        %v3717 = vpack.c.b16 %v2949, %v2941
        %v3718 = vpack.c.b16 %v2950, %v2942
        %v3719 = vpack.c.b16 %v2951, %v2943
        %v3720 = vpack.c.b16 %v2952, %v2944
        %v3721 = vpack.c.b16 %v2953, %v2945
        %v3722 = vpack.c.b16 %v2954, %v2946
        %v3723 = vpack.c.b16 %v2963, %v2955
        %v3724 = vpack.c.b16 %v2964, %v2956
        %v3725 = vpack.c.b16 %v2965, %v2957
        %v3726 = vpack.c.b16 %v2966, %v2958
        %v3727 = vpack.c.b16 %v2967, %v2959
        %v3728 = vpack.c.b16 %v2968, %v2960
        %v3729 = vpack.c.b16 %v2969, %v2961
        %v3730 = vpack.c.b16 %v2970, %v2962
        %v3731 = vpack.c.b16 %v2979, %v2971
        %v3732 = vpack.c.b16 %v2980, %v2972
        %v3733 = vpack.c.b16 %v2981, %v2973
        %v3734 = vpack.c.b16 %v2982, %v2974
        %v3735 = vpack.c.b16 %v2983, %v2975
        %v3736 = vpack.c.b16 %v2984, %v2976
        %v3737 = vpack.c.b16 %v2985, %v2977
        %v3738 = vpack.c.b16 %v2986, %v2978
        %v3739 = vpack.c.b16 %v2995, %v2987
        %v3740 = vpack.c.b16 %v2996, %v2988
        %v3741 = vpack.c.b16 %v2997, %v2989
        %v3742 = vpack.c.b16 %v2998, %v2990
        %v3743 = vpack.c.b16 %v2999, %v2991
        %v3744 = vpack.c.b16 %v3000, %v2992
        %v3745 = vpack.c.b16 %v3001, %v2993
        %v3746 = vpack.c.b16 %v3002, %v2994
        %v3747 = vpack.c.b16 %v3011, %v3003
        %v3748 = vpack.c.b16 %v3012, %v3004
        %v3749 = vpack.c.b16 %v3013, %v3005
        %v3750 = vpack.c.b16 %v3014, %v3006
        %v3751 = vpack.c.b16 %v3015, %v3007
        %v3752 = vpack.c.b16 %v3016, %v3008
        %v3753 = vpack.c.b16 %v3017, %v3009
        %v3754 = vpack.c.b16 %v3018, %v3010
        %v3755 = vpack.c.b16 %v3027, %v3019
        %v3756 = vpack.c.b16 %v3028, %v3020
        %v3757 = vpack.c.b16 %v3029, %v3021
        %v3758 = vpack.c.b16 %v3030, %v3022
        %v3759 = vpack.c.b16 %v3031, %v3023
        %v3760 = vpack.c.b16 %v3032, %v3024
        %v3761 = vpack.c.b16 %v3033, %v3025
        %v3762 = vpack.c.b16 %v3034, %v3026
        %v3763 = vpack.c.b16 %v3043, %v3035
        %v3764 = vpack.c.b16 %v3044, %v3036
        %v3765 = vpack.c.b16 %v3045, %v3037
        %v3766 = vpack.c.b16 %v3046, %v3038
        %v3767 = vpack.c.b16 %v3047, %v3039
        %v3768 = vpack.c.b16 %v3048, %v3040
        %v3769 = vpack.c.b16 %v3049, %v3041
        %v3770 = vpack.c.b16 %v3050, %v3042
        %v3771 = vpack.c.b16 %v3059, %v3051
        %v3772 = vpack.c.b16 %v3060, %v3052
        %v3773 = vpack.c.b16 %v3061, %v3053
        %v3774 = vpack.c.b16 %v3062, %v3054
        %v3775 = vpack.c.b16 %v3063, %v3055
        %v3776 = vpack.c.b16 %v3064, %v3056
        %v3777 = vpack.c.b16 %v3065, %v3057
        %v3778 = vpack.c.b16 %v3066, %v3058
        %v3779 = vpack.c.b16 %v3075, %v3067
        %v3780 = vpack.c.b16 %v3076, %v3068
        %v3781 = vpack.c.b16 %v3077, %v3069
        %v3782 = vpack.c.b16 %v3078, %v3070
        %v3783 = vpack.c.b16 %v3079, %v3071
        %v3784 = vpack.c.b16 %v3080, %v3072
        %v3785 = vpack.c.b16 %v3081, %v3073
        %v3786 = vpack.c.b16 %v3082, %v3074
        %v3787 = vpack.c.b16 %v3091, %v3083
        %v3788 = vpack.c.b16 %v3092, %v3084
        %v3789 = vpack.c.b16 %v3093, %v3085
        %v3790 = vpack.c.b16 %v3094, %v3086
        %v3791 = vpack.c.b16 %v3095, %v3087
        %v3792 = vpack.c.b16 %v3096, %v3088
        %v3793 = vpack.c.b16 %v3097, %v3089
        %v3794 = vpack.c.b16 %v3098, %v3090
        %v3795 = vpack.c.b16 %v3107, %v3099
        %v3796 = vpack.c.b16 %v3108, %v3100
        %v3797 = vpack.c.b16 %v3109, %v3101
        %v3798 = vpack.c.b16 %v3110, %v3102
        %v3799 = vpack.c.b16 %v3111, %v3103
        %v3800 = vpack.c.b16 %v3112, %v3104
        %v3801 = vpack.c.b16 %v3113, %v3105
        %v3802 = vpack.c.b16 %v3114, %v3106
        %v3803 = vpack.c.b16 %v3123, %v3115
        %v3804 = vpack.c.b16 %v3124, %v3116
        %v3805 = vpack.c.b16 %v3125, %v3117
        %v3806 = vpack.c.b16 %v3126, %v3118
        %v3807 = vpack.c.b16 %v3127, %v3119
        %v3808 = vpack.c.b16 %v3128, %v3120
        %v3809 = vpack.c.b16 %v3129, %v3121
        %v3810 = vpack.c.b16 %v3130, %v3122
        %v3811 = vpack.c.b16 %v3139, %v3131
        %v3812 = vpack.c.b16 %v3140, %v3132
        %v3813 = vpack.c.b16 %v3141, %v3133
        %v3814 = vpack.c.b16 %v3142, %v3134
        %v3815 = vpack.c.b16 %v3143, %v3135
        %v3816 = vpack.c.b16 %v3144, %v3136
        %v3817 = vpack.c.b16 %v3145, %v3137
        %v3818 = vpack.c.b16 %v3146, %v3138
        %v3819 = vpack.c.b16 %v3155, %v3147
        %v3820 = vpack.c.b16 %v3156, %v3148
        %v3821 = vpack.c.b16 %v3157, %v3149
        %v3822 = vpack.c.b16 %v3158, %v3150
        %v3823 = vpack.c.b16 %v3159, %v3151
        %v3824 = vpack.c.b16 %v3160, %v3152
        %v3825 = vpack.c.b16 %v3161, %v3153
        %v3826 = vpack.c.b16 %v3162, %v3154
        %v3827 = vpack.c.b16 %v3171, %v3163
        %v3828 = vpack.c.b16 %v3172, %v3164
        %v3829 = vpack.c.b16 %v3173, %v3165
        %v3830 = vpack.c.b16 %v3174, %v3166
        %v3831 = vpack.c.b16 %v3175, %v3167
        %v3832 = vpack.c.b16 %v3176, %v3168
        %v3833 = vpack.c.b16 %v3177, %v3169
        %v3834 = vpack.c.b16 %v3178, %v3170
        %v3835 = vpack.c.b16 %v3187, %v3179
        %v3836 = vpack.c.b16 %v3188, %v3180
        %v3837 = vpack.c.b16 %v3189, %v3181
        %v3838 = vpack.c.b16 %v3190, %v3182
        %v3839 = vpack.c.b16 %v3191, %v3183
        %v3840 = vpack.c.b16 %v3192, %v3184
        %v3841 = vpack.c.b16 %v3193, %v3185
        %v3842 = vpack.c.b16 %v3194, %v3186
        %v3843 = vpack.c.b16 %v3203, %v3195
        %v3844 = vpack.c.b16 %v3204, %v3196
        %v3845 = vpack.c.b16 %v3205, %v3197
        %v3846 = vpack.c.b16 %v3206, %v3198
        %v3847 = vpack.c.b16 %v3207, %v3199
        %v3848 = vpack.c.b16 %v3208, %v3200
        %v3849 = vpack.c.b16 %v3209, %v3201
        %v3850 = vpack.c.b16 %v3210, %v3202
        %v3851 = vpack.c.b16 %v3219, %v3211
        %v3852 = vpack.c.b16 %v3220, %v3212
        %v3853 = vpack.c.b16 %v3221, %v3213
        %v3854 = vpack.c.b16 %v3222, %v3214
        %v3855 = vpack.c.b16 %v3223, %v3215
        %v3856 = vpack.c.b16 %v3224, %v3216
        %v3857 = vpack.c.b16 %v3225, %v3217
        %v3858 = vpack.c.b16 %v3226, %v3218
        %v3859 = vpack.c.b16 %v3235, %v3227
        %v3860 = vpack.c.b16 %v3236, %v3228
        %v3861 = vpack.c.b16 %v3237, %v3229
        %v3862 = vpack.c.b16 %v3238, %v3230
        %v3863 = vpack.c.b16 %v3239, %v3231
        %v3864 = vpack.c.b16 %v3240, %v3232
        %v3865 = vpack.c.b16 %v3241, %v3233
        %v3866 = vpack.c.b16 %v3242, %v3234
        %v3867 = vpack.c.b16 %v3251, %v3243
        %v3868 = vpack.c.b16 %v3252, %v3244
        %v3869 = vpack.c.b16 %v3253, %v3245
        %v3870 = vpack.c.b16 %v3254, %v3246
        %v3871 = vpack.c.b16 %v3255, %v3247
        %v3872 = vpack.c.b16 %v3256, %v3248
        %v3873 = vpack.c.b16 %v3257, %v3249
        %v3874 = vpack.c.b16 %v3258, %v3250
        %v3875 = vpack.c.b16 %v3267, %v3259
        %v3876 = vpack.c.b16 %v3268, %v3260
        %v3877 = vpack.c.b16 %v3269, %v3261
        %v3878 = vpack.c.b16 %v3270, %v3262
        %v3879 = vpack.c.b16 %v3271, %v3263
        %v3880 = vpack.c.b16 %v3272, %v3264
        %v3881 = vpack.c.b16 %v3273, %v3265
        %v3882 = vpack.c.b16 %v3274, %v3266
        %v3883 = vpack.c.b16 %v3283, %v3275
        %v3884 = vpack.c.b16 %v3284, %v3276
        %v3885 = vpack.c.b16 %v3285, %v3277
        %v3886 = vpack.c.b16 %v3286, %v3278
        %v3887 = vpack.c.b16 %v3287, %v3279
        %v3888 = vpack.c.b16 %v3288, %v3280
        %v3889 = vpack.c.b16 %v3289, %v3281
        %v3890 = vpack.c.b16 %v3290, %v3282
        %v3891 = vpack.c.b16 %v3299, %v3291
        %v3892 = vpack.c.b16 %v3300, %v3292
        %v3893 = vpack.c.b16 %v3301, %v3293
        %v3894 = vpack.c.b16 %v3302, %v3294
        %v3895 = vpack.c.b16 %v3303, %v3295
        %v3896 = vpack.c.b16 %v3304, %v3296
        %v3897 = vpack.c.b16 %v3305, %v3297
        %v3898 = vpack.c.b16 %v3306, %v3298
        %v3899 = vpack.c.b16 %v3315, %v3307
        %v3900 = vpack.c.b16 %v3316, %v3308
        %v3901 = vpack.c.b16 %v3317, %v3309
        %v3902 = vpack.c.b16 %v3318, %v3310
        %v3903 = vpack.c.b16 %v3319, %v3311
        %v3904 = vpack.c.b16 %v3320, %v3312
        %v3905 = vpack.c.b16 %v3321, %v3313
        %v3906 = vpack.c.b16 %v3322, %v3314
        %v3907 = vpack.c.b16 %v3331, %v3323
        %v3908 = vpack.c.b16 %v3332, %v3324
        %v3909 = vpack.c.b16 %v3333, %v3325
        %v3910 = vpack.c.b16 %v3334, %v3326
        %v3911 = vpack.c.b16 %v3335, %v3327
        %v3912 = vpack.c.b16 %v3336, %v3328
        %v3913 = vpack.c.b16 %v3337, %v3329
        %v3914 = vpack.c.b16 %v3338, %v3330
        %v3915 = vpack.c.b16 %v3347, %v3339
        %v3916 = vpack.c.b16 %v3348, %v3340
        %v3917 = vpack.c.b16 %v3349, %v3341
        %v3918 = vpack.c.b16 %v3350, %v3342
        %v3919 = vpack.c.b16 %v3351, %v3343
        %v3920 = vpack.c.b16 %v3352, %v3344
        %v3921 = vpack.c.b16 %v3353, %v3345
        %v3922 = vpack.c.b16 %v3354, %v3346
        %v3923 = vpack.c.b16 %v3363, %v3355
        %v3924 = vpack.c.b16 %v3364, %v3356
        %v3925 = vpack.c.b16 %v3365, %v3357
        %v3926 = vpack.c.b16 %v3366, %v3358
        %v3927 = vpack.c.b16 %v3367, %v3359
        %v3928 = vpack.c.b16 %v3368, %v3360
        %v3929 = vpack.c.b16 %v3369, %v3361
        %v3930 = vpack.c.b16 %v3370, %v3362
        %v3931 = vpack.c.b16 %v3379, %v3371
        %v3932 = vpack.c.b16 %v3380, %v3372
        %v3933 = vpack.c.b16 %v3381, %v3373
        %v3934 = vpack.c.b16 %v3382, %v3374
        %v3935 = vpack.c.b16 %v3383, %v3375
        %v3936 = vpack.c.b16 %v3384, %v3376
        %v3937 = vpack.c.b16 %v3385, %v3377
        %v3938 = vpack.c.b16 %v3386, %v3378
        %v3939 = vpack.c.b16 %v3395, %v3387
        %v3940 = vpack.c.b16 %v3396, %v3388
        %v3941 = vpack.c.b16 %v3397, %v3389
        %v3942 = vpack.c.b16 %v3398, %v3390
        %v3943 = vpack.c.b16 %v3399, %v3391
        %v3944 = vpack.c.b16 %v3400, %v3392
        %v3945 = vpack.c.b16 %v3401, %v3393
        %v3946 = vpack.c.b16 %v3402, %v3394
        %v3947 = vpack.c.b16 %v3411, %v3403
        %v3948 = vpack.c.b16 %v3412, %v3404
        %v3949 = vpack.c.b16 %v3413, %v3405
        %v3950 = vpack.c.b16 %v3414, %v3406
        %v3951 = vpack.c.b16 %v3415, %v3407
        %v3952 = vpack.c.b16 %v3416, %v3408
        %v3953 = vpack.c.b16 %v3417, %v3409
        %v3954 = vpack.c.b16 %v3418, %v3410
        %v3955 = vpack.c.b16 %v3427, %v3419
        %v3956 = vpack.c.b16 %v3428, %v3420
        %v3957 = vpack.c.b16 %v3429, %v3421
        %v3958 = vpack.c.b16 %v3430, %v3422
        %v3959 = vpack.c.b16 %v3431, %v3423
        %v3960 = vpack.c.b16 %v3432, %v3424
        %v3961 = vpack.c.b16 %v3433, %v3425
        %v3962 = vpack.c.b16 %v3434, %v3426
        %v3963 = vpack.c.b16 %v3443, %v3435
        %v3964 = vpack.c.b16 %v3444, %v3436
        %v3965 = vpack.c.b16 %v3445, %v3437
        %v3966 = vpack.c.b16 %v3446, %v3438
        %v3967 = vpack.c.b16 %v3447, %v3439
        %v3968 = vpack.c.b16 %v3448, %v3440
        %v3969 = vpack.c.b16 %v3449, %v3441
        %v3970 = vpack.c.b16 %v3450, %v3442
        %v3971 = vpack.c.b16 %v3459, %v3451
        %v3972 = vpack.c.b16 %v3460, %v3452
        %v3973 = vpack.c.b16 %v3461, %v3453
        %v3974 = vpack.c.b16 %v3462, %v3454
        %v3975 = vpack.c.b16 %v3463, %v3455
        %v3976 = vpack.c.b16 %v3464, %v3456
        %v3977 = vpack.c.b16 %v3465, %v3457
        %v3978 = vpack.c.b16 %v3466, %v3458
        %4491 = vmatprep.subr.bf16.mxu0 %v3468
        %4492 = vmatpush1.bf16.msra.mxu0 %v3467
        %4493 = vmatprep.subr.bf16.mxu0 %v3476
        %4494 = vmatpush1.bf16.msra.mxu0 %v3475
        %4495 = vmatprep.subr.bf16.mxu0 %v3484
        %4496 = vmatpush1.bf16.msra.mxu0 %v3483
        %4497 = vmatprep.subr.bf16.mxu0 %v3492
        %4498 = vmatpush1.bf16.msra.mxu0 %v3491
        %4499 = vmatprep.subr.bf16.mxu0 %v3500
        %4500 = vmatpush1.bf16.msra.mxu0 %v3499
        %4501 = vmatprep.subr.bf16.mxu0 %v3508
        %4502 = vmatpush1.bf16.msra.mxu0 %v3507
        %4503 = vmatprep.subr.bf16.mxu0 %v3516
        %4504 = vmatpush1.bf16.msra.mxu0 %v3515
        %4505 = vmatprep.subr.bf16.mxu0 %v3524
        %4506 = vmatpush1.bf16.msra.mxu0 %v3523
        %4507 = vmatprep.subr.bf16.mxu0 %v3532
        %4508 = vmatpush1.bf16.msra.mxu0 %v3531
        %4509 = vmatprep.subr.bf16.mxu0 %v3540
        %4510 = vmatpush1.bf16.msra.mxu0 %v3539
        %4511 = vmatprep.subr.bf16.mxu0 %v3548
        %4512 = vmatpush1.bf16.msra.mxu0 %v3547
        %4513 = vmatprep.subr.bf16.mxu0 %v3556
        %4514 = vmatpush1.bf16.msra.mxu0 %v3555
        %4515 = vmatprep.subr.bf16.mxu0 %v3564
        %4516 = vmatpush1.bf16.msra.mxu0 %v3563
        %4517 = vmatprep.subr.bf16.mxu0 %v3572
        %4518 = vmatpush1.bf16.msra.mxu0 %v3571
        %4519 = vmatprep.subr.bf16.mxu0 %v3580
        %4520 = vmatpush1.bf16.msra.mxu0 %v3579
        %4521 = vmatprep.subr.bf16.mxu0 %v3588
        %4522 = vmatpush1.bf16.msra.mxu0 %v3587
        %4523 = vmatprep.mubr.bf16.mxu0 %v1916
        %4524 = vmatmul.mubr.bf16.gmra.mrb[0].mxu0 %v1915
        %v4525 = vpop.f32.mrb[0].mxu0
        %v4526 = vadd.f32 %v1866, %v4525
        %v4527 = vpop.f32.mrb[0].mxu0
        %v4528 = vadd.f32 %v1870, %v4527
        %v4529 = vpop.f32.mrb[0].mxu0
        %v4530 = vpop.f32.mrb[0].mxu0
        %4531 = vdwg.mxu0
        %4532 = vmatprep.subr.bf16.mxu0 %v3596
        %4533 = vmatpush1.bf16.msra.mxu0 %v3595
        %4534 = vmatprep.subr.bf16.mxu0 %v3604
        %4535 = vmatpush1.bf16.msra.mxu0 %v3603
        %4536 = vmatprep.subr.bf16.mxu0 %v3612
        %4537 = vmatpush1.bf16.msra.mxu0 %v3611
        %4538 = vmatprep.subr.bf16.mxu0 %v3620
        %4539 = vmatpush1.bf16.msra.mxu0 %v3619
        %4540 = vmatprep.subr.bf16.mxu0 %v3628
        %4541 = vmatpush1.bf16.msra.mxu0 %v3627
        %4542 = vmatprep.subr.bf16.mxu0 %v3636
        %4543 = vmatpush1.bf16.msra.mxu0 %v3635
        %4544 = vmatprep.subr.bf16.mxu0 %v3644
        %4545 = vmatpush1.bf16.msra.mxu0 %v3643
        %4546 = vmatprep.subr.bf16.mxu0 %v3652
        %4547 = vmatpush1.bf16.msra.mxu0 %v3651
        %4548 = vmatprep.subr.bf16.mxu0 %v3660
        %4549 = vmatpush1.bf16.msra.mxu0 %v3659
        %4550 = vmatprep.subr.bf16.mxu0 %v3668
        %4551 = vmatpush1.bf16.msra.mxu0 %v3667
        %4552 = vmatprep.subr.bf16.mxu0 %v3676
        %4553 = vmatpush1.bf16.msra.mxu0 %v3675
        %4554 = vmatprep.subr.bf16.mxu0 %v3684
        %4555 = vmatpush1.bf16.msra.mxu0 %v3683
        %4556 = vmatprep.subr.bf16.mxu0 %v3692
        %4557 = vmatpush1.bf16.msra.mxu0 %v3691
        %4558 = vmatprep.subr.bf16.mxu0 %v3700
        %4559 = vmatpush1.bf16.msra.mxu0 %v3699
        %4560 = vmatprep.subr.bf16.mxu0 %v3708
        %4561 = vmatpush1.bf16.msra.mxu0 %v3707
        %4562 = vmatprep.subr.bf16.mxu0 %v3716
        %4563 = vmatpush1.bf16.msra.mxu0 %v3715
        %4564 = vmatprep.mubr.bf16.mxu0 %v1918
        %4565 = vmatmul.mubr.bf16.gmra.mrb[0].mxu0 %v1917
        %v4566 = vpop.f32.mrb[0].mxu0
        %v4567 = vadd.f32 %v4526, %v4566
        %v4568 = vpop.f32.mrb[0].mxu0
        %v4569 = vadd.f32 %v4528, %v4568
        %v4570 = vpop.f32.mrb[0].mxu0
        %v4571 = vpop.f32.mrb[0].mxu0
        %4572 = vdwg.mxu0
        %4573 = vmatprep.subr.bf16.mxu0 %v3724
        %4574 = vmatpush1.bf16.msra.mxu0 %v3723
        %4575 = vmatprep.subr.bf16.mxu0 %v3732
        %4576 = vmatpush1.bf16.msra.mxu0 %v3731
        %4577 = vmatprep.subr.bf16.mxu0 %v3740
        %4578 = vmatpush1.bf16.msra.mxu0 %v3739
        %4579 = vmatprep.subr.bf16.mxu0 %v3748
        %4580 = vmatpush1.bf16.msra.mxu0 %v3747
        %4581 = vmatprep.subr.bf16.mxu0 %v3756
        %4582 = vmatpush1.bf16.msra.mxu0 %v3755
        %4583 = vmatprep.subr.bf16.mxu0 %v3764
        %4584 = vmatpush1.bf16.msra.mxu0 %v3763
        %4585 = vmatprep.subr.bf16.mxu0 %v3772
        %4586 = vmatpush1.bf16.msra.mxu0 %v3771
        %4587 = vmatprep.subr.bf16.mxu0 %v3780
        %4588 = vmatpush1.bf16.msra.mxu0 %v3779
        %4589 = vmatprep.subr.bf16.mxu0 %v3788
        %4590 = vmatpush1.bf16.msra.mxu0 %v3787
        %4591 = vmatprep.subr.bf16.mxu0 %v3796
        %4592 = vmatpush1.bf16.msra.mxu0 %v3795
        %4593 = vmatprep.subr.bf16.mxu0 %v3804
        %4594 = vmatpush1.bf16.msra.mxu0 %v3803
        %4595 = vmatprep.subr.bf16.mxu0 %v3812
        %4596 = vmatpush1.bf16.msra.mxu0 %v3811
        %4597 = vmatprep.subr.bf16.mxu0 %v3820
        %4598 = vmatpush1.bf16.msra.mxu0 %v3819
        %4599 = vmatprep.subr.bf16.mxu0 %v3828
        %4600 = vmatpush1.bf16.msra.mxu0 %v3827
        %4601 = vmatprep.subr.bf16.mxu0 %v3836
        %4602 = vmatpush1.bf16.msra.mxu0 %v3835
        %4603 = vmatprep.subr.bf16.mxu0 %v3844
        %4604 = vmatpush1.bf16.msra.mxu0 %v3843
        %4605 = vmatprep.mubr.bf16.mxu0 %v1920
        %4606 = vmatmul.mubr.bf16.gmra.mrb[0].mxu0 %v1919
        %v4607 = vpop.f32.mrb[0].mxu0
        %v4608 = vadd.f32 %v4567, %v4607
        %v4609 = vpop.f32.mrb[0].mxu0
        %v4610 = vadd.f32 %v4569, %v4609
        %v4611 = vpop.f32.mrb[0].mxu0
        %v4612 = vpop.f32.mrb[0].mxu0
        %4613 = vdwg.mxu0
        %4614 = vmatprep.subr.bf16.mxu0 %v3852
        %4615 = vmatpush1.bf16.msra.mxu0 %v3851
        %4616 = vmatprep.subr.bf16.mxu0 %v3860
        %4617 = vmatpush1.bf16.msra.mxu0 %v3859
        %4618 = vmatprep.subr.bf16.mxu0 %v3868
        %4619 = vmatpush1.bf16.msra.mxu0 %v3867
        %4620 = vmatprep.subr.bf16.mxu0 %v3876
        %4621 = vmatpush1.bf16.msra.mxu0 %v3875
        %4622 = vmatprep.subr.bf16.mxu0 %v3884
        %4623 = vmatpush1.bf16.msra.mxu0 %v3883
        %4624 = vmatprep.subr.bf16.mxu0 %v3892
        %4625 = vmatpush1.bf16.msra.mxu0 %v3891
        %4626 = vmatprep.subr.bf16.mxu0 %v3900
        %4627 = vmatpush1.bf16.msra.mxu0 %v3899
        %4628 = vmatprep.subr.bf16.mxu0 %v3908
        %4629 = vmatpush1.bf16.msra.mxu0 %v3907
        %4630 = vmatprep.subr.bf16.mxu0 %v3916
        %4631 = vmatpush1.bf16.msra.mxu0 %v3915
        %4632 = vmatprep.subr.bf16.mxu0 %v3924
        %4633 = vmatpush1.bf16.msra.mxu0 %v3923
        %4634 = vmatprep.subr.bf16.mxu0 %v3932
        %4635 = vmatpush1.bf16.msra.mxu0 %v3931
        %4636 = vmatprep.subr.bf16.mxu0 %v3940
        %4637 = vmatpush1.bf16.msra.mxu0 %v3939
        %4638 = vmatprep.subr.bf16.mxu0 %v3948
        %4639 = vmatpush1.bf16.msra.mxu0 %v3947
        %4640 = vmatprep.subr.bf16.mxu0 %v3956
        %4641 = vmatpush1.bf16.msra.mxu0 %v3955
        %4642 = vmatprep.subr.bf16.mxu0 %v3964
        %4643 = vmatpush1.bf16.msra.mxu0 %v3963
        %4644 = vmatprep.subr.bf16.mxu0 %v3972
        %4645 = vmatpush1.bf16.msra.mxu0 %v3971
        %4646 = vmatprep.mubr.bf16.mxu0 %v1922
        %4647 = vmatmul.mubr.bf16.gmra.mrb[0].mxu0 %v1921
        %v4648 = vpop.f32.mrb[0].mxu0
        %v4649 = vadd.f32 %v4608, %v4648
        %v4650 = vpop.f32.mrb[0].mxu0
        %v4651 = vadd.f32 %v4610, %v4650
        %v4652 = vpop.f32.mrb[0].mxu0
        %v4653 = vpop.f32.mrb[0].mxu0
        %4654 = vdwg.mxu0
        %4655 = vmatprep.subr.bf16.mxu0 %v3470
        %4656 = vmatpush1.bf16.msra.mxu0 %v3469
        %4657 = vmatprep.subr.bf16.mxu0 %v3478
        %4658 = vmatpush1.bf16.msra.mxu0 %v3477
        %4659 = vmatprep.subr.bf16.mxu0 %v3486
        %4660 = vmatpush1.bf16.msra.mxu0 %v3485
        %4661 = vmatprep.subr.bf16.mxu0 %v3494
        %4662 = vmatpush1.bf16.msra.mxu0 %v3493
        %4663 = vmatprep.subr.bf16.mxu0 %v3502
        %4664 = vmatpush1.bf16.msra.mxu0 %v3501
        %4665 = vmatprep.subr.bf16.mxu0 %v3510
        %4666 = vmatpush1.bf16.msra.mxu0 %v3509
        %4667 = vmatprep.subr.bf16.mxu0 %v3518
        %4668 = vmatpush1.bf16.msra.mxu0 %v3517
        %4669 = vmatprep.subr.bf16.mxu0 %v3526
        %4670 = vmatpush1.bf16.msra.mxu0 %v3525
        %4671 = vmatprep.subr.bf16.mxu0 %v3534
        %4672 = vmatpush1.bf16.msra.mxu0 %v3533
        %4673 = vmatprep.subr.bf16.mxu0 %v3542
        %4674 = vmatpush1.bf16.msra.mxu0 %v3541
        %4675 = vmatprep.subr.bf16.mxu0 %v3550
        %4676 = vmatpush1.bf16.msra.mxu0 %v3549
        %4677 = vmatprep.subr.bf16.mxu0 %v3558
        %4678 = vmatpush1.bf16.msra.mxu0 %v3557
        %4679 = vmatprep.subr.bf16.mxu0 %v3566
        %4680 = vmatpush1.bf16.msra.mxu0 %v3565
        %4681 = vmatprep.subr.bf16.mxu0 %v3574
        %4682 = vmatpush1.bf16.msra.mxu0 %v3573
        %4683 = vmatprep.subr.bf16.mxu0 %v3582
        %4684 = vmatpush1.bf16.msra.mxu0 %v3581
        %4685 = vmatprep.subr.bf16.mxu0 %v3590
        %4686 = vmatpush1.bf16.msra.mxu0 %v3589
        %4687 = vmatprep.mubr.bf16.mxu0 %v1916
        %4688 = vmatmul.mubr.bf16.gmra.mrb[0].mxu0 %v1915
        %v4689 = vpop.f32.mrb[0].mxu0
        %v4690 = vadd.f32 %v1874, %v4689
        %v4691 = vpop.f32.mrb[0].mxu0
        %v4692 = vadd.f32 %v1878, %v4691
        %v4693 = vpop.f32.mrb[0].mxu0
        %v4694 = vpop.f32.mrb[0].mxu0
        %4695 = vdwg.mxu0
        %4696 = vmatprep.subr.bf16.mxu0 %v3598
        %4697 = vmatpush1.bf16.msra.mxu0 %v3597
        %4698 = vmatprep.subr.bf16.mxu0 %v3606
        %4699 = vmatpush1.bf16.msra.mxu0 %v3605
        %4700 = vmatprep.subr.bf16.mxu0 %v3614
        %4701 = vmatpush1.bf16.msra.mxu0 %v3613
        %4702 = vmatprep.subr.bf16.mxu0 %v3622
        %4703 = vmatpush1.bf16.msra.mxu0 %v3621
        %4704 = vmatprep.subr.bf16.mxu0 %v3630
        %4705 = vmatpush1.bf16.msra.mxu0 %v3629
        %4706 = vmatprep.subr.bf16.mxu0 %v3638
        %4707 = vmatpush1.bf16.msra.mxu0 %v3637
        %4708 = vmatprep.subr.bf16.mxu0 %v3646
        %4709 = vmatpush1.bf16.msra.mxu0 %v3645
        %4710 = vmatprep.subr.bf16.mxu0 %v3654
        %4711 = vmatpush1.bf16.msra.mxu0 %v3653
        %4712 = vmatprep.subr.bf16.mxu0 %v3662
        %4713 = vmatpush1.bf16.msra.mxu0 %v3661
        %4714 = vmatprep.subr.bf16.mxu0 %v3670
        %4715 = vmatpush1.bf16.msra.mxu0 %v3669
        %4716 = vmatprep.subr.bf16.mxu0 %v3678
        %4717 = vmatpush1.bf16.msra.mxu0 %v3677
        %4718 = vmatprep.subr.bf16.mxu0 %v3686
        %4719 = vmatpush1.bf16.msra.mxu0 %v3685
        %4720 = vmatprep.subr.bf16.mxu0 %v3694
        %4721 = vmatpush1.bf16.msra.mxu0 %v3693
        %4722 = vmatprep.subr.bf16.mxu0 %v3702
        %4723 = vmatpush1.bf16.msra.mxu0 %v3701
        %4724 = vmatprep.subr.bf16.mxu0 %v3710
        %4725 = vmatpush1.bf16.msra.mxu0 %v3709
        %4726 = vmatprep.subr.bf16.mxu0 %v3718
        %4727 = vmatpush1.bf16.msra.mxu0 %v3717
        %4728 = vmatprep.mubr.bf16.mxu0 %v1918
        %4729 = vmatmul.mubr.bf16.gmra.mrb[0].mxu0 %v1917
        %v4730 = vpop.f32.mrb[0].mxu0
        %v4731 = vadd.f32 %v4690, %v4730
        %v4732 = vpop.f32.mrb[0].mxu0
        %v4733 = vadd.f32 %v4692, %v4732
        %v4734 = vpop.f32.mrb[0].mxu0
        %v4735 = vpop.f32.mrb[0].mxu0
        %4736 = vdwg.mxu0
        %4737 = vmatprep.subr.bf16.mxu0 %v3726
        %4738 = vmatpush1.bf16.msra.mxu0 %v3725
        %4739 = vmatprep.subr.bf16.mxu0 %v3734
        %4740 = vmatpush1.bf16.msra.mxu0 %v3733
        %4741 = vmatprep.subr.bf16.mxu0 %v3742
        %4742 = vmatpush1.bf16.msra.mxu0 %v3741
        %4743 = vmatprep.subr.bf16.mxu0 %v3750
        %4744 = vmatpush1.bf16.msra.mxu0 %v3749
        %4745 = vmatprep.subr.bf16.mxu0 %v3758
        %4746 = vmatpush1.bf16.msra.mxu0 %v3757
        %4747 = vmatprep.subr.bf16.mxu0 %v3766
        %4748 = vmatpush1.bf16.msra.mxu0 %v3765
        %4749 = vmatprep.subr.bf16.mxu0 %v3774
        %4750 = vmatpush1.bf16.msra.mxu0 %v3773
        %4751 = vmatprep.subr.bf16.mxu0 %v3782
        %4752 = vmatpush1.bf16.msra.mxu0 %v3781
        %4753 = vmatprep.subr.bf16.mxu0 %v3790
        %4754 = vmatpush1.bf16.msra.mxu0 %v3789
        %4755 = vmatprep.subr.bf16.mxu0 %v3798
        %4756 = vmatpush1.bf16.msra.mxu0 %v3797
        %4757 = vmatprep.subr.bf16.mxu0 %v3806
        %4758 = vmatpush1.bf16.msra.mxu0 %v3805
        %4759 = vmatprep.subr.bf16.mxu0 %v3814
        %4760 = vmatpush1.bf16.msra.mxu0 %v3813
        %4761 = vmatprep.subr.bf16.mxu0 %v3822
        %4762 = vmatpush1.bf16.msra.mxu0 %v3821
        %4763 = vmatprep.subr.bf16.mxu0 %v3830
        %4764 = vmatpush1.bf16.msra.mxu0 %v3829
        %4765 = vmatprep.subr.bf16.mxu0 %v3838
        %4766 = vmatpush1.bf16.msra.mxu0 %v3837
        %4767 = vmatprep.subr.bf16.mxu0 %v3846
        %4768 = vmatpush1.bf16.msra.mxu0 %v3845
        %4769 = vmatprep.mubr.bf16.mxu0 %v1920
        %4770 = vmatmul.mubr.bf16.gmra.mrb[0].mxu0 %v1919
        %v4771 = vpop.f32.mrb[0].mxu0
        %v4772 = vadd.f32 %v4731, %v4771
        %v4773 = vpop.f32.mrb[0].mxu0
        %v4774 = vadd.f32 %v4733, %v4773
        %v4775 = vpop.f32.mrb[0].mxu0
        %v4776 = vpop.f32.mrb[0].mxu0
        %4777 = vdwg.mxu0
        %4778 = vmatprep.subr.bf16.mxu0 %v3854
        %4779 = vmatpush1.bf16.msra.mxu0 %v3853
        %4780 = vmatprep.subr.bf16.mxu0 %v3862
        %4781 = vmatpush1.bf16.msra.mxu0 %v3861
        %4782 = vmatprep.subr.bf16.mxu0 %v3870
        %4783 = vmatpush1.bf16.msra.mxu0 %v3869
        %4784 = vmatprep.subr.bf16.mxu0 %v3878
        %4785 = vmatpush1.bf16.msra.mxu0 %v3877
        %4786 = vmatprep.subr.bf16.mxu0 %v3886
        %4787 = vmatpush1.bf16.msra.mxu0 %v3885
        %4788 = vmatprep.subr.bf16.mxu0 %v3894
        %4789 = vmatpush1.bf16.msra.mxu0 %v3893
        %4790 = vmatprep.subr.bf16.mxu0 %v3902
        %4791 = vmatpush1.bf16.msra.mxu0 %v3901
        %4792 = vmatprep.subr.bf16.mxu0 %v3910
        %4793 = vmatpush1.bf16.msra.mxu0 %v3909
        %4794 = vmatprep.subr.bf16.mxu0 %v3918
        %4795 = vmatpush1.bf16.msra.mxu0 %v3917
        %4796 = vmatprep.subr.bf16.mxu0 %v3926
        %4797 = vmatpush1.bf16.msra.mxu0 %v3925
        %4798 = vmatprep.subr.bf16.mxu0 %v3934
        %4799 = vmatpush1.bf16.msra.mxu0 %v3933
        %4800 = vmatprep.subr.bf16.mxu0 %v3942
        %4801 = vmatpush1.bf16.msra.mxu0 %v3941
        %4802 = vmatprep.subr.bf16.mxu0 %v3950
        %4803 = vmatpush1.bf16.msra.mxu0 %v3949
        %4804 = vmatprep.subr.bf16.mxu0 %v3958
        %4805 = vmatpush1.bf16.msra.mxu0 %v3957
        %4806 = vmatprep.subr.bf16.mxu0 %v3966
        %4807 = vmatpush1.bf16.msra.mxu0 %v3965
        %4808 = vmatprep.subr.bf16.mxu0 %v3974
        %4809 = vmatpush1.bf16.msra.mxu0 %v3973
        %4810 = vmatprep.mubr.bf16.mxu0 %v1922
        %4811 = vmatmul.mubr.bf16.gmra.mrb[0].mxu0 %v1921
        %v4812 = vpop.f32.mrb[0].mxu0
        %v4813 = vadd.f32 %v4772, %v4812
        %v4814 = vpop.f32.mrb[0].mxu0
        %v4815 = vadd.f32 %v4774, %v4814
        %v4816 = vpop.f32.mrb[0].mxu0
        %v4817 = vpop.f32.mrb[0].mxu0
        %4818 = vdwg.mxu0
        %4819 = vmatprep.subr.bf16.mxu0 %v3472
        %4820 = vmatpush1.bf16.msra.mxu0 %v3471
        %4821 = vmatprep.subr.bf16.mxu0 %v3480
        %4822 = vmatpush1.bf16.msra.mxu0 %v3479
        %4823 = vmatprep.subr.bf16.mxu0 %v3488
        %4824 = vmatpush1.bf16.msra.mxu0 %v3487
        %4825 = vmatprep.subr.bf16.mxu0 %v3496
        %4826 = vmatpush1.bf16.msra.mxu0 %v3495
        %4827 = vmatprep.subr.bf16.mxu0 %v3504
        %4828 = vmatpush1.bf16.msra.mxu0 %v3503
        %4829 = vmatprep.subr.bf16.mxu0 %v3512
        %4830 = vmatpush1.bf16.msra.mxu0 %v3511
        %4831 = vmatprep.subr.bf16.mxu0 %v3520
        %4832 = vmatpush1.bf16.msra.mxu0 %v3519
        %4833 = vmatprep.subr.bf16.mxu0 %v3528
        %4834 = vmatpush1.bf16.msra.mxu0 %v3527
        %4835 = vmatprep.subr.bf16.mxu0 %v3536
        %4836 = vmatpush1.bf16.msra.mxu0 %v3535
        %4837 = vmatprep.subr.bf16.mxu0 %v3544
        %4838 = vmatpush1.bf16.msra.mxu0 %v3543
        %4839 = vmatprep.subr.bf16.mxu0 %v3552
        %4840 = vmatpush1.bf16.msra.mxu0 %v3551
        %4841 = vmatprep.subr.bf16.mxu0 %v3560
        %4842 = vmatpush1.bf16.msra.mxu0 %v3559
        %4843 = vmatprep.subr.bf16.mxu0 %v3568
        %4844 = vmatpush1.bf16.msra.mxu0 %v3567
        %4845 = vmatprep.subr.bf16.mxu0 %v3576
        %4846 = vmatpush1.bf16.msra.mxu0 %v3575
        %4847 = vmatprep.subr.bf16.mxu0 %v3584
        %4848 = vmatpush1.bf16.msra.mxu0 %v3583
        %4849 = vmatprep.subr.bf16.mxu0 %v3592
        %4850 = vmatpush1.bf16.msra.mxu0 %v3591
        %4851 = vmatprep.mubr.bf16.mxu0 %v1916
        %4852 = vmatmul.mubr.bf16.gmra.mrb[0].mxu0 %v1915
        %v4853 = vpop.f32.mrb[0].mxu0
        %v4854 = vadd.f32 %v1882, %v4853
        %v4855 = vpop.f32.mrb[0].mxu0
        %v4856 = vadd.f32 %v1886, %v4855
        %v4857 = vpop.f32.mrb[0].mxu0
        %v4858 = vpop.f32.mrb[0].mxu0
        %4859 = vdwg.mxu0
        %4860 = vmatprep.subr.bf16.mxu0 %v3600
        %4861 = vmatpush1.bf16.msra.mxu0 %v3599
        %4862 = vmatprep.subr.bf16.mxu0 %v3608
        %4863 = vmatpush1.bf16.msra.mxu0 %v3607
        %4864 = vmatprep.subr.bf16.mxu0 %v3616
        %4865 = vmatpush1.bf16.msra.mxu0 %v3615
        %4866 = vmatprep.subr.bf16.mxu0 %v3624
        %4867 = vmatpush1.bf16.msra.mxu0 %v3623
        %4868 = vmatprep.subr.bf16.mxu0 %v3632
        %4869 = vmatpush1.bf16.msra.mxu0 %v3631
        %4870 = vmatprep.subr.bf16.mxu0 %v3640
        %4871 = vmatpush1.bf16.msra.mxu0 %v3639
        %4872 = vmatprep.subr.bf16.mxu0 %v3648
        %4873 = vmatpush1.bf16.msra.mxu0 %v3647
        %4874 = vmatprep.subr.bf16.mxu0 %v3656
        %4875 = vmatpush1.bf16.msra.mxu0 %v3655
        %4876 = vmatprep.subr.bf16.mxu0 %v3664
        %4877 = vmatpush1.bf16.msra.mxu0 %v3663
        %4878 = vmatprep.subr.bf16.mxu0 %v3672
        %4879 = vmatpush1.bf16.msra.mxu0 %v3671
        %4880 = vmatprep.subr.bf16.mxu0 %v3680
        %4881 = vmatpush1.bf16.msra.mxu0 %v3679
        %4882 = vmatprep.subr.bf16.mxu0 %v3688
        %4883 = vmatpush1.bf16.msra.mxu0 %v3687
        %4884 = vmatprep.subr.bf16.mxu0 %v3696
        %4885 = vmatpush1.bf16.msra.mxu0 %v3695
        %4886 = vmatprep.subr.bf16.mxu0 %v3704
        %4887 = vmatpush1.bf16.msra.mxu0 %v3703
        %4888 = vmatprep.subr.bf16.mxu0 %v3712
        %4889 = vmatpush1.bf16.msra.mxu0 %v3711
        %4890 = vmatprep.subr.bf16.mxu0 %v3720
        %4891 = vmatpush1.bf16.msra.mxu0 %v3719
        %4892 = vmatprep.mubr.bf16.mxu0 %v1918
        %4893 = vmatmul.mubr.bf16.gmra.mrb[0].mxu0 %v1917
        %v4894 = vpop.f32.mrb[0].mxu0
        %v4895 = vadd.f32 %v4854, %v4894
        %v4896 = vpop.f32.mrb[0].mxu0
        %v4897 = vadd.f32 %v4856, %v4896
        %v4898 = vpop.f32.mrb[0].mxu0
        %v4899 = vpop.f32.mrb[0].mxu0
        %4900 = vdwg.mxu0
        %4901 = vmatprep.subr.bf16.mxu0 %v3728
        %4902 = vmatpush1.bf16.msra.mxu0 %v3727
        %4903 = vmatprep.subr.bf16.mxu0 %v3736
        %4904 = vmatpush1.bf16.msra.mxu0 %v3735
        %4905 = vmatprep.subr.bf16.mxu0 %v3744
        %4906 = vmatpush1.bf16.msra.mxu0 %v3743
        %4907 = vmatprep.subr.bf16.mxu0 %v3752
        %4908 = vmatpush1.bf16.msra.mxu0 %v3751
        %4909 = vmatprep.subr.bf16.mxu0 %v3760
        %4910 = vmatpush1.bf16.msra.mxu0 %v3759
        %4911 = vmatprep.subr.bf16.mxu0 %v3768
        %4912 = vmatpush1.bf16.msra.mxu0 %v3767
        %4913 = vmatprep.subr.bf16.mxu0 %v3776
        %4914 = vmatpush1.bf16.msra.mxu0 %v3775
        %4915 = vmatprep.subr.bf16.mxu0 %v3784
        %4916 = vmatpush1.bf16.msra.mxu0 %v3783
        %4917 = vmatprep.subr.bf16.mxu0 %v3792
        %4918 = vmatpush1.bf16.msra.mxu0 %v3791
        %4919 = vmatprep.subr.bf16.mxu0 %v3800
        %4920 = vmatpush1.bf16.msra.mxu0 %v3799
        %4921 = vmatprep.subr.bf16.mxu0 %v3808
        %4922 = vmatpush1.bf16.msra.mxu0 %v3807
        %4923 = vmatprep.subr.bf16.mxu0 %v3816
        %4924 = vmatpush1.bf16.msra.mxu0 %v3815
        %4925 = vmatprep.subr.bf16.mxu0 %v3824
        %4926 = vmatpush1.bf16.msra.mxu0 %v3823
        %4927 = vmatprep.subr.bf16.mxu0 %v3832
        %4928 = vmatpush1.bf16.msra.mxu0 %v3831
        %4929 = vmatprep.subr.bf16.mxu0 %v3840
        %4930 = vmatpush1.bf16.msra.mxu0 %v3839
        %4931 = vmatprep.subr.bf16.mxu0 %v3848
        %4932 = vmatpush1.bf16.msra.mxu0 %v3847
        %4933 = vmatprep.mubr.bf16.mxu0 %v1920
        %4934 = vmatmul.mubr.bf16.gmra.mrb[0].mxu0 %v1919
        %v4935 = vpop.f32.mrb[0].mxu0
        %v4936 = vadd.f32 %v4895, %v4935
        %v4937 = vpop.f32.mrb[0].mxu0
        %v4938 = vadd.f32 %v4897, %v4937
        %v4939 = vpop.f32.mrb[0].mxu0
        %v4940 = vpop.f32.mrb[0].mxu0
        %4941 = vdwg.mxu0
        %4942 = vmatprep.subr.bf16.mxu0 %v3856
        %4943 = vmatpush1.bf16.msra.mxu0 %v3855
        %4944 = vmatprep.subr.bf16.mxu0 %v3864
        %4945 = vmatpush1.bf16.msra.mxu0 %v3863
        %4946 = vmatprep.subr.bf16.mxu0 %v3872
        %4947 = vmatpush1.bf16.msra.mxu0 %v3871
        %4948 = vmatprep.subr.bf16.mxu0 %v3880
        %4949 = vmatpush1.bf16.msra.mxu0 %v3879
        %4950 = vmatprep.subr.bf16.mxu0 %v3888
        %4951 = vmatpush1.bf16.msra.mxu0 %v3887
        %4952 = vmatprep.subr.bf16.mxu0 %v3896
        %4953 = vmatpush1.bf16.msra.mxu0 %v3895
        %4954 = vmatprep.subr.bf16.mxu0 %v3904
        %4955 = vmatpush1.bf16.msra.mxu0 %v3903
        %4956 = vmatprep.subr.bf16.mxu0 %v3912
        %4957 = vmatpush1.bf16.msra.mxu0 %v3911
        %4958 = vmatprep.subr.bf16.mxu0 %v3920
        %4959 = vmatpush1.bf16.msra.mxu0 %v3919
        %4960 = vmatprep.subr.bf16.mxu0 %v3928
        %4961 = vmatpush1.bf16.msra.mxu0 %v3927
        %4962 = vmatprep.subr.bf16.mxu0 %v3936
        %4963 = vmatpush1.bf16.msra.mxu0 %v3935
        %4964 = vmatprep.subr.bf16.mxu0 %v3944
        %4965 = vmatpush1.bf16.msra.mxu0 %v3943
        %4966 = vmatprep.subr.bf16.mxu0 %v3952
        %4967 = vmatpush1.bf16.msra.mxu0 %v3951
        %4968 = vmatprep.subr.bf16.mxu0 %v3960
        %4969 = vmatpush1.bf16.msra.mxu0 %v3959
        %4970 = vmatprep.subr.bf16.mxu0 %v3968
        %4971 = vmatpush1.bf16.msra.mxu0 %v3967
        %4972 = vmatprep.subr.bf16.mxu0 %v3976
        %4973 = vmatpush1.bf16.msra.mxu0 %v3975
        %4974 = vmatprep.mubr.bf16.mxu0 %v1922
        %4975 = vmatmul.mubr.bf16.gmra.mrb[0].mxu0 %v1921
        %v4976 = vpop.f32.mrb[0].mxu0
        %v4977 = vadd.f32 %v4936, %v4976
        %v4978 = vpop.f32.mrb[0].mxu0
        %v4979 = vadd.f32 %v4938, %v4978
        %v4980 = vpop.f32.mrb[0].mxu0
        %v4981 = vpop.f32.mrb[0].mxu0
        %4982 = vdwg.mxu0
        %4983 = vmatprep.subr.bf16.mxu0 %v3474
        %4984 = vmatpush1.bf16.msra.mxu0 %v3473
        %4985 = vmatprep.subr.bf16.mxu0 %v3482
        %4986 = vmatpush1.bf16.msra.mxu0 %v3481
        %4987 = vmatprep.subr.bf16.mxu0 %v3490
        %4988 = vmatpush1.bf16.msra.mxu0 %v3489
        %4989 = vmatprep.subr.bf16.mxu0 %v3498
        %4990 = vmatpush1.bf16.msra.mxu0 %v3497
        %4991 = vmatprep.subr.bf16.mxu0 %v3506
        %4992 = vmatpush1.bf16.msra.mxu0 %v3505
        %4993 = vmatprep.subr.bf16.mxu0 %v3514
        %4994 = vmatpush1.bf16.msra.mxu0 %v3513
        %4995 = vmatprep.subr.bf16.mxu0 %v3522
        %4996 = vmatpush1.bf16.msra.mxu0 %v3521
        %4997 = vmatprep.subr.bf16.mxu0 %v3530
        %4998 = vmatpush1.bf16.msra.mxu0 %v3529
        %4999 = vmatprep.subr.bf16.mxu0 %v3538
        %5000 = vmatpush1.bf16.msra.mxu0 %v3537
        %5001 = vmatprep.subr.bf16.mxu0 %v3546
        %5002 = vmatpush1.bf16.msra.mxu0 %v3545
        %5003 = vmatprep.subr.bf16.mxu0 %v3554
        %5004 = vmatpush1.bf16.msra.mxu0 %v3553
        %5005 = vmatprep.subr.bf16.mxu0 %v3562
        %5006 = vmatpush1.bf16.msra.mxu0 %v3561
        %5007 = vmatprep.subr.bf16.mxu0 %v3570
        %5008 = vmatpush1.bf16.msra.mxu0 %v3569
        %5009 = vmatprep.subr.bf16.mxu0 %v3578
        %5010 = vmatpush1.bf16.msra.mxu0 %v3577
        %5011 = vmatprep.subr.bf16.mxu0 %v3586
        %5012 = vmatpush1.bf16.msra.mxu0 %v3585
        %5013 = vmatprep.subr.bf16.mxu0 %v3594
        %5014 = vmatpush1.bf16.msra.mxu0 %v3593
        %5015 = vmatprep.mubr.bf16.mxu0 %v1916
        %5016 = vmatmul.mubr.bf16.gmra.mrb[0].mxu0 %v1915
        %v5017 = vpop.f32.mrb[0].mxu0
        %v5018 = vadd.f32 %v1890, %v5017
        %v5019 = vpop.f32.mrb[0].mxu0
        %v5020 = vadd.f32 %v1894, %v5019
        %v5021 = vpop.f32.mrb[0].mxu0
        %v5022 = vpop.f32.mrb[0].mxu0
        %5023 = vdwg.mxu0
        %5024 = vmatprep.subr.bf16.mxu0 %v3602
        %5025 = vmatpush1.bf16.msra.mxu0 %v3601
        %5026 = vmatprep.subr.bf16.mxu0 %v3610
        %5027 = vmatpush1.bf16.msra.mxu0 %v3609
        %5028 = vmatprep.subr.bf16.mxu0 %v3618
        %5029 = vmatpush1.bf16.msra.mxu0 %v3617
        %5030 = vmatprep.subr.bf16.mxu0 %v3626
        %5031 = vmatpush1.bf16.msra.mxu0 %v3625
        %5032 = vmatprep.subr.bf16.mxu0 %v3634
        %5033 = vmatpush1.bf16.msra.mxu0 %v3633
        %5034 = vmatprep.subr.bf16.mxu0 %v3642
        %5035 = vmatpush1.bf16.msra.mxu0 %v3641
        %5036 = vmatprep.subr.bf16.mxu0 %v3650
        %5037 = vmatpush1.bf16.msra.mxu0 %v3649
        %5038 = vmatprep.subr.bf16.mxu0 %v3658
        %5039 = vmatpush1.bf16.msra.mxu0 %v3657
        %5040 = vmatprep.subr.bf16.mxu0 %v3666
        %5041 = vmatpush1.bf16.msra.mxu0 %v3665
        %5042 = vmatprep.subr.bf16.mxu0 %v3674
        %5043 = vmatpush1.bf16.msra.mxu0 %v3673
        %5044 = vmatprep.subr.bf16.mxu0 %v3682
        %5045 = vmatpush1.bf16.msra.mxu0 %v3681
        %5046 = vmatprep.subr.bf16.mxu0 %v3690
        %5047 = vmatpush1.bf16.msra.mxu0 %v3689
        %5048 = vmatprep.subr.bf16.mxu0 %v3698
        %5049 = vmatpush1.bf16.msra.mxu0 %v3697
        %5050 = vmatprep.subr.bf16.mxu0 %v3706
        %5051 = vmatpush1.bf16.msra.mxu0 %v3705
        %5052 = vmatprep.subr.bf16.mxu0 %v3714
        %5053 = vmatpush1.bf16.msra.mxu0 %v3713
        %5054 = vmatprep.subr.bf16.mxu0 %v3722
        %5055 = vmatpush1.bf16.msra.mxu0 %v3721
        %5056 = vmatprep.mubr.bf16.mxu0 %v1918
        %5057 = vmatmul.mubr.bf16.gmra.mrb[0].mxu0 %v1917
        %v5058 = vpop.f32.mrb[0].mxu0
        %v5059 = vadd.f32 %v5018, %v5058
        %v5060 = vpop.f32.mrb[0].mxu0
        %v5061 = vadd.f32 %v5020, %v5060
        %v5062 = vpop.f32.mrb[0].mxu0
        %v5063 = vpop.f32.mrb[0].mxu0
        %5064 = vdwg.mxu0
        %5065 = vmatprep.subr.bf16.mxu0 %v3730
        %5066 = vmatpush1.bf16.msra.mxu0 %v3729
        %5067 = vmatprep.subr.bf16.mxu0 %v3738
        %5068 = vmatpush1.bf16.msra.mxu0 %v3737
        %5069 = vmatprep.subr.bf16.mxu0 %v3746
        %5070 = vmatpush1.bf16.msra.mxu0 %v3745
        %5071 = vmatprep.subr.bf16.mxu0 %v3754
        %5072 = vmatpush1.bf16.msra.mxu0 %v3753
        %5073 = vmatprep.subr.bf16.mxu0 %v3762
        %5074 = vmatpush1.bf16.msra.mxu0 %v3761
        %5075 = vmatprep.subr.bf16.mxu0 %v3770
        %5076 = vmatpush1.bf16.msra.mxu0 %v3769
        %5077 = vmatprep.subr.bf16.mxu0 %v3778
        %5078 = vmatpush1.bf16.msra.mxu0 %v3777
        %5079 = vmatprep.subr.bf16.mxu0 %v3786
        %5080 = vmatpush1.bf16.msra.mxu0 %v3785
        %5081 = vmatprep.subr.bf16.mxu0 %v3794
        %5082 = vmatpush1.bf16.msra.mxu0 %v3793
        %5083 = vmatprep.subr.bf16.mxu0 %v3802
        %5084 = vmatpush1.bf16.msra.mxu0 %v3801
        %5085 = vmatprep.subr.bf16.mxu0 %v3810
        %5086 = vmatpush1.bf16.msra.mxu0 %v3809
        %5087 = vmatprep.subr.bf16.mxu0 %v3818
        %5088 = vmatpush1.bf16.msra.mxu0 %v3817
        %5089 = vmatprep.subr.bf16.mxu0 %v3826
        %5090 = vmatpush1.bf16.msra.mxu0 %v3825
        %5091 = vmatprep.subr.bf16.mxu0 %v3834
        %5092 = vmatpush1.bf16.msra.mxu0 %v3833
        %5093 = vmatprep.subr.bf16.mxu0 %v3842
        %5094 = vmatpush1.bf16.msra.mxu0 %v3841
        %5095 = vmatprep.subr.bf16.mxu0 %v3850
        %5096 = vmatpush1.bf16.msra.mxu0 %v3849
        %5097 = vmatprep.mubr.bf16.mxu0 %v1920
        %5098 = vmatmul.mubr.bf16.gmra.mrb[0].mxu0 %v1919
        %v5099 = vpop.f32.mrb[0].mxu0
        %v5100 = vadd.f32 %v5059, %v5099
        %v5101 = vpop.f32.mrb[0].mxu0
        %v5102 = vadd.f32 %v5061, %v5101
        %v5103 = vpop.f32.mrb[0].mxu0
        %v5104 = vpop.f32.mrb[0].mxu0
        %5105 = vdwg.mxu0
        %5106 = vmatprep.subr.bf16.mxu0 %v3858
        %5107 = vmatpush1.bf16.msra.mxu0 %v3857
        %5108 = vmatprep.subr.bf16.mxu0 %v3866
        %5109 = vmatpush1.bf16.msra.mxu0 %v3865
        %5110 = vmatprep.subr.bf16.mxu0 %v3874
        %5111 = vmatpush1.bf16.msra.mxu0 %v3873
        %5112 = vmatprep.subr.bf16.mxu0 %v3882
        %5113 = vmatpush1.bf16.msra.mxu0 %v3881
        %5114 = vmatprep.subr.bf16.mxu0 %v3890
        %5115 = vmatpush1.bf16.msra.mxu0 %v3889
        %5116 = vmatprep.subr.bf16.mxu0 %v3898
        %5117 = vmatpush1.bf16.msra.mxu0 %v3897
        %5118 = vmatprep.subr.bf16.mxu0 %v3906
        %5119 = vmatpush1.bf16.msra.mxu0 %v3905
        %5120 = vmatprep.subr.bf16.mxu0 %v3914
        %5121 = vmatpush1.bf16.msra.mxu0 %v3913
        %5122 = vmatprep.subr.bf16.mxu0 %v3922
        %5123 = vmatpush1.bf16.msra.mxu0 %v3921
        %5124 = vmatprep.subr.bf16.mxu0 %v3930
        %5125 = vmatpush1.bf16.msra.mxu0 %v3929
        %5126 = vmatprep.subr.bf16.mxu0 %v3938
        %5127 = vmatpush1.bf16.msra.mxu0 %v3937
        %5128 = vmatprep.subr.bf16.mxu0 %v3946
        %5129 = vmatpush1.bf16.msra.mxu0 %v3945
        %5130 = vmatprep.subr.bf16.mxu0 %v3954
        %5131 = vmatpush1.bf16.msra.mxu0 %v3953
        %5132 = vmatprep.subr.bf16.mxu0 %v3962
        %5133 = vmatpush1.bf16.msra.mxu0 %v3961
        %5134 = vmatprep.subr.bf16.mxu0 %v3970
        %5135 = vmatpush1.bf16.msra.mxu0 %v3969
        %5136 = vmatprep.subr.bf16.mxu0 %v3978
        %5137 = vmatpush1.bf16.msra.mxu0 %v3977
        %5138 = vmatprep.mubr.bf16.mxu0 %v1922
        %5139 = vmatmul.mubr.bf16.gmra.mrb[0].mxu0 %v1921
        %v5140 = vpop.f32.mrb[0].mxu0
        %v5141 = vadd.f32 %v5100, %v5140
        %v5142 = vpop.f32.mrb[0].mxu0
        %v5143 = vadd.f32 %v5102, %v5142
        %v5144 = vpop.f32.mrb[0].mxu0
        %v5145 = vpop.f32.mrb[0].mxu0
        %5146 = vdwg.mxu0
        %v5147 = vmax.f32 %v4649, 0.0
        %v5148 = vmax.f32 %v4651, 0.0
        %v5149 = vmax.f32 %v4813, 0.0
        %v5150 = vmax.f32 %v4815, 0.0
        %v5151 = vmax.f32 %v4977, 0.0
        %v5152 = vmax.f32 %v4979, 0.0
        %v5153 = vmax.f32 %v5141, 0.0
        %v5154 = vmax.f32 %v5143, 0.0
        %v5155 = vld [vmem:[%s1338] sm:$0xff]
        %v5156 = vpack.c.bf16 %v5147, %v5147
        %v5157 = vpack.c.bf16 %v5148, %v5148
        %v5158 = vpack.c.bf16 %v5149, %v5149
        %v5159 = vpack.c.bf16 %v5150, %v5150
        %v5160 = vpack.c.bf16 %v5151, %v5151
        %v5161 = vpack.c.bf16 %v5152, %v5152
        %v5162 = vpack.c.bf16 %v5153, %v5153
        %v5163 = vpack.c.bf16 %v5154, %v5154
        %v5164 = vld [vmem:[%s1333] sm:$0xf]
        %v5165 = vld [vmem:[%s1333 + $0x4] sm:$0xf]
        %v5166 = vld [vmem:[%s1333 + $0x8] sm:$0xf]
        %v5167 = vld [vmem:[%s1333 + $0xc] sm:$0xf]
        %v5168 = vld [vmem:[%s1333 + $0x10] sm:$0xf]
        %v5169 = vld [vmem:[%s1333 + $0x14] sm:$0xf]
        %v5170 = vld [vmem:[%s1333 + $0x18] sm:$0xf]
        %v5171 = vld [vmem:[%s1333 + $0x1c] sm:$0xf]
        %v5172 = vld [vmem:[%s1333 + $0x20] sm:$0xf]
        %v5173 = vld [vmem:[%s1333 + $0x24] sm:$0xf]
        %v5174 = vld [vmem:[%s1333 + $0x28] sm:$0xf]
        %v5175 = vld [vmem:[%s1333 + $0x2c] sm:$0xf]
        %v5176 = vld [vmem:[%s1333 + $0x30] sm:$0xf]
        %v5177 = vld [vmem:[%s1333 + $0x34] sm:$0xf]
        %v5178 = vld [vmem:[%s1333 + $0x38] sm:$0xf]
        %v5179 = vld [vmem:[%s1333 + $0x3c] sm:$0xf]
        %v5180 = vld [vmem:[%s1333 + $0x40] sm:$0xf]
        %v5181 = vld [vmem:[%s1333 + $0x44] sm:$0xf]
        %v5182 = vld [vmem:[%s1333 + $0x48] sm:$0xf]
        %v5183 = vld [vmem:[%s1333 + $0x4c] sm:$0xf]
        %v5184 = vld [vmem:[%s1333 + $0x50] sm:$0xf]
        %v5185 = vld [vmem:[%s1333 + $0x54] sm:$0xf]
        %v5186 = vld [vmem:[%s1333 + $0x58] sm:$0xf]
        %v5187 = vld [vmem:[%s1333 + $0x5c] sm:$0xf]
        %v5188 = vld [vmem:[%s1333 + $0x60] sm:$0xf]
        %v5189 = vld [vmem:[%s1333 + $0x64] sm:$0xf]
        %v5190 = vld [vmem:[%s1333 + $0x68] sm:$0xf]
        %v5191 = vld [vmem:[%s1333 + $0x6c] sm:$0xf]
        %v5192 = vld [vmem:[%s1333 + $0x70] sm:$0xf]
        %v5193 = vld [vmem:[%s1333 + $0x74] sm:$0xf]
        %v5194 = vld [vmem:[%s1333 + $0x78] sm:$0xf]
        %v5195 = vld [vmem:[%s1333 + $0x7c] sm:$0xf]
        %v5196 = vld [vmem:[%s1333 + $0x80] sm:$0xf]
        %v5197 = vld [vmem:[%s1333 + $0x84] sm:$0xf]
        %v5198 = vld [vmem:[%s1333 + $0x88] sm:$0xf]
        %v5199 = vld [vmem:[%s1333 + $0x8c] sm:$0xf]
        %v5200 = vld [vmem:[%s1333 + $0x90] sm:$0xf]
        %v5201 = vld [vmem:[%s1333 + $0x94] sm:$0xf]
        %v5202 = vld [vmem:[%s1333 + $0x98] sm:$0xf]
        %v5203 = vld [vmem:[%s1333 + $0x9c] sm:$0xf]
        %v5204 = vld [vmem:[%s1333 + $0xa0] sm:$0xf]
        %v5205 = vld [vmem:[%s1333 + $0xa4] sm:$0xf]
        %v5206 = vld [vmem:[%s1333 + $0xa8] sm:$0xf]
        %v5207 = vld [vmem:[%s1333 + $0xac] sm:$0xf]
        %v5208 = vld [vmem:[%s1333 + $0xb0] sm:$0xf]
        %v5209 = vld [vmem:[%s1333 + $0xb4] sm:$0xf]
        %v5210 = vld [vmem:[%s1333 + $0xb8] sm:$0xf]
        %v5211 = vld [vmem:[%s1333 + $0xbc] sm:$0xf]
        %v5212 = vld [vmem:[%s1333 + $0xc0] sm:$0xf]
        %v5213 = vld [vmem:[%s1333 + $0xc4] sm:$0xf]
        %v5214 = vld [vmem:[%s1333 + $0xc8] sm:$0xf]
        %v5215 = vld [vmem:[%s1333 + $0xcc] sm:$0xf]
        %v5216 = vld [vmem:[%s1333 + $0xd0] sm:$0xf]
        %v5217 = vld [vmem:[%s1333 + $0xd4] sm:$0xf]
        %v5218 = vld [vmem:[%s1333 + $0xd8] sm:$0xf]
        %v5219 = vld [vmem:[%s1333 + $0xdc] sm:$0xf]
        %v5220 = vld [vmem:[%s1333 + $0xe0] sm:$0xf]
        %v5221 = vld [vmem:[%s1333 + $0xe4] sm:$0xf]
        %v5222 = vld [vmem:[%s1333 + $0xe8] sm:$0xf]
        %v5223 = vld [vmem:[%s1333 + $0xec] sm:$0xf]
        %v5224 = vld [vmem:[%s1333 + $0xf0] sm:$0xf]
        %v5225 = vld [vmem:[%s1333 + $0xf4] sm:$0xf]
        %v5226 = vld [vmem:[%s1333 + $0xf8] sm:$0xf]
        %v5227 = vld [vmem:[%s1333 + $0xfc] sm:$0xf]
        %v5228 = vld [vmem:[%s1333 + $0x100] sm:$0xf]
        %v5229 = vld [vmem:[%s1333 + $0x104] sm:$0xf]
        %v5230 = vld [vmem:[%s1333 + $0x108] sm:$0xf]
        %v5231 = vld [vmem:[%s1333 + $0x10c] sm:$0xf]
        %v5232 = vld [vmem:[%s1333 + $0x110] sm:$0xf]
        %v5233 = vld [vmem:[%s1333 + $0x114] sm:$0xf]
        %v5234 = vld [vmem:[%s1333 + $0x118] sm:$0xf]
        %v5235 = vld [vmem:[%s1333 + $0x11c] sm:$0xf]
        %v5236 = vld [vmem:[%s1333 + $0x120] sm:$0xf]
        %v5237 = vld [vmem:[%s1333 + $0x124] sm:$0xf]
        %v5238 = vld [vmem:[%s1333 + $0x128] sm:$0xf]
        %v5239 = vld [vmem:[%s1333 + $0x12c] sm:$0xf]
        %v5240 = vld [vmem:[%s1333 + $0x130] sm:$0xf]
        %v5241 = vld [vmem:[%s1333 + $0x134] sm:$0xf]
        %v5242 = vld [vmem:[%s1333 + $0x138] sm:$0xf]
        %v5243 = vld [vmem:[%s1333 + $0x13c] sm:$0xf]
        %v5244 = vld [vmem:[%s1333 + $0x140] sm:$0xf]
        %v5245 = vld [vmem:[%s1333 + $0x144] sm:$0xf]
        %v5246 = vld [vmem:[%s1333 + $0x148] sm:$0xf]
        %v5247 = vld [vmem:[%s1333 + $0x14c] sm:$0xf]
        %v5248 = vld [vmem:[%s1333 + $0x150] sm:$0xf]
        %v5249 = vld [vmem:[%s1333 + $0x154] sm:$0xf]
        %v5250 = vld [vmem:[%s1333 + $0x158] sm:$0xf]
        %v5251 = vld [vmem:[%s1333 + $0x15c] sm:$0xf]
        %v5252 = vld [vmem:[%s1333 + $0x160] sm:$0xf]
        %v5253 = vld [vmem:[%s1333 + $0x164] sm:$0xf]
        %v5254 = vld [vmem:[%s1333 + $0x168] sm:$0xf]
        %v5255 = vld [vmem:[%s1333 + $0x16c] sm:$0xf]
        %v5256 = vld [vmem:[%s1333 + $0x170] sm:$0xf]
        %v5257 = vld [vmem:[%s1333 + $0x174] sm:$0xf]
        %v5258 = vld [vmem:[%s1333 + $0x178] sm:$0xf]
        %v5259 = vld [vmem:[%s1333 + $0x17c] sm:$0xf]
        %v5260 = vld [vmem:[%s1333 + $0x180] sm:$0xf]
        %v5261 = vld [vmem:[%s1333 + $0x184] sm:$0xf]
        %v5262 = vld [vmem:[%s1333 + $0x188] sm:$0xf]
        %v5263 = vld [vmem:[%s1333 + $0x18c] sm:$0xf]
        %v5264 = vld [vmem:[%s1333 + $0x190] sm:$0xf]
        %v5265 = vld [vmem:[%s1333 + $0x194] sm:$0xf]
        %v5266 = vld [vmem:[%s1333 + $0x198] sm:$0xf]
        %v5267 = vld [vmem:[%s1333 + $0x19c] sm:$0xf]
        %v5268 = vld [vmem:[%s1333 + $0x1a0] sm:$0xf]
        %v5269 = vld [vmem:[%s1333 + $0x1a4] sm:$0xf]
        %v5270 = vld [vmem:[%s1333 + $0x1a8] sm:$0xf]
        %v5271 = vld [vmem:[%s1333 + $0x1ac] sm:$0xf]
        %v5272 = vld [vmem:[%s1333 + $0x1b0] sm:$0xf]
        %v5273 = vld [vmem:[%s1333 + $0x1b4] sm:$0xf]
        %v5274 = vld [vmem:[%s1333 + $0x1b8] sm:$0xf]
        %v5275 = vld [vmem:[%s1333 + $0x1bc] sm:$0xf]
        %v5276 = vld [vmem:[%s1333 + $0x1c0] sm:$0xf]
        %v5277 = vld [vmem:[%s1333 + $0x1c4] sm:$0xf]
        %v5278 = vld [vmem:[%s1333 + $0x1c8] sm:$0xf]
        %v5279 = vld [vmem:[%s1333 + $0x1cc] sm:$0xf]
        %v5280 = vld [vmem:[%s1333 + $0x1d0] sm:$0xf]
        %v5281 = vld [vmem:[%s1333 + $0x1d4] sm:$0xf]
        %v5282 = vld [vmem:[%s1333 + $0x1d8] sm:$0xf]
        %v5283 = vld [vmem:[%s1333 + $0x1dc] sm:$0xf]
        %v5284 = vld [vmem:[%s1333 + $0x1e0] sm:$0xf]
        %v5285 = vld [vmem:[%s1333 + $0x1e4] sm:$0xf]
        %v5286 = vld [vmem:[%s1333 + $0x1e8] sm:$0xf]
        %v5287 = vld [vmem:[%s1333 + $0x1ec] sm:$0xf]
        %v5288 = vld [vmem:[%s1333 + $0x1f0] sm:$0xf]
        %v5289 = vld [vmem:[%s1333 + $0x1f4] sm:$0xf]
        %v5290 = vld [vmem:[%s1333 + $0x1f8] sm:$0xf]
        %v5291 = vld [vmem:[%s1333 + $0x1fc] sm:$0xf]
        %v5420 = vunpack.c.l.b16 %v5164
        %v5421 = vunpack.c.l.b16 %v5165
        %v5422 = vunpack.c.l.b16 %v5166
        %v5423 = vunpack.c.l.b16 %v5167
        %v5424 = vunpack.c.l.b16 %v5168
        %v5425 = vunpack.c.l.b16 %v5169
        %v5426 = vunpack.c.l.b16 %v5170
        %v5427 = vunpack.c.l.b16 %v5171
        %v5428 = vunpack.c.l.b16 %v5172
        %v5429 = vunpack.c.l.b16 %v5173
        %v5430 = vunpack.c.l.b16 %v5174
        %v5431 = vunpack.c.l.b16 %v5175
        %v5432 = vunpack.c.l.b16 %v5176
        %v5433 = vunpack.c.l.b16 %v5177
        %v5434 = vunpack.c.l.b16 %v5178
        %v5435 = vunpack.c.l.b16 %v5179
        %v5436 = vunpack.c.l.b16 %v5180
        %v5437 = vunpack.c.l.b16 %v5181
        %v5438 = vunpack.c.l.b16 %v5182
        %v5439 = vunpack.c.l.b16 %v5183
        %v5440 = vunpack.c.l.b16 %v5184
        %v5441 = vunpack.c.l.b16 %v5185
        %v5442 = vunpack.c.l.b16 %v5186
        %v5443 = vunpack.c.l.b16 %v5187
        %v5444 = vunpack.c.l.b16 %v5188
        %v5445 = vunpack.c.l.b16 %v5189
        %v5446 = vunpack.c.l.b16 %v5190
        %v5447 = vunpack.c.l.b16 %v5191
        %v5448 = vunpack.c.l.b16 %v5192
        %v5449 = vunpack.c.l.b16 %v5193
        %v5450 = vunpack.c.l.b16 %v5194
        %v5451 = vunpack.c.l.b16 %v5195
        %v5452 = vunpack.c.l.b16 %v5196
        %v5453 = vunpack.c.l.b16 %v5197
        %v5454 = vunpack.c.l.b16 %v5198
        %v5455 = vunpack.c.l.b16 %v5199
        %v5456 = vunpack.c.l.b16 %v5200
        %v5457 = vunpack.c.l.b16 %v5201
        %v5458 = vunpack.c.l.b16 %v5202
        %v5459 = vunpack.c.l.b16 %v5203
        %v5460 = vunpack.c.l.b16 %v5204
        %v5461 = vunpack.c.l.b16 %v5205
        %v5462 = vunpack.c.l.b16 %v5206
        %v5463 = vunpack.c.l.b16 %v5207
        %v5464 = vunpack.c.l.b16 %v5208
        %v5465 = vunpack.c.l.b16 %v5209
        %v5466 = vunpack.c.l.b16 %v5210
        %v5467 = vunpack.c.l.b16 %v5211
        %v5468 = vunpack.c.l.b16 %v5212
        %v5469 = vunpack.c.l.b16 %v5213
        %v5470 = vunpack.c.l.b16 %v5214
        %v5471 = vunpack.c.l.b16 %v5215
        %v5472 = vunpack.c.l.b16 %v5216
        %v5473 = vunpack.c.l.b16 %v5217
        %v5474 = vunpack.c.l.b16 %v5218
        %v5475 = vunpack.c.l.b16 %v5219
        %v5476 = vunpack.c.l.b16 %v5220
        %v5477 = vunpack.c.l.b16 %v5221
        %v5478 = vunpack.c.l.b16 %v5222
        %v5479 = vunpack.c.l.b16 %v5223
        %v5480 = vunpack.c.l.b16 %v5224
        %v5481 = vunpack.c.l.b16 %v5225
        %v5482 = vunpack.c.l.b16 %v5226
        %v5483 = vunpack.c.l.b16 %v5227
        %v5484 = vunpack.c.l.b16 %v5228
        %v5485 = vunpack.c.l.b16 %v5229
        %v5486 = vunpack.c.l.b16 %v5230
        %v5487 = vunpack.c.l.b16 %v5231
        %v5488 = vunpack.c.l.b16 %v5232
        %v5489 = vunpack.c.l.b16 %v5233
        %v5490 = vunpack.c.l.b16 %v5234
        %v5491 = vunpack.c.l.b16 %v5235
        %v5492 = vunpack.c.l.b16 %v5236
        %v5493 = vunpack.c.l.b16 %v5237
        %v5494 = vunpack.c.l.b16 %v5238
        %v5495 = vunpack.c.l.b16 %v5239
        %v5496 = vunpack.c.l.b16 %v5240
        %v5497 = vunpack.c.l.b16 %v5241
        %v5498 = vunpack.c.l.b16 %v5242
        %v5499 = vunpack.c.l.b16 %v5243
        %v5500 = vunpack.c.l.b16 %v5244
        %v5501 = vunpack.c.l.b16 %v5245
        %v5502 = vunpack.c.l.b16 %v5246
        %v5503 = vunpack.c.l.b16 %v5247
        %v5504 = vunpack.c.l.b16 %v5248
        %v5505 = vunpack.c.l.b16 %v5249
        %v5506 = vunpack.c.l.b16 %v5250
        %v5507 = vunpack.c.l.b16 %v5251
        %v5508 = vunpack.c.l.b16 %v5252
        %v5509 = vunpack.c.l.b16 %v5253
        %v5510 = vunpack.c.l.b16 %v5254
        %v5511 = vunpack.c.l.b16 %v5255
        %v5512 = vunpack.c.l.b16 %v5256
        %v5513 = vunpack.c.l.b16 %v5257
        %v5514 = vunpack.c.l.b16 %v5258
        %v5515 = vunpack.c.l.b16 %v5259
        %v5516 = vunpack.c.l.b16 %v5260
        %v5517 = vunpack.c.l.b16 %v5261
        %v5518 = vunpack.c.l.b16 %v5262
        %v5519 = vunpack.c.l.b16 %v5263
        %v5520 = vunpack.c.l.b16 %v5264
        %v5521 = vunpack.c.l.b16 %v5265
        %v5522 = vunpack.c.l.b16 %v5266
        %v5523 = vunpack.c.l.b16 %v5267
        %v5524 = vunpack.c.l.b16 %v5268
        %v5525 = vunpack.c.l.b16 %v5269
        %v5526 = vunpack.c.l.b16 %v5270
        %v5527 = vunpack.c.l.b16 %v5271
        %v5528 = vunpack.c.l.b16 %v5272
        %v5529 = vunpack.c.l.b16 %v5273
        %v5530 = vunpack.c.l.b16 %v5274
        %v5531 = vunpack.c.l.b16 %v5275
        %v5532 = vunpack.c.l.b16 %v5276
        %v5533 = vunpack.c.l.b16 %v5277
        %v5534 = vunpack.c.l.b16 %v5278
        %v5535 = vunpack.c.l.b16 %v5279
        %v5536 = vunpack.c.l.b16 %v5280
        %v5537 = vunpack.c.l.b16 %v5281
        %v5538 = vunpack.c.l.b16 %v5282
        %v5539 = vunpack.c.l.b16 %v5283
        %v5540 = vunpack.c.l.b16 %v5284
        %v5541 = vunpack.c.l.b16 %v5285
        %v5542 = vunpack.c.l.b16 %v5286
        %v5543 = vunpack.c.l.b16 %v5287
        %v5544 = vunpack.c.l.b16 %v5288
        %v5545 = vunpack.c.l.b16 %v5289
        %v5546 = vunpack.c.l.b16 %v5290
        %v5547 = vunpack.c.l.b16 %v5291
        %v5548 = vpack.c.b16 %v5421, %v5420
        %v5549 = vpack.c.b16 %v5423, %v5422
        %v5550 = vpack.c.b16 %v5425, %v5424
        %v5551 = vpack.c.b16 %v5427, %v5426
        %v5552 = vpack.c.b16 %v5429, %v5428
        %v5553 = vpack.c.b16 %v5431, %v5430
        %v5554 = vpack.c.b16 %v5433, %v5432
        %v5555 = vpack.c.b16 %v5435, %v5434
        %v5556 = vpack.c.b16 %v5437, %v5436
        %v5557 = vpack.c.b16 %v5439, %v5438
        %v5558 = vpack.c.b16 %v5441, %v5440
        %v5559 = vpack.c.b16 %v5443, %v5442
        %v5560 = vpack.c.b16 %v5445, %v5444
        %v5561 = vpack.c.b16 %v5447, %v5446
        %v5562 = vpack.c.b16 %v5449, %v5448
        %v5563 = vpack.c.b16 %v5451, %v5450
        %v5564 = vpack.c.b16 %v5453, %v5452
        %v5565 = vpack.c.b16 %v5455, %v5454
        %v5566 = vpack.c.b16 %v5457, %v5456
        %v5567 = vpack.c.b16 %v5459, %v5458
        %v5568 = vpack.c.b16 %v5461, %v5460
        %v5569 = vpack.c.b16 %v5463, %v5462
        %v5570 = vpack.c.b16 %v5465, %v5464
        %v5571 = vpack.c.b16 %v5467, %v5466
        %v5572 = vpack.c.b16 %v5469, %v5468
        %v5573 = vpack.c.b16 %v5471, %v5470
        %v5574 = vpack.c.b16 %v5473, %v5472
        %v5575 = vpack.c.b16 %v5475, %v5474
        %v5576 = vpack.c.b16 %v5477, %v5476
        %v5577 = vpack.c.b16 %v5479, %v5478
        %v5578 = vpack.c.b16 %v5481, %v5480
        %v5579 = vpack.c.b16 %v5483, %v5482
        %v5580 = vpack.c.b16 %v5485, %v5484
        %v5581 = vpack.c.b16 %v5487, %v5486
        %v5582 = vpack.c.b16 %v5489, %v5488
        %v5583 = vpack.c.b16 %v5491, %v5490
        %v5584 = vpack.c.b16 %v5493, %v5492
        %v5585 = vpack.c.b16 %v5495, %v5494
        %v5586 = vpack.c.b16 %v5497, %v5496
        %v5587 = vpack.c.b16 %v5499, %v5498
        %v5588 = vpack.c.b16 %v5501, %v5500
        %v5589 = vpack.c.b16 %v5503, %v5502
        %v5590 = vpack.c.b16 %v5505, %v5504
        %v5591 = vpack.c.b16 %v5507, %v5506
        %v5592 = vpack.c.b16 %v5509, %v5508
        %v5593 = vpack.c.b16 %v5511, %v5510
        %v5594 = vpack.c.b16 %v5513, %v5512
        %v5595 = vpack.c.b16 %v5515, %v5514
        %v5596 = vpack.c.b16 %v5517, %v5516
        %v5597 = vpack.c.b16 %v5519, %v5518
        %v5598 = vpack.c.b16 %v5521, %v5520
        %v5599 = vpack.c.b16 %v5523, %v5522
        %v5600 = vpack.c.b16 %v5525, %v5524
        %v5601 = vpack.c.b16 %v5527, %v5526
        %v5602 = vpack.c.b16 %v5529, %v5528
        %v5603 = vpack.c.b16 %v5531, %v5530
        %v5604 = vpack.c.b16 %v5533, %v5532
        %v5605 = vpack.c.b16 %v5535, %v5534
        %v5606 = vpack.c.b16 %v5537, %v5536
        %v5607 = vpack.c.b16 %v5539, %v5538
        %v5608 = vpack.c.b16 %v5541, %v5540
        %v5609 = vpack.c.b16 %v5543, %v5542
        %v5610 = vpack.c.b16 %v5545, %v5544
        %v5611 = vpack.c.b16 %v5547, %v5546
        %5676 = vmatprep.subr.bf16.mxu0 0
        %5677 = vmatpush1.bf16.msra.mxu0 %v5548
        %5678 = vmatprep.subr.bf16.mxu0 0
        %5679 = vmatpush1.bf16.msra.mxu0 %v5549
        %5680 = vmatprep.subr.bf16.mxu0 0
        %5681 = vmatpush1.bf16.msra.mxu0 %v5550
        %5682 = vmatprep.subr.bf16.mxu0 0
        %5683 = vmatpush1.bf16.msra.mxu0 %v5551
        %5684 = vmatprep.subr.bf16.mxu0 0
        %5685 = vmatpush1.bf16.msra.mxu0 %v5552
        %5686 = vmatprep.subr.bf16.mxu0 0
        %5687 = vmatpush1.bf16.msra.mxu0 %v5553
        %5688 = vmatprep.subr.bf16.mxu0 0
        %5689 = vmatpush1.bf16.msra.mxu0 %v5554
        %5690 = vmatprep.subr.bf16.mxu0 0
        %5691 = vmatpush1.bf16.msra.mxu0 %v5555
        %5692 = vmatprep.subr.bf16.mxu0 0
        %5693 = vmatpush1.bf16.msra.mxu0 %v5556
        %5694 = vmatprep.subr.bf16.mxu0 0
        %5695 = vmatpush1.bf16.msra.mxu0 %v5557
        %5696 = vmatprep.subr.bf16.mxu0 0
        %5697 = vmatpush1.bf16.msra.mxu0 %v5558
        %5698 = vmatprep.subr.bf16.mxu0 0
        %5699 = vmatpush1.bf16.msra.mxu0 %v5559
        %5700 = vmatprep.subr.bf16.mxu0 0
        %5701 = vmatpush1.bf16.msra.mxu0 %v5560
        %5702 = vmatprep.subr.bf16.mxu0 0
        %5703 = vmatpush1.bf16.msra.mxu0 %v5561
        %5704 = vmatprep.subr.bf16.mxu0 0
        %5705 = vmatpush1.bf16.msra.mxu0 %v5562
        %5706 = vmatprep.subr.bf16.mxu0 0
        %5707 = vmatpush1.bf16.msra.mxu0 %v5563
        %5708 = vmatprep.mubr.bf16.mxu0 %v5157
        %5709 = vmatmul.mubr.bf16.gmra.mrb[0].mxu0 %v5156
        %v5710 = vpop.f32.mrb[0].mxu0
        %v5711 = vadd.f32 0.0, %v5710
        %v5712 = vpop.f32.mrb[0].mxu0
        %v5713 = vpop.f32.mrb[0].mxu0
        %v5714 = vpop.f32.mrb[0].mxu0
        %5715 = vdwg.mxu0
        %5716 = vmatprep.subr.bf16.mxu0 0
        %5717 = vmatpush1.bf16.msra.mxu0 %v5564
        %5718 = vmatprep.subr.bf16.mxu0 0
        %5719 = vmatpush1.bf16.msra.mxu0 %v5565
        %5720 = vmatprep.subr.bf16.mxu0 0
        %5721 = vmatpush1.bf16.msra.mxu0 %v5566
        %5722 = vmatprep.subr.bf16.mxu0 0
        %5723 = vmatpush1.bf16.msra.mxu0 %v5567
        %5724 = vmatprep.subr.bf16.mxu0 0
        %5725 = vmatpush1.bf16.msra.mxu0 %v5568
        %5726 = vmatprep.subr.bf16.mxu0 0
        %5727 = vmatpush1.bf16.msra.mxu0 %v5569
        %5728 = vmatprep.subr.bf16.mxu0 0
        %5729 = vmatpush1.bf16.msra.mxu0 %v5570
        %5730 = vmatprep.subr.bf16.mxu0 0
        %5731 = vmatpush1.bf16.msra.mxu0 %v5571
        %5732 = vmatprep.subr.bf16.mxu0 0
        %5733 = vmatpush1.bf16.msra.mxu0 %v5572
        %5734 = vmatprep.subr.bf16.mxu0 0
        %5735 = vmatpush1.bf16.msra.mxu0 %v5573
        %5736 = vmatprep.subr.bf16.mxu0 0
        %5737 = vmatpush1.bf16.msra.mxu0 %v5574
        %5738 = vmatprep.subr.bf16.mxu0 0
        %5739 = vmatpush1.bf16.msra.mxu0 %v5575
        %5740 = vmatprep.subr.bf16.mxu0 0
        %5741 = vmatpush1.bf16.msra.mxu0 %v5576
        %5742 = vmatprep.subr.bf16.mxu0 0
        %5743 = vmatpush1.bf16.msra.mxu0 %v5577
        %5744 = vmatprep.subr.bf16.mxu0 0
        %5745 = vmatpush1.bf16.msra.mxu0 %v5578
        %5746 = vmatprep.subr.bf16.mxu0 0
        %5747 = vmatpush1.bf16.msra.mxu0 %v5579
        %5748 = vmatprep.mubr.bf16.mxu0 %v5159
        %5749 = vmatmul.mubr.bf16.gmra.mrb[0].mxu0 %v5158
        %v5750 = vpop.f32.mrb[0].mxu0
        %v5751 = vadd.f32 %v5711, %v5750
        %v5752 = vpop.f32.mrb[0].mxu0
        %v5753 = vpop.f32.mrb[0].mxu0
        %v5754 = vpop.f32.mrb[0].mxu0
        %5755 = vdwg.mxu0
        %5756 = vmatprep.subr.bf16.mxu0 0
        %5757 = vmatpush1.bf16.msra.mxu0 %v5580
        %5758 = vmatprep.subr.bf16.mxu0 0
        %5759 = vmatpush1.bf16.msra.mxu0 %v5581
        %5760 = vmatprep.subr.bf16.mxu0 0
        %5761 = vmatpush1.bf16.msra.mxu0 %v5582
        %5762 = vmatprep.subr.bf16.mxu0 0
        %5763 = vmatpush1.bf16.msra.mxu0 %v5583
        %5764 = vmatprep.subr.bf16.mxu0 0
        %5765 = vmatpush1.bf16.msra.mxu0 %v5584
        %5766 = vmatprep.subr.bf16.mxu0 0
        %5767 = vmatpush1.bf16.msra.mxu0 %v5585
        %5768 = vmatprep.subr.bf16.mxu0 0
        %5769 = vmatpush1.bf16.msra.mxu0 %v5586
        %5770 = vmatprep.subr.bf16.mxu0 0
        %5771 = vmatpush1.bf16.msra.mxu0 %v5587
        %5772 = vmatprep.subr.bf16.mxu0 0
        %5773 = vmatpush1.bf16.msra.mxu0 %v5588
        %5774 = vmatprep.subr.bf16.mxu0 0
        %5775 = vmatpush1.bf16.msra.mxu0 %v5589
        %5776 = vmatprep.subr.bf16.mxu0 0
        %5777 = vmatpush1.bf16.msra.mxu0 %v5590
        %5778 = vmatprep.subr.bf16.mxu0 0
        %5779 = vmatpush1.bf16.msra.mxu0 %v5591
        %5780 = vmatprep.subr.bf16.mxu0 0
        %5781 = vmatpush1.bf16.msra.mxu0 %v5592
        %5782 = vmatprep.subr.bf16.mxu0 0
        %5783 = vmatpush1.bf16.msra.mxu0 %v5593
        %5784 = vmatprep.subr.bf16.mxu0 0
        %5785 = vmatpush1.bf16.msra.mxu0 %v5594
        %5786 = vmatprep.subr.bf16.mxu0 0
        %5787 = vmatpush1.bf16.msra.mxu0 %v5595
        %5788 = vmatprep.mubr.bf16.mxu0 %v5161
        %5789 = vmatmul.mubr.bf16.gmra.mrb[0].mxu0 %v5160
        %v5790 = vpop.f32.mrb[0].mxu0
        %v5791 = vadd.f32 %v5751, %v5790
        %v5792 = vpop.f32.mrb[0].mxu0
        %v5793 = vpop.f32.mrb[0].mxu0
        %v5794 = vpop.f32.mrb[0].mxu0
        %5795 = vdwg.mxu0
        %5796 = vmatprep.subr.bf16.mxu0 0
        %5797 = vmatpush1.bf16.msra.mxu0 %v5596
        %5798 = vmatprep.subr.bf16.mxu0 0
        %5799 = vmatpush1.bf16.msra.mxu0 %v5597
        %5800 = vmatprep.subr.bf16.mxu0 0
        %5801 = vmatpush1.bf16.msra.mxu0 %v5598
        %5802 = vmatprep.subr.bf16.mxu0 0
        %5803 = vmatpush1.bf16.msra.mxu0 %v5599
        %5804 = vmatprep.subr.bf16.mxu0 0
        %5805 = vmatpush1.bf16.msra.mxu0 %v5600
        %5806 = vmatprep.subr.bf16.mxu0 0
        %5807 = vmatpush1.bf16.msra.mxu0 %v5601
        %5808 = vmatprep.subr.bf16.mxu0 0
        %5809 = vmatpush1.bf16.msra.mxu0 %v5602
        %5810 = vmatprep.subr.bf16.mxu0 0
        %5811 = vmatpush1.bf16.msra.mxu0 %v5603
        %5812 = vmatprep.subr.bf16.mxu0 0
        %5813 = vmatpush1.bf16.msra.mxu0 %v5604
        %5814 = vmatprep.subr.bf16.mxu0 0
        %5815 = vmatpush1.bf16.msra.mxu0 %v5605
        %5816 = vmatprep.subr.bf16.mxu0 0
        %5817 = vmatpush1.bf16.msra.mxu0 %v5606
        %5818 = vmatprep.subr.bf16.mxu0 0
        %5819 = vmatpush1.bf16.msra.mxu0 %v5607
        %5820 = vmatprep.subr.bf16.mxu0 0
        %5821 = vmatpush1.bf16.msra.mxu0 %v5608
        %5822 = vmatprep.subr.bf16.mxu0 0
        %5823 = vmatpush1.bf16.msra.mxu0 %v5609
        %5824 = vmatprep.subr.bf16.mxu0 0
        %5825 = vmatpush1.bf16.msra.mxu0 %v5610
        %5826 = vmatprep.subr.bf16.mxu0 0
        %5827 = vmatpush1.bf16.msra.mxu0 %v5611
        %5828 = vmatprep.mubr.bf16.mxu0 %v5163
        %5829 = vmatmul.mubr.bf16.gmra.mrb[0].mxu0 %v5162
        %v5830 = vpop.f32.mrb[0].mxu0
        %v5831 = vadd.f32 %v5791, %v5830
        %v5832 = vpop.f32.mrb[0].mxu0
        %v5833 = vpop.f32.mrb[0].mxu0
        %v5834 = vpop.f32.mrb[0].mxu0
        %5835 = vdwg.mxu0
        %v5836 = vadd.f32 %v5155, %v5831
        %5837 = vst [vmem:[%s1338] sm:$0xff] %v5836
        %p5838 = scmp.eq.s32.totalorder %s21, 1
        // Predicated region
        $region68: #{cnn_femnist_server_forward.1} parent=58 // pred_check
          %p5839 = pneg %p5838
        $region69: #{cnn_femnist_server_forward.1} parent=58 // pred_check_branch
          %5841 = sbr.rel (%p5839) target = $region71
        $region70: #{cnn_femnist_server_forward.1} parent=58 // pred_region
          %v5842 = vld [vmem:[%s1338] sm:$0xff]
          %v5843 = vld [vmem:[%s4] sm:$0x1]
          %v5845 = vlaneseq
          %v5846 = vshrl.u32 %v5845, 7
          %v5847 = vsub.s32 0, %v5846
          %v5848 = vrot.slane %v5843, %v5847
          %v5850 = vadd.f32 %v5842, %v5848
          %5851 = vst [vmem:[%s1338] sm:$0xff] %v5850
        $region71: #{cnn_femnist_server_forward.1} parent=58 // pred_fallthru
          _
        %p5852 = scmp.lt.s32.totalorder %s20, 0
        %s5853 = scalar_select %p5852, %s20, 0
        %s5854 = smul.addr %s5853, 8
        %s5855 = scalar_lea.vmem %s5, %s5854
        // Predicated region
        $region72: #{cnn_femnist_server_forward.1} parent=58 // pred_check
          %p5856 = pneg %p171
        $region73: #{cnn_femnist_server_forward.1} parent=58 // pred_check_branch
          %5858 = sbr.rel (%p5856) target = $region75
        $region74: #{cnn_femnist_server_forward.1} parent=58 // pred_region
          _
        $region75: #{cnn_femnist_server_forward.1} parent=58 // pred_fallthru
          _
        // Predicated region
        $region76: #{cnn_femnist_server_forward.1} parent=58 // pred_check
          %p5859 = pneg %p171
        $region77: #{cnn_femnist_server_forward.1} parent=58 // pred_check_branch
          %5861 = sbr.rel (%p5859) target = $region79
        $region78: #{cnn_femnist_server_forward.1} parent=58 // pred_region
          %p5862 = scmp.lt.s32.totalorder %s20, 0
          %s5863 = scalar_select %p5862, %s20, 0
          %s5864 = smul.addr %s5863, 8
          %s5865 = scalar_lea.vmem %s5, %s5864
        $region79: #{cnn_femnist_server_forward.1} parent=58 // pred_fallthru
          _
      $region59: #{cnn_femnist_server_forward.1} parent=5 // pred_fallthru
        _
      %p5866 = scmp.le.s32.totalorder 2, %s11
      // Predicated region
      $region80: #{cnn_femnist_server_forward.1} parent=5 // pred_check
        %p5867 = pneg %p5866
      $region81: #{cnn_femnist_server_forward.1} parent=5 // pred_check_branch
        %5869 = sbr.rel (%p5867) target = $region83
      $region82: #{cnn_femnist_server_forward.1} parent=5 // pred_region
        %s5870 = ssub.s32 %s11, 2
      $region83: #{cnn_femnist_server_forward.1} parent=5 // pred_fallthru
        _
    $region6: #{cnn_femnist_server_forward.1} parent=1 // loop_footer
      %s15 = sadd.s32 1, %s11
    $region7: #{cnn_femnist_server_forward.1} parent=1 // loop_footer_branch
      %10 = sbr.rel target = $region3
    $region8: #{cnn_femnist_server_forward.1} parent=1 // loop_exit
      _

</llo_original>
